<compile_context>
chip_gen: v6e
topology: v6e:2x2x1
jax: 0.10.0
libtpu: 0.0.40
codegen_flags: <defaults>
</compile_context>

<pallas_src>
import jax
import jax.numpy as jnp
from jax.experimental import pallas as pl
from jax.experimental.pallas import tpu as pltpu


# ----------------------------------------------------------------------------
# Geometry
# ----------------------------------------------------------------------------
H_IN, W_IN, C_IN = 20, 20, 4
C1 = 16                      # conv1 out channels
C2 = 32                      # conv2 out channels
H1, W1 = 18, 18              # conv1 valid output
H2, W2 = 16, 16              # conv2 valid output
FEAT = C2 * H2 * W2          # 8192 (torch flatten size)
HID = 256

# "Wide" conv layout: keep the full 20-column grid so every 3x3 tap of conv2 is
# a single shifted column-slice of conv1's output.  Per-element column band for
# the conv1 output / conv2 input:
#   conv2 valid outputs read y1 columns up to 315 + 42 = 357 < 362; round to 384
#   so per-element offsets are multiples of 128.
R1E = 384                    # per-element column band (conv1 output columns)
LANE_PAD = 128               # extra zero columns so every tap slice is in-bounds
R_OUT = H2 * W_IN            # 320 wide conv2 rows kept per element (16 x 20 grid)
FEAT_WIDE = C2 * R_OUT       # 10240 features (w >= 16 columns are garbage,
                             # matched by zero rows in the padded w3)
MAX_OFF = 2 * W_IN + 2       # 42 = largest tap offset


# ----------------------------------------------------------------------------
# Kernel 1: fused Conv2d(4,16,3)+Tanh -> Conv2d(16,32,3)+Tanh
#           transposed formulation, batch folded into lanes, single grid step
# ----------------------------------------------------------------------------
def _make_conv_kernel(batch):
    q2 = batch * R1E   # conv2 output columns (per-element stride R1E)

    def kernel(xim_ref, w1_ref, b1_ref, w2_ref, b2_ref, o_ref, y1_scr, patch_scr):
        # conv1: ONE matmul (16, 36) @ (36, cols) + bias + tanh
        y1_scr[...] = jnp.tanh(
            jnp.dot(w1_ref[...], xim_ref[...],
                    preferred_element_type=jnp.float32) + b1_ref[...])

        # build the conv2 patch matrix (144, q2): 9 shifted copies of y1,
        # stacked on sublanes (16-row pieces -> sublane aligned).
        for t in range(9):
            i, j = divmod(t, 3)
            off = i * W_IN + j
            patch_scr[C1 * t:C1 * (t + 1), :] = y1_scr[:, off:off + q2]

        # conv2: ONE matmul (32, 144) @ (144, q2) + bias + tanh
        y2 = jnp.tanh(
            jnp.dot(w2_ref[...], patch_scr[...],
                    preferred_element_type=jnp.float32) + b2_ref[...])

        # per-element slice of the wide 16x20 grid (lane offset b*384 is
        # 128-aligned); garbage (w>=16) columns are handled by zero w3 rows.
        for b in range(batch):
            o_ref[b] = y2[:, b * R1E:b * R1E + R_OUT]

    return kernel


def conv_stack(xim, w1p, b1p, w2p, b2p, batch):
    xcols = xim.shape[1]
    return pl.pallas_call(
        _make_conv_kernel(batch),
        out_shape=jax.ShapeDtypeStruct((batch, C2, R_OUT), jnp.float32),
        grid=(1,),
        in_specs=[
            pl.BlockSpec((9 * C_IN, xcols), lambda i: (0, 0)),
            pl.BlockSpec((C1, 9 * C_IN), lambda i: (0, 0)),
            pl.BlockSpec((C1, 1), lambda i: (0, 0)),
            pl.BlockSpec((C2, 9 * C1), lambda i: (0, 0)),
            pl.BlockSpec((C2, 1), lambda i: (0, 0)),
        ],
        out_specs=pl.BlockSpec((batch, C2, R_OUT), lambda i: (0, 0, 0)),
        scratch_shapes=[
            pltpu.VMEM((C1, xcols), jnp.float32),          # y1 (wide, all elems)
            pltpu.VMEM((9 * C1, batch * R1E), jnp.float32),  # conv2 patch matrix
        ],
        compiler_params=pltpu.CompilerParams(
            dimension_semantics=("arbitrary",)),
    )(xim, w1p, b1p, w2p, b2p)


# ----------------------------------------------------------------------------
# Kernel 2: fused Linear(10240->256, zero-padded) + Tanh -> Linear(256,1)
#           fc1 K-tiled (2 steps), fc2 on the VPU in the last-step epilogue
# ----------------------------------------------------------------------------
def _fc_head_kernel(feat_ref, w3_ref, b3_ref, w4_ref, b4_ref, o_ref, acc_ref):
    k = pl.program_id(0)

    @pl.when(k == 0)
    def _():
        acc_ref[...] = jnp.zeros_like(acc_ref)

    acc_ref[...] += jnp.dot(feat_ref[...], w3_ref[...],
                            preferred_element_type=jnp.float32)

    @pl.when(k == pl.num_programs(0) - 1)
    def _():
        h = jnp.tanh(acc_ref[...] + b3_ref[...])                    # (B, 256)
        # fc2 has N=1: broadcast-mul + lane reduce (VPU/XLU) beats an N=1 MXU push.
        o_ref[...] = (jnp.sum(h * w4_ref[...], axis=-1, keepdims=True)
                      + b4_ref[...])                                # (B, 1)


def fc_head(feat, w3, b3, w4row, b4, *, tk=5120):
    B, K = feat.shape
    N = w3.shape[1]
    assert K % tk == 0
    return pl.pallas_call(
        _fc_head_kernel,
        out_shape=jax.ShapeDtypeStruct((B, 1), jnp.float32),
        grid=(K // tk,),
        in_specs=[
            pl.BlockSpec((B, tk), lambda k: (0, k)),
            pl.BlockSpec((tk, N), lambda k: (k, 0)),
            pl.BlockSpec((1, N), lambda k: (0, 0)),
            pl.BlockSpec((1, N), lambda k: (0, 0)),
            pl.BlockSpec((1, 1), lambda k: (0, 0)),
        ],
        out_specs=pl.BlockSpec((B, 1), lambda k: (0, 0)),
        scratch_shapes=[pltpu.VMEM((B, N), jnp.float32)],
        compiler_params=pltpu.CompilerParams(
            dimension_semantics=("arbitrary",)),
    )(feat, w3, b3, w4row, b4)


# ----------------------------------------------------------------------------
# Parameters: PyTorch-convention init + one-time offline repack for the kernels
# ----------------------------------------------------------------------------
def init_torch_params(key):
    def uniform(k, shape, fan_in):
        bound = 1.0 / jnp.sqrt(jnp.float32(fan_in))
        return jax.random.uniform(k, shape, jnp.float32, -bound, bound)

    ks = jax.random.split(key, 8)
    return {
        "w1": uniform(ks[0], (C1, C_IN, 3, 3), C_IN * 9),
        "b1": uniform(ks[1], (C1,), C_IN * 9),
        "w2": uniform(ks[2], (C2, C1, 3, 3), C1 * 9),
        "b2": uniform(ks[3], (C2,), C1 * 9),
        "w3": uniform(ks[4], (HID, FEAT), FEAT),     # (256, 8192) torch layout
        "b3": uniform(ks[5], (HID,), FEAT),
        "w4": uniform(ks[6], (1, HID), HID),         # (1, 256)
        "b4": uniform(ks[7], (1,), HID),
    }


def pack_params(tp):
    """One-time offline repack:
       conv weights -> (Cout, 9*Cin) with column order t*Cin + cin (t = i*3+j);
       fc1 weight   -> (10240, 256): torch NCHW flatten (c,h,w) re-indexed to the
                       wide (c, h*20+w) layout, zero rows at w in [16,20);
       fc2 weight   -> lane-dense (1, 256) row."""
    w1p = tp["w1"].transpose(0, 2, 3, 1).reshape(C1, 9 * C_IN)
    w2p = tp["w2"].transpose(0, 2, 3, 1).reshape(C2, 9 * C1)
    w3r = tp["w3"].reshape(HID, C2, H2, W2)
    w3r = jnp.pad(w3r, ((0, 0), (0, 0), (0, 0), (0, W_IN - W2)))     # (256,32,16,20)
    w3w = w3r.reshape(HID, C2, R_OUT).transpose(1, 2, 0).reshape(FEAT_WIDE, HID)
    return {
        "w1": w1p, "b1": tp["b1"].reshape(C1, 1),
        "w2": w2p, "b2": tp["b2"].reshape(C2, 1),
        "w3": w3w, "b3": tp["b3"].reshape(1, HID),
        "w4": tp["w4"],                       # (1, 256)
        "b4": tp["b4"].reshape(1, 1),
    }


# ----------------------------------------------------------------------------
# Wrapper-side conv1 im2col (tiny XLA glue, ~130 KB for B=2)
# ----------------------------------------------------------------------------
def _build_conv1_patches(x_nhwc):
    """(B, 20, 20, 4) -> transposed im2col (36, B*384 + 128); row = t*4 + cin,
       column = b*384 + (h*20 + w); out-of-range taps / pad columns are zero."""
    B = x_nhwc.shape[0]
    xp = jnp.pad(x_nhwc, ((0, 0), (0, 2), (0, 2), (0, 0)))          # (B,22,22,4)
    taps = []
    for i in range(3):
        for j in range(3):
            t = xp[:, i:i + H_IN, j:j + W_IN, :].reshape(B, H_IN * W_IN, C_IN)
            taps.append(t[:, :R1E, :])                              # (B, 384, 4)
    xim = jnp.stack(taps, axis=0)                                   # (9,B,384,4)
    xim = xim.transpose(0, 3, 1, 2).reshape(9 * C_IN, B * R1E)      # (36, B*384)
    return jnp.pad(xim, ((0, 0), (0, LANE_PAD)))                    # (36, B*384+128)


# ----------------------------------------------------------------------------
# Forward pass
# ----------------------------------------------------------------------------
@jax.jit
def critic_forward(params, state):
    """state: (B, 4, 20, 20) float32 NCHW -> value (B, 1)."""
    B = state.shape[0]
    x = state.transpose(0, 2, 3, 1)                                 # NHWC
    xim = _build_conv1_patches(x)                                   # (36, B*384+128)

    feat3 = conv_stack(xim, params["w1"], params["b1"],
                       params["w2"], params["b2"], B)               # (B, 32, 320)
    feat = feat3.reshape(B, FEAT_WIDE)                              # free view

    return fc_head(feat, params["w3"], params["b3"],
                   params["w4"], params["b4"], tk=5120)             # (B, 1)


# ----------------------------------------------------------------------------
# Pure-JAX reference (torch-convention params) for a correctness check
# ----------------------------------------------------------------------------
def reference_forward(tp, state):
    dn = ("NCHW", "OIHW", "NCHW")
    hi = jax.lax.Precision.HIGHEST
    y = jax.lax.conv_general_dilated(state, tp["w1"], (1, 1), "VALID",
                                     dimension_numbers=dn, precision=hi)
    y = jnp.tanh(y + tp["b1"][None, :, None, None])
    y = jax.lax.conv_general_dilated(y, tp["w2"], (1, 1), "VALID",
                                     dimension_numbers=dn, precision=hi)
    y = jnp.tanh(y + tp["b2"][None, :, None, None])
    f = y.reshape(y.shape[0], -1)
    h = jnp.tanh(jnp.dot(f, tp["w3"].T, precision=hi) + tp["b3"])
    return jnp.dot(h, tp["w4"].T, precision=hi) + tp["b4"]


# ----------------------------------------------------------------------------
# Main
# ----------------------------------------------------------------------------
if __name__ == "__main__":
    key = jax.random.PRNGKey(0)
    k_params, k_input = jax.random.split(key)

    torch_params = init_torch_params(k_params)
    params = pack_params(torch_params)        # one-time offline repack
    # Module geometry (Linear(8192,256)) forces a 20x20 spatial input; B=2.
    state = jax.random.normal(k_input, (2, C_IN, H_IN, W_IN), dtype=jnp.float32)

    value = jax.block_until_ready(critic_forward(params, state))

    assert value.shape == (2, 1)
    assert value.dtype == jnp.float32

    ref = reference_forward(torch_params, state)
    assert jnp.allclose(value, ref, atol=5e-3, rtol=5e-3)

    print("KERNEL_OK")
</pallas_src>

<mosaic_0001>
module attributes {stable_mosaic.version = 11 : i64} {
  func.func @kernel(%arg0: i32, %arg1: memref<36x896xf32, #tpu.memory_space<vmem>>, %arg2: memref<16x36xf32, #tpu.memory_space<vmem>>, %arg3: memref<16x1xf32, #tpu.memory_space<vmem>>, %arg4: memref<32x144xf32, #tpu.memory_space<vmem>>, %arg5: memref<32x1xf32, #tpu.memory_space<vmem>>, %arg6: memref<2x32x320xf32, #tpu.memory_space<vmem>>, %arg7: memref<16x896xf32, #tpu.memory_space<vmem>>, %arg8: memref<144x768xf32, #tpu.memory_space<vmem>>) attributes {dimension_semantics = [#tpu.dimension_semantics<arbitrary>], iteration_bounds = array<i64: 1>, scalar_prefetch = 0 : i64, scratch_operands = 2 : i64, tpu.core_type = #tpu.core_type<tc>, window_params = [{pipeline_mode = #tpu.pipeline_mode<synchronous>, transform_indices = @transform_0, window_bounds = array<i64: 36, 896>}, {pipeline_mode = #tpu.pipeline_mode<synchronous>, transform_indices = @transform_1, window_bounds = array<i64: 16, 36>}, {pipeline_mode = #tpu.pipeline_mode<synchronous>, transform_indices = @transform_2, window_bounds = array<i64: 16, 1>}, {pipeline_mode = #tpu.pipeline_mode<synchronous>, transform_indices = @transform_3, window_bounds = array<i64: 32, 144>}, {pipeline_mode = #tpu.pipeline_mode<synchronous>, transform_indices = @transform_4, window_bounds = array<i64: 32, 1>}, {pipeline_mode = #tpu.pipeline_mode<synchronous>, transform_indices = @transform_5, window_bounds = array<i64: 2, 32, 320>}]} {
    %c0 = arith.constant 0 : index
    %c0_0 = arith.constant 0 : index
    %0 = vector.load %arg2[%c0, %c0_0] : memref<16x36xf32, #tpu.memory_space<vmem>>, vector<16x36xf32>
    %c0_1 = arith.constant 0 : index
    %c0_2 = arith.constant 0 : index
    %1 = vector.load %arg1[%c0_1, %c0_2] : memref<36x896xf32, #tpu.memory_space<vmem>>, vector<36x896xf32>
    %cst = arith.constant dense<0.000000e+00> : vector<16x896xf32>
    %2 = tpu.matmul %0, %1, %cst {dimension_numbers = #tpu.dot_dimension_numbers<[1], [0], [0], [1], [0, 0, 1, 1], [], []>} : vector<16x36xf32>, vector<36x896xf32>, vector<16x896xf32> -> vector<16x896xf32>
    %c0_3 = arith.constant 0 : index
    %c0_4 = arith.constant 0 : index
    %3 = vector.load %arg3[%c0_3, %c0_4] : memref<16x1xf32, #tpu.memory_space<vmem>>, vector<16x1xf32>
    %4 = vector.broadcast %3 : vector<16x1xf32> to vector<16x896xf32>
    %5 = arith.addf %2, %4 : vector<16x896xf32>
    %6 = math.tanh %5 : vector<16x896xf32>
    %c0_5 = arith.constant 0 : index
    %c0_6 = arith.constant 0 : index
    %7 = vector.load %arg7[%c0_5, %c0_6] : memref<16x896xf32, #tpu.memory_space<vmem>>, vector<16x896xf32>
    tpu.vector_store %arg7[%c0_5, %c0_6], %6 {strides = array<i32>} : memref<16x896xf32, #tpu.memory_space<vmem>>, vector<16x896xf32>,
    %c0_7 = arith.constant 0 : index
    %c0_8 = arith.constant 0 : index
    %8 = vector.load %arg7[%c0_7, %c0_8] : memref<16x896xf32, #tpu.memory_space<vmem>>, vector<16x768xf32>
    %c0_9 = arith.constant 0 : index
    %c0_10 = arith.constant 0 : index
    %9 = vector.load %arg8[%c0_9, %c0_10] : memref<144x768xf32, #tpu.memory_space<vmem>>, vector<16x768xf32>
    tpu.vector_store %arg8[%c0_9, %c0_10], %8 {strides = array<i32>} : memref<144x768xf32, #tpu.memory_space<vmem>>, vector<16x768xf32>,
    %c0_11 = arith.constant 0 : index
    %c1 = arith.constant 1 : index
    %10 = vector.load %arg7[%c0_11, %c1] : memref<16x896xf32, #tpu.memory_space<vmem>>, vector<16x768xf32>
    %c16 = arith.constant 16 : index
    %c0_12 = arith.constant 0 : index
    %11 = vector.load %arg8[%c16, %c0_12] : memref<144x768xf32, #tpu.memory_space<vmem>>, vector<16x768xf32>
    tpu.vector_store %arg8[%c16, %c0_12], %10 {strides = array<i32>} : memref<144x768xf32, #tpu.memory_space<vmem>>, vector<16x768xf32>,
    %c0_13 = arith.constant 0 : index
    %c2 = arith.constant 2 : index
    %12 = vector.load %arg7[%c0_13, %c2] : memref<16x896xf32, #tpu.memory_space<vmem>>, vector<16x768xf32>
    %c32 = arith.constant 32 : index
    %c0_14 = arith.constant 0 : index
    %13 = vector.load %arg8[%c32, %c0_14] : memref<144x768xf32, #tpu.memory_space<vmem>>, vector<16x768xf32>
    tpu.vector_store %arg8[%c32, %c0_14], %12 {strides = array<i32>} : memref<144x768xf32, #tpu.memory_space<vmem>>, vector<16x768xf32>,
    %c0_15 = arith.constant 0 : index
    %c20 = arith.constant 20 : index
    %14 = vector.load %arg7[%c0_15, %c20] : memref<16x896xf32, #tpu.memory_space<vmem>>, vector<16x768xf32>
    %c48 = arith.constant 48 : index
    %c0_16 = arith.constant 0 : index
    %15 = vector.load %arg8[%c48, %c0_16] : memref<144x768xf32, #tpu.memory_space<vmem>>, vector<16x768xf32>
    tpu.vector_store %arg8[%c48, %c0_16], %14 {strides = array<i32>} : memref<144x768xf32, #tpu.memory_space<vmem>>, vector<16x768xf32>,
    %c0_17 = arith.constant 0 : index
    %c21 = arith.constant 21 : index
    %16 = vector.load %arg7[%c0_17, %c21] : memref<16x896xf32, #tpu.memory_space<vmem>>, vector<16x768xf32>
    %c64 = arith.constant 64 : index
    %c0_18 = arith.constant 0 : index
    %17 = vector.load %arg8[%c64, %c0_18] : memref<144x768xf32, #tpu.memory_space<vmem>>, vector<16x768xf32>
    tpu.vector_store %arg8[%c64, %c0_18], %16 {strides = array<i32>} : memref<144x768xf32, #tpu.memory_space<vmem>>, vector<16x768xf32>,
    %c0_19 = arith.constant 0 : index
    %c22 = arith.constant 22 : index
    %18 = vector.load %arg7[%c0_19, %c22] : memref<16x896xf32, #tpu.memory_space<vmem>>, vector<16x768xf32>
    %c80 = arith.constant 80 : index
    %c0_20 = arith.constant 0 : index
    %19 = vector.load %arg8[%c80, %c0_20] : memref<144x768xf32, #tpu.memory_space<vmem>>, vector<16x768xf32>
    tpu.vector_store %arg8[%c80, %c0_20], %18 {strides = array<i32>} : memref<144x768xf32, #tpu.memory_space<vmem>>, vector<16x768xf32>,
    %c0_21 = arith.constant 0 : index
    %c40 = arith.constant 40 : index
    %20 = vector.load %arg7[%c0_21, %c40] : memref<16x896xf32, #tpu.memory_space<vmem>>, vector<16x768xf32>
    %c96 = arith.constant 96 : index
    %c0_22 = arith.constant 0 : index
    %21 = vector.load %arg8[%c96, %c0_22] : memref<144x768xf32, #tpu.memory_space<vmem>>, vector<16x768xf32>
    tpu.vector_store %arg8[%c96, %c0_22], %20 {strides = array<i32>} : memref<144x768xf32, #tpu.memory_space<vmem>>, vector<16x768xf32>,
    %c0_23 = arith.constant 0 : index
    %c41 = arith.constant 41 : index
    %22 = vector.load %arg7[%c0_23, %c41] : memref<16x896xf32, #tpu.memory_space<vmem>>, vector<16x768xf32>
    %c112 = arith.constant 112 : index
    %c0_24 = arith.constant 0 : index
    %23 = vector.load %arg8[%c112, %c0_24] : memref<144x768xf32, #tpu.memory_space<vmem>>, vector<16x768xf32>
    tpu.vector_store %arg8[%c112, %c0_24], %22 {strides = array<i32>} : memref<144x768xf32, #tpu.memory_space<vmem>>, vector<16x768xf32>,
    %c0_25 = arith.constant 0 : index
    %c42 = arith.constant 42 : index
    %24 = vector.load %arg7[%c0_25, %c42] : memref<16x896xf32, #tpu.memory_space<vmem>>, vector<16x768xf32>
    %c128 = arith.constant 128 : index
    %c0_26 = arith.constant 0 : index
    %25 = vector.load %arg8[%c128, %c0_26] : memref<144x768xf32, #tpu.memory_space<vmem>>, vector<16x768xf32>
    tpu.vector_store %arg8[%c128, %c0_26], %24 {strides = array<i32>} : memref<144x768xf32, #tpu.memory_space<vmem>>, vector<16x768xf32>,
    %c0_27 = arith.constant 0 : index
    %c0_28 = arith.constant 0 : index
    %26 = vector.load %arg4[%c0_27, %c0_28] : memref<32x144xf32, #tpu.memory_space<vmem>>, vector<32x144xf32>
    %c0_29 = arith.constant 0 : index
    %c0_30 = arith.constant 0 : index
    %27 = vector.load %arg8[%c0_29, %c0_30] : memref<144x768xf32, #tpu.memory_space<vmem>>, vector<144x768xf32>
    %cst_31 = arith.constant dense<0.000000e+00> : vector<32x768xf32>
    %28 = tpu.matmul %26, %27, %cst_31 {dimension_numbers = #tpu.dot_dimension_numbers<[1], [0], [0], [1], [0, 0, 1, 1], [], []>} : vector<32x144xf32>, vector<144x768xf32>, vector<32x768xf32> -> vector<32x768xf32>
    %c0_32 = arith.constant 0 : index
    %c0_33 = arith.constant 0 : index
    %29 = vector.load %arg5[%c0_32, %c0_33] : memref<32x1xf32, #tpu.memory_space<vmem>>, vector<32x1xf32>
    %30 = vector.broadcast %29 : vector<32x1xf32> to vector<32x768xf32>
    %31 = arith.addf %28, %30 : vector<32x768xf32>
    %32 = math.tanh %31 : vector<32x768xf32>
    %33 = vector.extract_strided_slice %32 {offsets = [0, 0], sizes = [32, 320], strides = [1, 1]} : vector<32x768xf32> to vector<32x320xf32>
    %c0_34 = arith.constant 0 : index
    %c0_35 = arith.constant 0 : index
    %c0_36 = arith.constant 0 : index
    %34 = vector.load %arg6[%c0_34, %c0_35, %c0_36] : memref<2x32x320xf32, #tpu.memory_space<vmem>>, vector<1x32x320xf32>
    %35 = vector.shape_cast %34 : vector<1x32x320xf32> to vector<32x320xf32>
    %36 = vector.shape_cast %33 : vector<32x320xf32> to vector<1x32x320xf32>
    tpu.vector_store %arg6[%c0_34, %c0_35, %c0_36], %36 {strides = array<i32>} : memref<2x32x320xf32, #tpu.memory_space<vmem>>, vector<1x32x320xf32>,
    %37 = vector.extract_strided_slice %32 {offsets = [0, 384], sizes = [32, 320], strides = [1, 1]} : vector<32x768xf32> to vector<32x320xf32>
    %c1_37 = arith.constant 1 : index
    %c0_38 = arith.constant 0 : index
    %c0_39 = arith.constant 0 : index
    %38 = vector.load %arg6[%c1_37, %c0_38, %c0_39] : memref<2x32x320xf32, #tpu.memory_space<vmem>>, vector<1x32x320xf32>
    %39 = vector.shape_cast %38 : vector<1x32x320xf32> to vector<32x320xf32>
    %40 = vector.shape_cast %37 : vector<32x320xf32> to vector<1x32x320xf32>
    tpu.vector_store %arg6[%c1_37, %c0_38, %c0_39], %40 {strides = array<i32>} : memref<2x32x320xf32, #tpu.memory_space<vmem>>, vector<1x32x320xf32>,
    return
  }
  func.func @transform_0(%arg0: i32) -> (i32, i32) {
    %c0_i32 = arith.constant 0 : i32
    %c0_i32_0 = arith.constant 0 : i32
    %c0_i32_1 = arith.constant 0 : i32
    return %c0_i32, %c0_i32_0 : i32, i32
  }
  func.func @transform_1(%arg0: i32) -> (i32, i32) {
    %c0_i32 = arith.constant 0 : i32
    %c0_i32_0 = arith.constant 0 : i32
    %c0_i32_1 = arith.constant 0 : i32
    return %c0_i32, %c0_i32_0 : i32, i32
  }
  func.func @transform_2(%arg0: i32) -> (i32, i32) {
    %c0_i32 = arith.constant 0 : i32
    %c0_i32_0 = arith.constant 0 : i32
    %c0_i32_1 = arith.constant 0 : i32
    return %c0_i32, %c0_i32_0 : i32, i32
  }
  func.func @transform_3(%arg0: i32) -> (i32, i32) {
    %c0_i32 = arith.constant 0 : i32
    %c0_i32_0 = arith.constant 0 : i32
    %c0_i32_1 = arith.constant 0 : i32
    return %c0_i32, %c0_i32_0 : i32, i32
  }
  func.func @transform_4(%arg0: i32) -> (i32, i32) {
    %c0_i32 = arith.constant 0 : i32
    %c0_i32_0 = arith.constant 0 : i32
    %c0_i32_1 = arith.constant 0 : i32
    return %c0_i32, %c0_i32_0 : i32, i32
  }
  func.func @transform_5(%arg0: i32) -> (i32, i32, i32) {
    %c0_i32 = arith.constant 0 : i32
    %c0_i32_0 = arith.constant 0 : i32
    %c0_i32_1 = arith.constant 0 : i32
    %c0_i32_2 = arith.constant 0 : i32
    return %c0_i32, %c0_i32_0, %c0_i32_1 : i32, i32, i32
  }
}

module attributes {stable_mosaic.version = 11 : i64} {
  func.func @_fc_head_kernel(%arg0: i32, %arg1: memref<2x5120xf32, #tpu.memory_space<vmem>>, %arg2: memref<5120x256xf32, #tpu.memory_space<vmem>>, %arg3: memref<1x256xf32, #tpu.memory_space<vmem>>, %arg4: memref<1x256xf32, #tpu.memory_space<vmem>>, %arg5: memref<1x1xf32, #tpu.memory_space<vmem>>, %arg6: memref<2x1xf32, #tpu.memory_space<vmem>>, %arg7: memref<2x256xf32, #tpu.memory_space<vmem>>) attributes {dimension_semantics = [#tpu.dimension_semantics<arbitrary>], iteration_bounds = array<i64: 2>, scalar_prefetch = 0 : i64, scratch_operands = 1 : i64, tpu.core_type = #tpu.core_type<tc>, window_params = [{transform_indices = @transform_0, window_bounds = array<i64: 2, 5120>}, {transform_indices = @transform_1, window_bounds = array<i64: 5120, 256>}, {pipeline_mode = #tpu.pipeline_mode<synchronous>, transform_indices = @transform_2, window_bounds = array<i64: 1, 256>}, {pipeline_mode = #tpu.pipeline_mode<synchronous>, transform_indices = @transform_3, window_bounds = array<i64: 1, 256>}, {pipeline_mode = #tpu.pipeline_mode<synchronous>, transform_indices = @transform_4, window_bounds = array<i64: 1, 1>}, {pipeline_mode = #tpu.pipeline_mode<synchronous>, transform_indices = @transform_5, window_bounds = array<i64: 2, 1>}]} {
    %c0_i32 = arith.constant 0 : i32
    %0 = arith.cmpi eq, %arg0, %c0_i32 : i32
    %1 = arith.extui %0 : i1 to i32
    %c0_i32_0 = arith.constant 0 : i32
    %2 = arith.cmpi ne, %1, %c0_i32_0 : i32
    scf.if %2 {
      %cst_9 = arith.constant 0.000000e+00 : f32
      %12 = vector.broadcast %cst_9 : f32 to vector<2x256xf32>
      %c0_10 = arith.constant 0 : index
      %c0_11 = arith.constant 0 : index
      %13 = vector.load %arg7[%c0_10, %c0_11] : memref<2x256xf32, #tpu.memory_space<vmem>>, vector<2x256xf32>
      tpu.vector_store %arg7[%c0_10, %c0_11], %12 {strides = array<i32>} : memref<2x256xf32, #tpu.memory_space<vmem>>, vector<2x256xf32>,
    } else {
    }
    %c0 = arith.constant 0 : index
    %c0_1 = arith.constant 0 : index
    %3 = vector.load %arg7[%c0, %c0_1] : memref<2x256xf32, #tpu.memory_space<vmem>>, vector<2x256xf32>
    %c0_2 = arith.constant 0 : index
    %c0_3 = arith.constant 0 : index
    %4 = vector.load %arg1[%c0_2, %c0_3] : memref<2x5120xf32, #tpu.memory_space<vmem>>, vector<2x5120xf32>
    %c0_4 = arith.constant 0 : index
    %c0_5 = arith.constant 0 : index
    %5 = vector.load %arg2[%c0_4, %c0_5] : memref<5120x256xf32, #tpu.memory_space<vmem>>, vector<5120x256xf32>
    %cst = arith.constant dense<0.000000e+00> : vector<2x256xf32>
    %6 = tpu.matmul %4, %5, %cst {dimension_numbers = #tpu.dot_dimension_numbers<[1], [0], [0], [1], [0, 0, 1, 1], [], []>} : vector<2x5120xf32>, vector<5120x256xf32>, vector<2x256xf32> -> vector<2x256xf32>
    %7 = arith.addf %3, %6 : vector<2x256xf32>
    %c0_6 = arith.constant 0 : index
    %c0_7 = arith.constant 0 : index
    %8 = vector.load %arg7[%c0_6, %c0_7] : memref<2x256xf32, #tpu.memory_space<vmem>>, vector<2x256xf32>
    tpu.vector_store %arg7[%c0_6, %c0_7], %7 {strides = array<i32>} : memref<2x256xf32, #tpu.memory_space<vmem>>, vector<2x256xf32>,
    %c1_i32 = arith.constant 1 : i32
    %9 = arith.cmpi eq, %arg0, %c1_i32 : i32
    %10 = arith.extui %9 : i1 to i32
    %c0_i32_8 = arith.constant 0 : i32
    %11 = arith.cmpi ne, %10, %c0_i32_8 : i32
    scf.if %11 {
      %c0_9 = arith.constant 0 : index
      %c0_10 = arith.constant 0 : index
      %12 = vector.load %arg7[%c0_9, %c0_10] : memref<2x256xf32, #tpu.memory_space<vmem>>, vector<2x256xf32>
      %c0_11 = arith.constant 0 : index
      %c0_12 = arith.constant 0 : index
      %13 = vector.load %arg3[%c0_11, %c0_12] : memref<1x256xf32, #tpu.memory_space<vmem>>, vector<1x256xf32>
      %14 = vector.broadcast %13 : vector<1x256xf32> to vector<2x256xf32>
      %15 = arith.addf %12, %14 : vector<2x256xf32>
      %16 = math.tanh %15 : vector<2x256xf32>
      %c0_13 = arith.constant 0 : index
      %c0_14 = arith.constant 0 : index
      %17 = vector.load %arg4[%c0_13, %c0_14] : memref<1x256xf32, #tpu.memory_space<vmem>>, vector<1x256xf32>
      %18 = vector.broadcast %17 : vector<1x256xf32> to vector<2x256xf32>
      %19 = arith.mulf %16, %18 : vector<2x256xf32>
      %cst_15 = arith.constant dense<0.000000e+00> : vector<2xf32>
      %20 = vector.multi_reduction <add>, %19, %cst_15 [1] : vector<2x256xf32> to vector<2xf32>
      %21 = vector.shape_cast %20 : vector<2xf32> to vector<2x1xf32>
      %c0_16 = arith.constant 0 : index
      %c0_17 = arith.constant 0 : index
      %22 = vector.load %arg5[%c0_16, %c0_17] : memref<1x1xf32, #tpu.memory_space<vmem>>, vector<1x1xf32>
      %23 = vector.broadcast %22 : vector<1x1xf32> to vector<2x1xf32>
      %24 = arith.addf %21, %23 : vector<2x1xf32>
      %c0_18 = arith.constant 0 : index
      %c0_19 = arith.constant 0 : index
      %25 = vector.load %arg6[%c0_18, %c0_19] : memref<2x1xf32, #tpu.memory_space<vmem>>, vector<2x1xf32>
      tpu.vector_store %arg6[%c0_18, %c0_19], %24 {strides = array<i32>} : memref<2x1xf32, #tpu.memory_space<vmem>>, vector<2x1xf32>,
    } else {
    }
    return
  }
  func.func @transform_0(%arg0: i32) -> (i32, i32) {
    %c0_i32 = arith.constant 0 : i32
    %c0_i32_0 = arith.constant 0 : i32
    return %c0_i32, %arg0 : i32, i32
  }
  func.func @transform_1(%arg0: i32) -> (i32, i32) {
    %c0_i32 = arith.constant 0 : i32
    %c0_i32_0 = arith.constant 0 : i32
    return %arg0, %c0_i32 : i32, i32
  }
  func.func @transform_2(%arg0: i32) -> (i32, i32) {
    %c0_i32 = arith.constant 0 : i32
    %c0_i32_0 = arith.constant 0 : i32
    %c0_i32_1 = arith.constant 0 : i32
    return %c0_i32, %c0_i32_0 : i32, i32
  }
  func.func @transform_3(%arg0: i32) -> (i32, i32) {
    %c0_i32 = arith.constant 0 : i32
    %c0_i32_0 = arith.constant 0 : i32
    %c0_i32_1 = arith.constant 0 : i32
    return %c0_i32, %c0_i32_0 : i32, i32
  }
  func.func @transform_4(%arg0: i32) -> (i32, i32) {
    %c0_i32 = arith.constant 0 : i32
    %c0_i32_0 = arith.constant 0 : i32
    %c0_i32_1 = arith.constant 0 : i32
    return %c0_i32, %c0_i32_0 : i32, i32
  }
  func.func @transform_5(%arg0: i32) -> (i32, i32) {
    %c0_i32 = arith.constant 0 : i32
    %c0_i32_0 = arith.constant 0 : i32
    %c0_i32_1 = arith.constant 0 : i32
    return %c0_i32, %c0_i32_0 : i32, i32
  }
}

</mosaic_0001>

<llo_original>
// kernel: critic_forward.2
$region0: #{critic_forward.2}
  #allocation0 [shape = 'u32[]', space=smem, size = 0x4, offset = 0x4, fixed_abs, tag = 'smem constant byte address 0x4 - core index']
  #allocation1 [shape = 'u32[144,128]{1,0:T(1,128)}', space=vmem, size = 0x12000, scoped, tag = 'internal scratch']
  #allocation2 [shape = 'f32[16,896]{1,0:T(8,128)}', space=vmem, size = 0xe000, scoped, tag = 'scratch operand']
  #allocation3 [shape = 'f32[144,768]{1,0:T(8,128)}', space=vmem, size = 0x6c000, scoped, tag = 'scratch operand']
  %s0 = inlined_call_operand.vmem [shape: f32[36,896], index: 0, kind: input, shape index: {}]
  %s1 = inlined_call_operand.hbm [shape: f32[16,36], index: 1, kind: input, shape index: {}]
  %s2 = inlined_call_operand.vmem [shape: f32[16,1], index: 2, kind: input, shape index: {}]
  %s3 = inlined_call_operand.hbm [shape: f32[32,144], index: 3, kind: input, shape index: {}]
  %s4 = inlined_call_operand.vmem [shape: f32[32,1], index: 4, kind: input, shape index: {}]
  %s5 = inlined_call_operand.vmem [shape: f32[2,32,320], index: 5, kind: output, shape index: {}]
  %s6 = sld [smem:[#allocation0]]
  $region38: #{critic_forward.2} parent=0
    _
  %s8 = ssub.s32 1, %s6
  %s9 = scalar_select 0, %s8, %s6
  $region1: #{critic_forward.2} parent=0
    #allocation4 [shape = 'u8[8192]{0}', space=vmem, size = 0x2000, scoped, tag = 'input window, operand 1, single buffered']
    #allocation5 [shape = 's32[1]{0}', space=sflag, size = 0x4, scoped, tag = 'scoped memory for critic_forward.2']
    #allocation6 [shape = 'u8[32768]{0}', space=vmem, size = 0x8000, scoped, tag = 'input window, operand 3, single buffered']
    #allocation7 [shape = 's32[1]{0}', space=sflag, size = 0x4, scoped, tag = 'scoped memory for critic_forward.2']
    %10 = vsyncpa [#allocation5], 0
    %11 = vsyncpa [#allocation7], 0
    // Predicated region
    $region2: #{critic_forward.2} parent=1 // pred_check
      _
    $region3: #{critic_forward.2} parent=1 // pred_check_branch
      %13 = sbr.rel (0) target = $region5
    $region4: #{critic_forward.2} parent=1 // pred_region
      _
    $region5: #{critic_forward.2} parent=1 // pred_fallthru
      _
    // Predicated region
    $region6: #{critic_forward.2} parent=1 // pred_check
      _
    $region7: #{critic_forward.2} parent=1 // pred_check_branch
      %15 = sbr.rel (0) target = $region9
    $region8: #{critic_forward.2} parent=1 // pred_region
      %s17 = ssub.s32 256, 256
      %18 = vsyncadd [#allocation5], %s17
      %s19 = sshll.u32 [#allocation4], 4
      %s20 = int_to_ptr.vmem [resolvable:$true] %s19
      %25 = dma.hbm_to_vmem [thread:$0]  %s1, 256, %s20, [#allocation5], 128, 128, 8
    $region9: #{critic_forward.2} parent=1 // pred_fallthru
      _
    // Predicated region
    $region10: #{critic_forward.2} parent=1 // pred_check
      _
    $region11: #{critic_forward.2} parent=1 // pred_check_branch
      %27 = sbr.rel (0) target = $region13
    $region12: #{critic_forward.2} parent=1 // pred_region
      _
    $region13: #{critic_forward.2} parent=1 // pred_fallthru
      _
    // Predicated region
    $region14: #{critic_forward.2} parent=1 // pred_check
      _
    $region15: #{critic_forward.2} parent=1 // pred_check_branch
      %29 = sbr.rel (0) target = $region17
    $region16: #{critic_forward.2} parent=1 // pred_region
      %s31 = ssub.s32 1024, 1024
      %32 = vsyncadd [#allocation7], %s31
      %s33 = sshll.u32 [#allocation6], 4
      %s34 = int_to_ptr.vmem [resolvable:$true] %s33
      %39 = dma.hbm_to_vmem [thread:$0]  %s3, 1024, %s34, [#allocation7], 256, 256, 16
    $region17: #{critic_forward.2} parent=1 // pred_fallthru
      _
    // Predicated region
    $region18: #{critic_forward.2} parent=1 // pred_check
      _
    $region19: #{critic_forward.2} parent=1 // pred_check_branch
      %41 = sbr.rel (0) target = $region21
    $region20: #{critic_forward.2} parent=1 // pred_region
      _
    $region21: #{critic_forward.2} parent=1 // pred_fallthru
      _
    // Predicated region
    $region22: #{critic_forward.2} parent=1 // pred_check
      _
    $region23: #{critic_forward.2} parent=1 // pred_check_branch
      %43 = sbr.rel (0) target = $region25
    $region24: #{critic_forward.2} parent=1 // pred_region
      %44 = dma.done [#allocation5], 256
    $region25: #{critic_forward.2} parent=1 // pred_fallthru
      _
    // Predicated region
    $region26: #{critic_forward.2} parent=1 // pred_check
      _
    $region27: #{critic_forward.2} parent=1 // pred_check_branch
      %46 = sbr.rel (0) target = $region29
    $region28: #{critic_forward.2} parent=1 // pred_region
      %47 = dma.done [#allocation7], 1024
    $region29: #{critic_forward.2} parent=1 // pred_fallthru
      _
    %v48 = vld [vmem:[#allocation4] sm:$0xff]
    %v49 = vld [vmem:[#allocation4 + $0x8] sm:$0xff]
    %v50 = vld [vmem:[%s0] sm:$0xff]
    %v51 = vld [vmem:[%s0 + $0x8] sm:$0xff]
    %v52 = vld [vmem:[%s0 + $0x10] sm:$0xff]
    %v53 = vld [vmem:[%s0 + $0x18] sm:$0xff]
    %v54 = vld [vmem:[%s0 + $0x20] sm:$0xff]
    %v55 = vld [vmem:[%s0 + $0x28] sm:$0xff]
    %v56 = vld [vmem:[%s0 + $0x30] sm:$0xff]
    %v57 = vld [vmem:[%s0 + $0x38] sm:$0xff]
    %v58 = vld [vmem:[%s0 + $0x40] sm:$0xff]
    %v59 = vld [vmem:[%s0 + $0x48] sm:$0xff]
    %v60 = vld [vmem:[%s0 + $0x50] sm:$0xff]
    %v61 = vld [vmem:[%s0 + $0x58] sm:$0xff]
    %v62 = vld [vmem:[%s0 + $0x60] sm:$0xff]
    %v63 = vld [vmem:[%s0 + $0x68] sm:$0xff]
    %v64 = vld [vmem:[%s0 + $0x70] sm:$0xff]
    %v65 = vld [vmem:[%s0 + $0x78] sm:$0xff]
    %v66 = vld [vmem:[%s0 + $0x80] sm:$0xff]
    %v67 = vld [vmem:[%s0 + $0x88] sm:$0xff]
    %v68 = vld [vmem:[%s0 + $0x90] sm:$0xff]
    %v69 = vld [vmem:[%s0 + $0x98] sm:$0xff]
    %v70 = vld [vmem:[%s0 + $0xa0] sm:$0xff]
    %v71 = vld [vmem:[%s0 + $0xa8] sm:$0xff]
    %v72 = vld [vmem:[%s0 + $0xb0] sm:$0xff]
    %v73 = vld [vmem:[%s0 + $0xb8] sm:$0xff]
    %v74 = vld [vmem:[%s0 + $0xc0] sm:$0xff]
    %v75 = vld [vmem:[%s0 + $0xc8] sm:$0xff]
    %v76 = vld [vmem:[%s0 + $0xd0] sm:$0xff]
    %v77 = vld [vmem:[%s0 + $0xd8] sm:$0xff]
    %v78 = vld [vmem:[%s0 + $0xe0] sm:$0xf]
    %v79 = vld [vmem:[%s0 + $0xe8] sm:$0xf]
    %v80 = vld [vmem:[%s0 + $0xf0] sm:$0xf]
    %v81 = vld [vmem:[%s0 + $0xf8] sm:$0xf]
    %v82 = vld [vmem:[%s0 + $0x100] sm:$0xf]
    %v83 = vld [vmem:[%s0 + $0x108] sm:$0xf]
    %v84 = vld [vmem:[%s0 + $0x110] sm:$0xf]
    %v85 = vld [vmem:[%s2] sm:$0xff]
    %v86 = vld [vmem:[%s2 + $0x8] sm:$0xff]
    %88 = vset.pattern.permute.xlu0 0
    %89 = vperm.xlu0 %88, %v85
    %v90 = vpop.permute.xlu0 %89
    %93 = vset.pattern.permute.xlu0 0
    %94 = vperm.xlu0 %93, %v86
    %v95 = vpop.permute.xlu0 %94
    %vm97 = vcmask 293888
    %v99 = vsel %vm97, %v48, 0
    %v102 = vsel %vm97, %v49, 0
    %vm104 = vcmask 1043456
    %v106 = vsel %vm104, %v78, 0
    %v109 = vsel %vm104, %v79, 0
    %v112 = vsel %vm104, %v80, 0
    %v115 = vsel %vm104, %v81, 0
    %v118 = vsel %vm104, %v82, 0
    %v121 = vsel %vm104, %v83, 0
    %v124 = vsel %vm104, %v84, 0
    %126 = vmatprep.subr.mxu0 0.0
    %127 = vmatpush1.msra.mxu0 0.0
    %128 = vmatprep.subr.mxu0 0.0
    %129 = vmatpush1.msra.mxu0 0.0
    %130 = vmatprep.subr.mxu0 0.0
    %131 = vmatpush1.msra.mxu0 0.0
    %132 = vmatprep.subr.mxu0 0.0
    %133 = vmatpush1.msra.mxu0 0.0
    %134 = vmatprep.subr.mxu0 0.0
    %135 = vmatpush1.msra.mxu0 0.0
    %136 = vmatprep.subr.mxu0 0.0
    %137 = vmatpush1.msra.mxu0 0.0
    %138 = vmatprep.subr.mxu0 0.0
    %139 = vmatpush1.msra.mxu0 0.0
    %140 = vmatprep.subr.mxu0 0.0
    %141 = vmatpush1.msra.mxu0 0.0
    %142 = vmatprep.subr.mxu0 0.0
    %143 = vmatpush1.msra.mxu0 0.0
    %144 = vmatprep.subr.mxu0 0.0
    %145 = vmatpush1.msra.mxu0 0.0
    %146 = vmatprep.subr.mxu0 0.0
    %147 = vmatpush1.msra.mxu0 0.0
    %148 = vmatprep.subr.mxu0 %v109
    %149 = vmatpush1.msra.mxu0 %v106
    %150 = vmatprep.subr.mxu0 %v72
    %151 = vmatpush1.msra.mxu0 %v71
    %152 = vmatprep.subr.mxu0 %v65
    %153 = vmatpush1.msra.mxu0 %v64
    %154 = vmatprep.subr.mxu0 %v58
    %155 = vmatpush1.msra.mxu0 %v57
    %156 = vmatprep.subr.mxu0 %v51
    %157 = vmatpush1.msra.mxu0 %v50
    %158 = vmatprep.subr.mxu0 0.0
    %159 = vmatpush2.msra.mxu0 0.0
    %160 = vmatprep.subr.mxu0 0.0
    %161 = vmatpush2.msra.mxu0 0.0
    %162 = vmatprep.subr.mxu0 0.0
    %163 = vmatpush2.msra.mxu0 0.0
    %164 = vmatprep.subr.mxu0 0.0
    %165 = vmatpush2.msra.mxu0 0.0
    %166 = vmatprep.subr.mxu0 0.0
    %167 = vmatpush2.msra.mxu0 0.0
    %168 = vmatprep.subr.mxu0 0.0
    %169 = vmatpush2.msra.mxu0 0.0
    %170 = vmatprep.subr.mxu0 0.0
    %171 = vmatpush2.msra.mxu0 0.0
    %172 = vmatprep.subr.mxu0 0.0
    %173 = vmatpush2.msra.mxu0 0.0
    %174 = vmatprep.subr.mxu0 0.0
    %175 = vmatpush2.msra.mxu0 0.0
    %176 = vmatprep.subr.mxu0 0.0
    %177 = vmatpush2.msra.mxu0 0.0
    %178 = vmatprep.subr.mxu0 0.0
    %179 = vmatpush2.msra.mxu0 0.0
    %180 = vmatprep.subr.mxu0 0.0
    %181 = vmatpush2.msra.mxu0 0.0
    %182 = vmatprep.subr.mxu0 0.0
    %183 = vmatpush2.msra.mxu0 0.0
    %184 = vmatprep.subr.mxu0 0.0
    %185 = vmatpush2.msra.mxu0 0.0
    %186 = vmatprep.subr.mxu0 0.0
    %187 = vmatpush2.msra.mxu0 0.0
    %188 = vmatprep.subr.mxu0 0.0
    %189 = vmatpush2.msra.mxu0 0.0
    %190 = vmatprep.mubr.f32.mxu0 0.0
    %191 = vmatmul.mubr.f32.gmra.mxu0 %v99
    %v192 = vpop.f32.mrf.mxu0
    %v193 = vadd.f32 %v90, %v192
    %v194 = vpop.f32.mrf.mxu0
    %v195 = vadd.f32 %v90, %v194
    %196 = vmatprep.mubr.f32.mxu0 0.0
    %197 = vmatmul.mubr.f32.gmra.mxu0 %v102
    %v198 = vpop.f32.mrf.mxu0
    %v199 = vadd.f32 %v95, %v198
    %v200 = vpop.f32.mrf.mxu0
    %v201 = vadd.f32 %v95, %v200
    %202 = vdwg.mxu0
    %203 = vmatprep.subr.mxu0 0.0
    %204 = vmatpush1.msra.mxu0 0.0
    %205 = vmatprep.subr.mxu0 0.0
    %206 = vmatpush1.msra.mxu0 0.0
    %207 = vmatprep.subr.mxu0 0.0
    %208 = vmatpush1.msra.mxu0 0.0
    %209 = vmatprep.subr.mxu0 0.0
    %210 = vmatpush1.msra.mxu0 0.0
    %211 = vmatprep.subr.mxu0 0.0
    %212 = vmatpush1.msra.mxu0 0.0
    %213 = vmatprep.subr.mxu0 0.0
    %214 = vmatpush1.msra.mxu0 0.0
    %215 = vmatprep.subr.mxu0 0.0
    %216 = vmatpush1.msra.mxu0 0.0
    %217 = vmatprep.subr.mxu0 0.0
    %218 = vmatpush1.msra.mxu0 0.0
    %219 = vmatprep.subr.mxu0 0.0
    %220 = vmatpush1.msra.mxu0 0.0
    %221 = vmatprep.subr.mxu0 0.0
    %222 = vmatpush1.msra.mxu0 0.0
    %223 = vmatprep.subr.mxu0 0.0
    %224 = vmatpush1.msra.mxu0 0.0
    %225 = vmatprep.subr.mxu0 %v115
    %226 = vmatpush1.msra.mxu0 %v112
    %227 = vmatprep.subr.mxu0 %v74
    %228 = vmatpush1.msra.mxu0 %v73
    %229 = vmatprep.subr.mxu0 %v67
    %230 = vmatpush1.msra.mxu0 %v66
    %231 = vmatprep.subr.mxu0 %v60
    %232 = vmatpush1.msra.mxu0 %v59
    %233 = vmatprep.subr.mxu0 %v53
    %234 = vmatpush1.msra.mxu0 %v52
    %235 = vmatprep.subr.mxu0 0.0
    %236 = vmatpush2.msra.mxu0 0.0
    %237 = vmatprep.subr.mxu0 0.0
    %238 = vmatpush2.msra.mxu0 0.0
    %239 = vmatprep.subr.mxu0 0.0
    %240 = vmatpush2.msra.mxu0 0.0
    %241 = vmatprep.subr.mxu0 0.0
    %242 = vmatpush2.msra.mxu0 0.0
    %243 = vmatprep.subr.mxu0 0.0
    %244 = vmatpush2.msra.mxu0 0.0
    %245 = vmatprep.subr.mxu0 0.0
    %246 = vmatpush2.msra.mxu0 0.0
    %247 = vmatprep.subr.mxu0 0.0
    %248 = vmatpush2.msra.mxu0 0.0
    %249 = vmatprep.subr.mxu0 0.0
    %250 = vmatpush2.msra.mxu0 0.0
    %251 = vmatprep.subr.mxu0 0.0
    %252 = vmatpush2.msra.mxu0 0.0
    %253 = vmatprep.subr.mxu0 0.0
    %254 = vmatpush2.msra.mxu0 0.0
    %255 = vmatprep.subr.mxu0 0.0
    %256 = vmatpush2.msra.mxu0 0.0
    %257 = vmatprep.subr.mxu0 0.0
    %258 = vmatpush2.msra.mxu0 0.0
    %259 = vmatprep.subr.mxu0 0.0
    %260 = vmatpush2.msra.mxu0 0.0
    %261 = vmatprep.subr.mxu0 0.0
    %262 = vmatpush2.msra.mxu0 0.0
    %263 = vmatprep.subr.mxu0 0.0
    %264 = vmatpush2.msra.mxu0 0.0
    %265 = vmatprep.subr.mxu0 0.0
    %266 = vmatpush2.msra.mxu0 0.0
    %267 = vmatprep.mubr.f32.mxu0 0.0
    %268 = vmatmul.mubr.f32.gmra.mxu0 %v99
    %v269 = vpop.f32.mrf.mxu0
    %v270 = vadd.f32 %v90, %v269
    %v271 = vpop.f32.mrf.mxu0
    %v272 = vadd.f32 %v90, %v271
    %273 = vmatprep.mubr.f32.mxu0 0.0
    %274 = vmatmul.mubr.f32.gmra.mxu0 %v102
    %v275 = vpop.f32.mrf.mxu0
    %v276 = vadd.f32 %v95, %v275
    %v277 = vpop.f32.mrf.mxu0
    %v278 = vadd.f32 %v95, %v277
    %279 = vdwg.mxu0
    %280 = vmatprep.subr.mxu0 0.0
    %281 = vmatpush1.msra.mxu0 0.0
    %282 = vmatprep.subr.mxu0 0.0
    %283 = vmatpush1.msra.mxu0 0.0
    %284 = vmatprep.subr.mxu0 0.0
    %285 = vmatpush1.msra.mxu0 0.0
    %286 = vmatprep.subr.mxu0 0.0
    %287 = vmatpush1.msra.mxu0 0.0
    %288 = vmatprep.subr.mxu0 0.0
    %289 = vmatpush1.msra.mxu0 0.0
    %290 = vmatprep.subr.mxu0 0.0
    %291 = vmatpush1.msra.mxu0 0.0
    %292 = vmatprep.subr.mxu0 0.0
    %293 = vmatpush1.msra.mxu0 0.0
    %294 = vmatprep.subr.mxu0 0.0
    %295 = vmatpush1.msra.mxu0 0.0
    %296 = vmatprep.subr.mxu0 0.0
    %297 = vmatpush1.msra.mxu0 0.0
    %298 = vmatprep.subr.mxu0 0.0
    %299 = vmatpush1.msra.mxu0 0.0
    %300 = vmatprep.subr.mxu0 0.0
    %301 = vmatpush1.msra.mxu0 0.0
    %302 = vmatprep.subr.mxu0 %v121
    %303 = vmatpush1.msra.mxu0 %v118
    %304 = vmatprep.subr.mxu0 %v76
    %305 = vmatpush1.msra.mxu0 %v75
    %306 = vmatprep.subr.mxu0 %v69
    %307 = vmatpush1.msra.mxu0 %v68
    %308 = vmatprep.subr.mxu0 %v62
    %309 = vmatpush1.msra.mxu0 %v61
    %310 = vmatprep.subr.mxu0 %v55
    %311 = vmatpush1.msra.mxu0 %v54
    %312 = vmatprep.subr.mxu0 0.0
    %313 = vmatpush2.msra.mxu0 0.0
    %314 = vmatprep.subr.mxu0 0.0
    %315 = vmatpush2.msra.mxu0 0.0
    %316 = vmatprep.subr.mxu0 0.0
    %317 = vmatpush2.msra.mxu0 0.0
    %318 = vmatprep.subr.mxu0 0.0
    %319 = vmatpush2.msra.mxu0 0.0
    %320 = vmatprep.subr.mxu0 0.0
    %321 = vmatpush2.msra.mxu0 0.0
    %322 = vmatprep.subr.mxu0 0.0
    %323 = vmatpush2.msra.mxu0 0.0
    %324 = vmatprep.subr.mxu0 0.0
    %325 = vmatpush2.msra.mxu0 0.0
    %326 = vmatprep.subr.mxu0 0.0
    %327 = vmatpush2.msra.mxu0 0.0
    %328 = vmatprep.subr.mxu0 0.0
    %329 = vmatpush2.msra.mxu0 0.0
    %330 = vmatprep.subr.mxu0 0.0
    %331 = vmatpush2.msra.mxu0 0.0
    %332 = vmatprep.subr.mxu0 0.0
    %333 = vmatpush2.msra.mxu0 0.0
    %334 = vmatprep.subr.mxu0 0.0
    %335 = vmatpush2.msra.mxu0 0.0
    %336 = vmatprep.subr.mxu0 0.0
    %337 = vmatpush2.msra.mxu0 0.0
    %338 = vmatprep.subr.mxu0 0.0
    %339 = vmatpush2.msra.mxu0 0.0
    %340 = vmatprep.subr.mxu0 0.0
    %341 = vmatpush2.msra.mxu0 0.0
    %342 = vmatprep.subr.mxu0 0.0
    %343 = vmatpush2.msra.mxu0 0.0
    %344 = vmatprep.mubr.f32.mxu0 0.0
    %345 = vmatmul.mubr.f32.gmra.mxu0 %v99
    %v346 = vpop.f32.mrf.mxu0
    %v347 = vadd.f32 %v90, %v346
    %v348 = vpop.f32.mrf.mxu0
    %v349 = vadd.f32 %v90, %v348
    %350 = vmatprep.mubr.f32.mxu0 0.0
    %351 = vmatmul.mubr.f32.gmra.mxu0 %v102
    %v352 = vpop.f32.mrf.mxu0
    %v353 = vadd.f32 %v95, %v352
    %v354 = vpop.f32.mrf.mxu0
    %v355 = vadd.f32 %v95, %v354
    %356 = vdwg.mxu0
    %357 = vmatprep.subr.mxu0 0.0
    %358 = vmatpush1.msra.mxu0 0.0
    %359 = vmatprep.subr.mxu0 0.0
    %360 = vmatpush1.msra.mxu0 0.0
    %361 = vmatprep.subr.mxu0 0.0
    %362 = vmatpush1.msra.mxu0 0.0
    %363 = vmatprep.subr.mxu0 0.0
    %364 = vmatpush1.msra.mxu0 0.0
    %365 = vmatprep.subr.mxu0 0.0
    %366 = vmatpush1.msra.mxu0 0.0
    %367 = vmatprep.subr.mxu0 0.0
    %368 = vmatpush1.msra.mxu0 0.0
    %369 = vmatprep.subr.mxu0 0.0
    %370 = vmatpush1.msra.mxu0 0.0
    %371 = vmatprep.subr.mxu0 0.0
    %372 = vmatpush1.msra.mxu0 0.0
    %373 = vmatprep.subr.mxu0 0.0
    %374 = vmatpush1.msra.mxu0 0.0
    %375 = vmatprep.subr.mxu0 0.0
    %376 = vmatpush1.msra.mxu0 0.0
    %377 = vmatprep.subr.mxu0 0.0
    %378 = vmatpush1.msra.mxu0 0.0
    %379 = vmatprep.subr.mxu0 0.0
    %380 = vmatpush1.msra.mxu0 %v124
    %381 = vmatprep.subr.mxu0 0.0
    %382 = vmatpush1.msra.mxu0 %v77
    %383 = vmatprep.subr.mxu0 0.0
    %384 = vmatpush1.msra.mxu0 %v70
    %385 = vmatprep.subr.mxu0 0.0
    %386 = vmatpush1.msra.mxu0 %v63
    %387 = vmatprep.subr.mxu0 0.0
    %388 = vmatpush1.msra.mxu0 %v56
    %389 = vmatprep.subr.mxu0 0.0
    %390 = vmatpush2.msra.mxu0 0.0
    %391 = vmatprep.subr.mxu0 0.0
    %392 = vmatpush2.msra.mxu0 0.0
    %393 = vmatprep.subr.mxu0 0.0
    %394 = vmatpush2.msra.mxu0 0.0
    %395 = vmatprep.subr.mxu0 0.0
    %396 = vmatpush2.msra.mxu0 0.0
    %397 = vmatprep.subr.mxu0 0.0
    %398 = vmatpush2.msra.mxu0 0.0
    %399 = vmatprep.subr.mxu0 0.0
    %400 = vmatpush2.msra.mxu0 0.0
    %401 = vmatprep.subr.mxu0 0.0
    %402 = vmatpush2.msra.mxu0 0.0
    %403 = vmatprep.subr.mxu0 0.0
    %404 = vmatpush2.msra.mxu0 0.0
    %405 = vmatprep.subr.mxu0 0.0
    %406 = vmatpush2.msra.mxu0 0.0
    %407 = vmatprep.subr.mxu0 0.0
    %408 = vmatpush2.msra.mxu0 0.0
    %409 = vmatprep.subr.mxu0 0.0
    %410 = vmatpush2.msra.mxu0 0.0
    %411 = vmatprep.subr.mxu0 0.0
    %412 = vmatpush2.msra.mxu0 0.0
    %413 = vmatprep.subr.mxu0 0.0
    %414 = vmatpush2.msra.mxu0 0.0
    %415 = vmatprep.subr.mxu0 0.0
    %416 = vmatpush2.msra.mxu0 0.0
    %417 = vmatprep.subr.mxu0 0.0
    %418 = vmatpush2.msra.mxu0 0.0
    %419 = vmatprep.subr.mxu0 0.0
    %420 = vmatpush2.msra.mxu0 0.0
    %421 = vmatprep.mubr.f32.mxu0 0.0
    %422 = vmatmul.mubr.f32.gmra.mxu0 %v99
    %v423 = vpop.f32.mrf.mxu0
    %v424 = vadd.f32 %v90, %v423
    %v425 = vpop.f32.mrf.mxu0
    %426 = vmatprep.mubr.f32.mxu0 0.0
    %427 = vmatmul.mubr.f32.gmra.mxu0 %v102
    %v428 = vpop.f32.mrf.mxu0
    %v429 = vadd.f32 %v95, %v428
    %v430 = vpop.f32.mrf.mxu0
    %431 = vdwg.mxu0
    %v432 = vtanh.pop %v193
    %v433 = vtanh.pop %v195
    %v434 = vtanh.pop %v270
    %v435 = vtanh.pop %v272
    %v436 = vtanh.pop %v347
    %v437 = vtanh.pop %v349
    %v438 = vtanh.pop %v424
    %v439 = vtanh.pop %v199
    %v440 = vtanh.pop %v201
    %v441 = vtanh.pop %v276
    %v442 = vtanh.pop %v278
    %v443 = vtanh.pop %v353
    %v444 = vtanh.pop %v355
    %v445 = vtanh.pop %v429
    %446 = vst [vmem:[#allocation2] sm:$0xff] %v432
    %447 = vst [vmem:[#allocation2 + $0x8] sm:$0xff] %v433
    %448 = vst [vmem:[#allocation2 + $0x10] sm:$0xff] %v434
    %449 = vst [vmem:[#allocation2 + $0x18] sm:$0xff] %v435
    %450 = vst [vmem:[#allocation2 + $0x20] sm:$0xff] %v436
    %451 = vst [vmem:[#allocation2 + $0x28] sm:$0xff] %v437
    %452 = vst [vmem:[#allocation2 + $0x30] sm:$0xff] %v438
    %453 = vst [vmem:[#allocation2 + $0x38] sm:$0xff] %v439
    %454 = vst [vmem:[#allocation2 + $0x40] sm:$0xff] %v440
    %455 = vst [vmem:[#allocation2 + $0x48] sm:$0xff] %v441
    %456 = vst [vmem:[#allocation2 + $0x50] sm:$0xff] %v442
    %457 = vst [vmem:[#allocation2 + $0x58] sm:$0xff] %v443
    %458 = vst [vmem:[#allocation2 + $0x60] sm:$0xff] %v444
    %459 = vst [vmem:[#allocation2 + $0x68] sm:$0xff] %v445
    %v460 = vld [vmem:[#allocation2] sm:$0xff]
    %v461 = vld [vmem:[#allocation2 + $0x8] sm:$0xff]
    %v462 = vld [vmem:[#allocation2 + $0x10] sm:$0xff]
    %v463 = vld [vmem:[#allocation2 + $0x18] sm:$0xff]
    %v464 = vld [vmem:[#allocation2 + $0x20] sm:$0xff]
    %v465 = vld [vmem:[#allocation2 + $0x28] sm:$0xff]
    %v466 = vld [vmem:[#allocation2 + $0x38] sm:$0xff]
    %v467 = vld [vmem:[#allocation2 + $0x40] sm:$0xff]
    %v468 = vld [vmem:[#allocation2 + $0x48] sm:$0xff]
    %v469 = vld [vmem:[#allocation2 + $0x50] sm:$0xff]
    %v470 = vld [vmem:[#allocation2 + $0x58] sm:$0xff]
    %v471 = vld [vmem:[#allocation2 + $0x60] sm:$0xff]
    %472 = vst [vmem:[#allocation3] sm:$0xff] %v460
    %473 = vst [vmem:[#allocation3 + $0x8] sm:$0xff] %v461
    %474 = vst [vmem:[#allocation3 + $0x10] sm:$0xff] %v462
    %475 = vst [vmem:[#allocation3 + $0x18] sm:$0xff] %v463
    %476 = vst [vmem:[#allocation3 + $0x20] sm:$0xff] %v464
    %477 = vst [vmem:[#allocation3 + $0x28] sm:$0xff] %v465
    %478 = vst [vmem:[#allocation3 + $0x30] sm:$0xff] %v466
    %479 = vst [vmem:[#allocation3 + $0x38] sm:$0xff] %v467
    %480 = vst [vmem:[#allocation3 + $0x40] sm:$0xff] %v468
    %481 = vst [vmem:[#allocation3 + $0x48] sm:$0xff] %v469
    %482 = vst [vmem:[#allocation3 + $0x50] sm:$0xff] %v470
    %483 = vst [vmem:[#allocation3 + $0x58] sm:$0xff] %v471
    %v484 = vld [vmem:[#allocation2] sm:$0xff]
    %v485 = vld [vmem:[#allocation2 + $0x8] sm:$0xff]
    %v486 = vld [vmem:[#allocation2 + $0x10] sm:$0xff]
    %v487 = vld [vmem:[#allocation2 + $0x18] sm:$0xff]
    %v488 = vld [vmem:[#allocation2 + $0x20] sm:$0xff]
    %v489 = vld [vmem:[#allocation2 + $0x28] sm:$0xff]
    %v490 = vld [vmem:[#allocation2 + $0x30] sm:$0xff]
    %v491 = vld [vmem:[#allocation2 + $0x38] sm:$0xff]
    %v492 = vld [vmem:[#allocation2 + $0x40] sm:$0xff]
    %v493 = vld [vmem:[#allocation2 + $0x48] sm:$0xff]
    %v494 = vld [vmem:[#allocation2 + $0x50] sm:$0xff]
    %v495 = vld [vmem:[#allocation2 + $0x58] sm:$0xff]
    %v496 = vld [vmem:[#allocation2 + $0x60] sm:$0xff]
    %v497 = vld [vmem:[#allocation2 + $0x68] sm:$0xff]
    %512 = vrot.lane.b32.xlu0 %v484, 127
    %v513 = vpop.permute.xlu0 %512
    %514 = vrot.lane.b32.xlu0 %v485, 127
    %v515 = vpop.permute.xlu0 %514
    %516 = vrot.lane.b32.xlu0 %v486, 127
    %v517 = vpop.permute.xlu0 %516
    %518 = vrot.lane.b32.xlu0 %v487, 127
    %v519 = vpop.permute.xlu0 %518
    %520 = vrot.lane.b32.xlu0 %v488, 127
    %v521 = vpop.permute.xlu0 %520
    %522 = vrot.lane.b32.xlu0 %v489, 127
    %v523 = vpop.permute.xlu0 %522
    %524 = vrot.lane.b32.xlu0 %v490, 127
    %v525 = vpop.permute.xlu0 %524
    %526 = vrot.lane.b32.xlu0 %v491, 127
    %v527 = vpop.permute.xlu0 %526
    %528 = vrot.lane.b32.xlu0 %v492, 127
    %v529 = vpop.permute.xlu0 %528
    %530 = vrot.lane.b32.xlu0 %v493, 127
    %v531 = vpop.permute.xlu0 %530
    %532 = vrot.lane.b32.xlu0 %v494, 127
    %v533 = vpop.permute.xlu0 %532
    %534 = vrot.lane.b32.xlu0 %v495, 127
    %v535 = vpop.permute.xlu0 %534
    %536 = vrot.lane.b32.xlu0 %v496, 127
    %v537 = vpop.permute.xlu0 %536
    %538 = vrot.lane.b32.xlu0 %v497, 127
    %v539 = vpop.permute.xlu0 %538
    %vm540 = vcmask 1039360
    %v541 = vsel %vm540, %v513, %v515
    %v542 = vsel %vm540, %v515, %v517
    %v543 = vsel %vm540, %v517, %v519
    %v544 = vsel %vm540, %v519, %v521
    %v545 = vsel %vm540, %v521, %v523
    %v546 = vsel %vm540, %v523, %v525
    %v547 = vsel %vm540, %v527, %v529
    %v548 = vsel %vm540, %v529, %v531
    %v549 = vsel %vm540, %v531, %v533
    %v550 = vsel %vm540, %v533, %v535
    %v551 = vsel %vm540, %v535, %v537
    %v552 = vsel %vm540, %v537, %v539
    %565 = vst [vmem:[#allocation3 + $0x60] sm:$0xff] %v541
    %566 = vst [vmem:[#allocation3 + $0x68] sm:$0xff] %v542
    %567 = vst [vmem:[#allocation3 + $0x70] sm:$0xff] %v543
    %568 = vst [vmem:[#allocation3 + $0x78] sm:$0xff] %v544
    %569 = vst [vmem:[#allocation3 + $0x80] sm:$0xff] %v545
    %570 = vst [vmem:[#allocation3 + $0x88] sm:$0xff] %v546
    %571 = vst [vmem:[#allocation3 + $0x90] sm:$0xff] %v547
    %572 = vst [vmem:[#allocation3 + $0x98] sm:$0xff] %v548
    %573 = vst [vmem:[#allocation3 + $0xa0] sm:$0xff] %v549
    %574 = vst [vmem:[#allocation3 + $0xa8] sm:$0xff] %v550
    %575 = vst [vmem:[#allocation3 + $0xb0] sm:$0xff] %v551
    %576 = vst [vmem:[#allocation3 + $0xb8] sm:$0xff] %v552
    %v577 = vld [vmem:[#allocation2] sm:$0xff]
    %v578 = vld [vmem:[#allocation2 + $0x8] sm:$0xff]
    %v579 = vld [vmem:[#allocation2 + $0x10] sm:$0xff]
    %v580 = vld [vmem:[#allocation2 + $0x18] sm:$0xff]
    %v581 = vld [vmem:[#allocation2 + $0x20] sm:$0xff]
    %v582 = vld [vmem:[#allocation2 + $0x28] sm:$0xff]
    %v583 = vld [vmem:[#allocation2 + $0x30] sm:$0xff]
    %v584 = vld [vmem:[#allocation2 + $0x38] sm:$0xff]
    %v585 = vld [vmem:[#allocation2 + $0x40] sm:$0xff]
    %v586 = vld [vmem:[#allocation2 + $0x48] sm:$0xff]
    %v587 = vld [vmem:[#allocation2 + $0x50] sm:$0xff]
    %v588 = vld [vmem:[#allocation2 + $0x58] sm:$0xff]
    %v589 = vld [vmem:[#allocation2 + $0x60] sm:$0xff]
    %v590 = vld [vmem:[#allocation2 + $0x68] sm:$0xff]
    %605 = vrot.lane.b32.xlu0 %v577, 126
    %v606 = vpop.permute.xlu0 %605
    %607 = vrot.lane.b32.xlu0 %v578, 126
    %v608 = vpop.permute.xlu0 %607
    %609 = vrot.lane.b32.xlu0 %v579, 126
    %v610 = vpop.permute.xlu0 %609
    %611 = vrot.lane.b32.xlu0 %v580, 126
    %v612 = vpop.permute.xlu0 %611
    %613 = vrot.lane.b32.xlu0 %v581, 126
    %v614 = vpop.permute.xlu0 %613
    %615 = vrot.lane.b32.xlu0 %v582, 126
    %v616 = vpop.permute.xlu0 %615
    %617 = vrot.lane.b32.xlu0 %v583, 126
    %v618 = vpop.permute.xlu0 %617
    %619 = vrot.lane.b32.xlu0 %v584, 126
    %v620 = vpop.permute.xlu0 %619
    %621 = vrot.lane.b32.xlu0 %v585, 126
    %v622 = vpop.permute.xlu0 %621
    %623 = vrot.lane.b32.xlu0 %v586, 126
    %v624 = vpop.permute.xlu0 %623
    %625 = vrot.lane.b32.xlu0 %v587, 126
    %v626 = vpop.permute.xlu0 %625
    %627 = vrot.lane.b32.xlu0 %v588, 126
    %v628 = vpop.permute.xlu0 %627
    %629 = vrot.lane.b32.xlu0 %v589, 126
    %v630 = vpop.permute.xlu0 %629
    %631 = vrot.lane.b32.xlu0 %v590, 126
    %v632 = vpop.permute.xlu0 %631
    %vm633 = vcmask 1031168
    %v634 = vsel %vm633, %v606, %v608
    %v635 = vsel %vm633, %v608, %v610
    %v636 = vsel %vm633, %v610, %v612
    %v637 = vsel %vm633, %v612, %v614
    %v638 = vsel %vm633, %v614, %v616
    %v639 = vsel %vm633, %v616, %v618
    %v640 = vsel %vm633, %v620, %v622
    %v641 = vsel %vm633, %v622, %v624
    %v642 = vsel %vm633, %v624, %v626
    %v643 = vsel %vm633, %v626, %v628
    %v644 = vsel %vm633, %v628, %v630
    %v645 = vsel %vm633, %v630, %v632
    %658 = vst [vmem:[#allocation3 + $0xc0] sm:$0xff] %v634
    %659 = vst [vmem:[#allocation3 + $0xc8] sm:$0xff] %v635
    %660 = vst [vmem:[#allocation3 + $0xd0] sm:$0xff] %v636
    %661 = vst [vmem:[#allocation3 + $0xd8] sm:$0xff] %v637
    %662 = vst [vmem:[#allocation3 + $0xe0] sm:$0xff] %v638
    %663 = vst [vmem:[#allocation3 + $0xe8] sm:$0xff] %v639
    %664 = vst [vmem:[#allocation3 + $0xf0] sm:$0xff] %v640
    %665 = vst [vmem:[#allocation3 + $0xf8] sm:$0xff] %v641
    %666 = vst [vmem:[#allocation3 + $0x100] sm:$0xff] %v642
    %667 = vst [vmem:[#allocation3 + $0x108] sm:$0xff] %v643
    %668 = vst [vmem:[#allocation3 + $0x110] sm:$0xff] %v644
    %669 = vst [vmem:[#allocation3 + $0x118] sm:$0xff] %v645
    %v670 = vld [vmem:[#allocation2] sm:$0xff]
    %v671 = vld [vmem:[#allocation2 + $0x8] sm:$0xff]
    %v672 = vld [vmem:[#allocation2 + $0x10] sm:$0xff]
    %v673 = vld [vmem:[#allocation2 + $0x18] sm:$0xff]
    %v674 = vld [vmem:[#allocation2 + $0x20] sm:$0xff]
    %v675 = vld [vmem:[#allocation2 + $0x28] sm:$0xff]
    %v676 = vld [vmem:[#allocation2 + $0x30] sm:$0xff]
    %v677 = vld [vmem:[#allocation2 + $0x38] sm:$0xff]
    %v678 = vld [vmem:[#allocation2 + $0x40] sm:$0xff]
    %v679 = vld [vmem:[#allocation2 + $0x48] sm:$0xff]
    %v680 = vld [vmem:[#allocation2 + $0x50] sm:$0xff]
    %v681 = vld [vmem:[#allocation2 + $0x58] sm:$0xff]
    %v682 = vld [vmem:[#allocation2 + $0x60] sm:$0xff]
    %v683 = vld [vmem:[#allocation2 + $0x68] sm:$0xff]
    %698 = vrot.lane.b32.xlu0 %v670, 108
    %v699 = vpop.permute.xlu0 %698
    %700 = vrot.lane.b32.xlu0 %v671, 108
    %v701 = vpop.permute.xlu0 %700
    %702 = vrot.lane.b32.xlu0 %v672, 108
    %v703 = vpop.permute.xlu0 %702
    %704 = vrot.lane.b32.xlu0 %v673, 108
    %v705 = vpop.permute.xlu0 %704
    %706 = vrot.lane.b32.xlu0 %v674, 108
    %v707 = vpop.permute.xlu0 %706
    %708 = vrot.lane.b32.xlu0 %v675, 108
    %v709 = vpop.permute.xlu0 %708
    %710 = vrot.lane.b32.xlu0 %v676, 108
    %v711 = vpop.permute.xlu0 %710
    %712 = vrot.lane.b32.xlu0 %v677, 108
    %v713 = vpop.permute.xlu0 %712
    %714 = vrot.lane.b32.xlu0 %v678, 108
    %v715 = vpop.permute.xlu0 %714
    %716 = vrot.lane.b32.xlu0 %v679, 108
    %v717 = vpop.permute.xlu0 %716
    %718 = vrot.lane.b32.xlu0 %v680, 108
    %v719 = vpop.permute.xlu0 %718
    %720 = vrot.lane.b32.xlu0 %v681, 108
    %v721 = vpop.permute.xlu0 %720
    %722 = vrot.lane.b32.xlu0 %v682, 108
    %v723 = vpop.permute.xlu0 %722
    %724 = vrot.lane.b32.xlu0 %v683, 108
    %v725 = vpop.permute.xlu0 %724
    %vm726 = vcmask 883712
    %v727 = vsel %vm726, %v699, %v701
    %v728 = vsel %vm726, %v701, %v703
    %v729 = vsel %vm726, %v703, %v705
    %v730 = vsel %vm726, %v705, %v707
    %v731 = vsel %vm726, %v707, %v709
    %v732 = vsel %vm726, %v709, %v711
    %v733 = vsel %vm726, %v713, %v715
    %v734 = vsel %vm726, %v715, %v717
    %v735 = vsel %vm726, %v717, %v719
    %v736 = vsel %vm726, %v719, %v721
    %v737 = vsel %vm726, %v721, %v723
    %v738 = vsel %vm726, %v723, %v725
    %751 = vst [vmem:[#allocation3 + $0x120] sm:$0xff] %v727
    %752 = vst [vmem:[#allocation3 + $0x128] sm:$0xff] %v728
    %753 = vst [vmem:[#allocation3 + $0x130] sm:$0xff] %v729
    %754 = vst [vmem:[#allocation3 + $0x138] sm:$0xff] %v730
    %755 = vst [vmem:[#allocation3 + $0x140] sm:$0xff] %v731
    %756 = vst [vmem:[#allocation3 + $0x148] sm:$0xff] %v732
    %757 = vst [vmem:[#allocation3 + $0x150] sm:$0xff] %v733
    %758 = vst [vmem:[#allocation3 + $0x158] sm:$0xff] %v734
    %759 = vst [vmem:[#allocation3 + $0x160] sm:$0xff] %v735
    %760 = vst [vmem:[#allocation3 + $0x168] sm:$0xff] %v736
    %761 = vst [vmem:[#allocation3 + $0x170] sm:$0xff] %v737
    %762 = vst [vmem:[#allocation3 + $0x178] sm:$0xff] %v738
    %v763 = vld [vmem:[#allocation2] sm:$0xff]
    %v764 = vld [vmem:[#allocation2 + $0x8] sm:$0xff]
    %v765 = vld [vmem:[#allocation2 + $0x10] sm:$0xff]
    %v766 = vld [vmem:[#allocation2 + $0x18] sm:$0xff]
    %v767 = vld [vmem:[#allocation2 + $0x20] sm:$0xff]
    %v768 = vld [vmem:[#allocation2 + $0x28] sm:$0xff]
    %v769 = vld [vmem:[#allocation2 + $0x30] sm:$0xff]
    %v770 = vld [vmem:[#allocation2 + $0x38] sm:$0xff]
    %v771 = vld [vmem:[#allocation2 + $0x40] sm:$0xff]
    %v772 = vld [vmem:[#allocation2 + $0x48] sm:$0xff]
    %v773 = vld [vmem:[#allocation2 + $0x50] sm:$0xff]
    %v774 = vld [vmem:[#allocation2 + $0x58] sm:$0xff]
    %v775 = vld [vmem:[#allocation2 + $0x60] sm:$0xff]
    %v776 = vld [vmem:[#allocation2 + $0x68] sm:$0xff]
    %791 = vrot.lane.b32.xlu0 %v763, 107
    %v792 = vpop.permute.xlu0 %791
    %793 = vrot.lane.b32.xlu0 %v764, 107
    %v794 = vpop.permute.xlu0 %793
    %795 = vrot.lane.b32.xlu0 %v765, 107
    %v796 = vpop.permute.xlu0 %795
    %797 = vrot.lane.b32.xlu0 %v766, 107
    %v798 = vpop.permute.xlu0 %797
    %799 = vrot.lane.b32.xlu0 %v767, 107
    %v800 = vpop.permute.xlu0 %799
    %801 = vrot.lane.b32.xlu0 %v768, 107
    %v802 = vpop.permute.xlu0 %801
    %803 = vrot.lane.b32.xlu0 %v769, 107
    %v804 = vpop.permute.xlu0 %803
    %805 = vrot.lane.b32.xlu0 %v770, 107
    %v806 = vpop.permute.xlu0 %805
    %807 = vrot.lane.b32.xlu0 %v771, 107
    %v808 = vpop.permute.xlu0 %807
    %809 = vrot.lane.b32.xlu0 %v772, 107
    %v810 = vpop.permute.xlu0 %809
    %811 = vrot.lane.b32.xlu0 %v773, 107
    %v812 = vpop.permute.xlu0 %811
    %813 = vrot.lane.b32.xlu0 %v774, 107
    %v814 = vpop.permute.xlu0 %813
    %815 = vrot.lane.b32.xlu0 %v775, 107
    %v816 = vpop.permute.xlu0 %815
    %817 = vrot.lane.b32.xlu0 %v776, 107
    %v818 = vpop.permute.xlu0 %817
    %vm819 = vcmask 875520
    %v820 = vsel %vm819, %v792, %v794
    %v821 = vsel %vm819, %v794, %v796
    %v822 = vsel %vm819, %v796, %v798
    %v823 = vsel %vm819, %v798, %v800
    %v824 = vsel %vm819, %v800, %v802
    %v825 = vsel %vm819, %v802, %v804
    %v826 = vsel %vm819, %v806, %v808
    %v827 = vsel %vm819, %v808, %v810
    %v828 = vsel %vm819, %v810, %v812
    %v829 = vsel %vm819, %v812, %v814
    %v830 = vsel %vm819, %v814, %v816
    %v831 = vsel %vm819, %v816, %v818
    %844 = vst [vmem:[#allocation3 + $0x180] sm:$0xff] %v820
    %845 = vst [vmem:[#allocation3 + $0x188] sm:$0xff] %v821
    %846 = vst [vmem:[#allocation3 + $0x190] sm:$0xff] %v822
    %847 = vst [vmem:[#allocation3 + $0x198] sm:$0xff] %v823
    %848 = vst [vmem:[#allocation3 + $0x1a0] sm:$0xff] %v824
    %849 = vst [vmem:[#allocation3 + $0x1a8] sm:$0xff] %v825
    %850 = vst [vmem:[#allocation3 + $0x1b0] sm:$0xff] %v826
    %851 = vst [vmem:[#allocation3 + $0x1b8] sm:$0xff] %v827
    %852 = vst [vmem:[#allocation3 + $0x1c0] sm:$0xff] %v828
    %853 = vst [vmem:[#allocation3 + $0x1c8] sm:$0xff] %v829
    %854 = vst [vmem:[#allocation3 + $0x1d0] sm:$0xff] %v830
    %855 = vst [vmem:[#allocation3 + $0x1d8] sm:$0xff] %v831
    %v856 = vld [vmem:[#allocation2] sm:$0xff]
    %v857 = vld [vmem:[#allocation2 + $0x8] sm:$0xff]
    %v858 = vld [vmem:[#allocation2 + $0x10] sm:$0xff]
    %v859 = vld [vmem:[#allocation2 + $0x18] sm:$0xff]
    %v860 = vld [vmem:[#allocation2 + $0x20] sm:$0xff]
    %v861 = vld [vmem:[#allocation2 + $0x28] sm:$0xff]
    %v862 = vld [vmem:[#allocation2 + $0x30] sm:$0xff]
    %v863 = vld [vmem:[#allocation2 + $0x38] sm:$0xff]
    %v864 = vld [vmem:[#allocation2 + $0x40] sm:$0xff]
    %v865 = vld [vmem:[#allocation2 + $0x48] sm:$0xff]
    %v866 = vld [vmem:[#allocation2 + $0x50] sm:$0xff]
    %v867 = vld [vmem:[#allocation2 + $0x58] sm:$0xff]
    %v868 = vld [vmem:[#allocation2 + $0x60] sm:$0xff]
    %v869 = vld [vmem:[#allocation2 + $0x68] sm:$0xff]
    %884 = vrot.lane.b32.xlu0 %v856, 106
    %v885 = vpop.permute.xlu0 %884
    %886 = vrot.lane.b32.xlu0 %v857, 106
    %v887 = vpop.permute.xlu0 %886
    %888 = vrot.lane.b32.xlu0 %v858, 106
    %v889 = vpop.permute.xlu0 %888
    %890 = vrot.lane.b32.xlu0 %v859, 106
    %v891 = vpop.permute.xlu0 %890
    %892 = vrot.lane.b32.xlu0 %v860, 106
    %v893 = vpop.permute.xlu0 %892
    %894 = vrot.lane.b32.xlu0 %v861, 106
    %v895 = vpop.permute.xlu0 %894
    %896 = vrot.lane.b32.xlu0 %v862, 106
    %v897 = vpop.permute.xlu0 %896
    %898 = vrot.lane.b32.xlu0 %v863, 106
    %v899 = vpop.permute.xlu0 %898
    %900 = vrot.lane.b32.xlu0 %v864, 106
    %v901 = vpop.permute.xlu0 %900
    %902 = vrot.lane.b32.xlu0 %v865, 106
    %v903 = vpop.permute.xlu0 %902
    %904 = vrot.lane.b32.xlu0 %v866, 106
    %v905 = vpop.permute.xlu0 %904
    %906 = vrot.lane.b32.xlu0 %v867, 106
    %v907 = vpop.permute.xlu0 %906
    %908 = vrot.lane.b32.xlu0 %v868, 106
    %v909 = vpop.permute.xlu0 %908
    %910 = vrot.lane.b32.xlu0 %v869, 106
    %v911 = vpop.permute.xlu0 %910
    %vm912 = vcmask 867328
    %v913 = vsel %vm912, %v885, %v887
    %v914 = vsel %vm912, %v887, %v889
    %v915 = vsel %vm912, %v889, %v891
    %v916 = vsel %vm912, %v891, %v893
    %v917 = vsel %vm912, %v893, %v895
    %v918 = vsel %vm912, %v895, %v897
    %v919 = vsel %vm912, %v899, %v901
    %v920 = vsel %vm912, %v901, %v903
    %v921 = vsel %vm912, %v903, %v905
    %v922 = vsel %vm912, %v905, %v907
    %v923 = vsel %vm912, %v907, %v909
    %v924 = vsel %vm912, %v909, %v911
    %937 = vst [vmem:[#allocation3 + $0x1e0] sm:$0xff] %v913
    %938 = vst [vmem:[#allocation3 + $0x1e8] sm:$0xff] %v914
    %939 = vst [vmem:[#allocation3 + $0x1f0] sm:$0xff] %v915
    %940 = vst [vmem:[#allocation3 + $0x1f8] sm:$0xff] %v916
    %941 = vst [vmem:[#allocation3 + $0x200] sm:$0xff] %v917
    %942 = vst [vmem:[#allocation3 + $0x208] sm:$0xff] %v918
    %943 = vst [vmem:[#allocation3 + $0x210] sm:$0xff] %v919
    %944 = vst [vmem:[#allocation3 + $0x218] sm:$0xff] %v920
    %945 = vst [vmem:[#allocation3 + $0x220] sm:$0xff] %v921
    %946 = vst [vmem:[#allocation3 + $0x228] sm:$0xff] %v922
    %947 = vst [vmem:[#allocation3 + $0x230] sm:$0xff] %v923
    %948 = vst [vmem:[#allocation3 + $0x238] sm:$0xff] %v924
    %v949 = vld [vmem:[#allocation2] sm:$0xff]
    %v950 = vld [vmem:[#allocation2 + $0x8] sm:$0xff]
    %v951 = vld [vmem:[#allocation2 + $0x10] sm:$0xff]
    %v952 = vld [vmem:[#allocation2 + $0x18] sm:$0xff]
    %v953 = vld [vmem:[#allocation2 + $0x20] sm:$0xff]
    %v954 = vld [vmem:[#allocation2 + $0x28] sm:$0xff]
    %v955 = vld [vmem:[#allocation2 + $0x30] sm:$0xff]
    %v956 = vld [vmem:[#allocation2 + $0x38] sm:$0xff]
    %v957 = vld [vmem:[#allocation2 + $0x40] sm:$0xff]
    %v958 = vld [vmem:[#allocation2 + $0x48] sm:$0xff]
    %v959 = vld [vmem:[#allocation2 + $0x50] sm:$0xff]
    %v960 = vld [vmem:[#allocation2 + $0x58] sm:$0xff]
    %v961 = vld [vmem:[#allocation2 + $0x60] sm:$0xff]
    %v962 = vld [vmem:[#allocation2 + $0x68] sm:$0xff]
    %977 = vrot.lane.b32.xlu0 %v949, 88
    %v978 = vpop.permute.xlu0 %977
    %979 = vrot.lane.b32.xlu0 %v950, 88
    %v980 = vpop.permute.xlu0 %979
    %981 = vrot.lane.b32.xlu0 %v951, 88
    %v982 = vpop.permute.xlu0 %981
    %983 = vrot.lane.b32.xlu0 %v952, 88
    %v984 = vpop.permute.xlu0 %983
    %985 = vrot.lane.b32.xlu0 %v953, 88
    %v986 = vpop.permute.xlu0 %985
    %987 = vrot.lane.b32.xlu0 %v954, 88
    %v988 = vpop.permute.xlu0 %987
    %989 = vrot.lane.b32.xlu0 %v955, 88
    %v990 = vpop.permute.xlu0 %989
    %991 = vrot.lane.b32.xlu0 %v956, 88
    %v992 = vpop.permute.xlu0 %991
    %993 = vrot.lane.b32.xlu0 %v957, 88
    %v994 = vpop.permute.xlu0 %993
    %995 = vrot.lane.b32.xlu0 %v958, 88
    %v996 = vpop.permute.xlu0 %995
    %997 = vrot.lane.b32.xlu0 %v959, 88
    %v998 = vpop.permute.xlu0 %997
    %999 = vrot.lane.b32.xlu0 %v960, 88
    %v1000 = vpop.permute.xlu0 %999
    %1001 = vrot.lane.b32.xlu0 %v961, 88
    %v1002 = vpop.permute.xlu0 %1001
    %1003 = vrot.lane.b32.xlu0 %v962, 88
    %v1004 = vpop.permute.xlu0 %1003
    %vm1005 = vcmask 719872
    %v1006 = vsel %vm1005, %v978, %v980
    %v1007 = vsel %vm1005, %v980, %v982
    %v1008 = vsel %vm1005, %v982, %v984
    %v1009 = vsel %vm1005, %v984, %v986
    %v1010 = vsel %vm1005, %v986, %v988
    %v1011 = vsel %vm1005, %v988, %v990
    %v1012 = vsel %vm1005, %v992, %v994
    %v1013 = vsel %vm1005, %v994, %v996
    %v1014 = vsel %vm1005, %v996, %v998
    %v1015 = vsel %vm1005, %v998, %v1000
    %v1016 = vsel %vm1005, %v1000, %v1002
    %v1017 = vsel %vm1005, %v1002, %v1004
    %1030 = vst [vmem:[#allocation3 + $0x240] sm:$0xff] %v1006
    %1031 = vst [vmem:[#allocation3 + $0x248] sm:$0xff] %v1007
    %1032 = vst [vmem:[#allocation3 + $0x250] sm:$0xff] %v1008
    %1033 = vst [vmem:[#allocation3 + $0x258] sm:$0xff] %v1009
    %1034 = vst [vmem:[#allocation3 + $0x260] sm:$0xff] %v1010
    %1035 = vst [vmem:[#allocation3 + $0x268] sm:$0xff] %v1011
    %1036 = vst [vmem:[#allocation3 + $0x270] sm:$0xff] %v1012
    %1037 = vst [vmem:[#allocation3 + $0x278] sm:$0xff] %v1013
    %1038 = vst [vmem:[#allocation3 + $0x280] sm:$0xff] %v1014
    %1039 = vst [vmem:[#allocation3 + $0x288] sm:$0xff] %v1015
    %1040 = vst [vmem:[#allocation3 + $0x290] sm:$0xff] %v1016
    %1041 = vst [vmem:[#allocation3 + $0x298] sm:$0xff] %v1017
    %v1042 = vld [vmem:[#allocation2] sm:$0xff]
    %v1043 = vld [vmem:[#allocation2 + $0x8] sm:$0xff]
    %v1044 = vld [vmem:[#allocation2 + $0x10] sm:$0xff]
    %v1045 = vld [vmem:[#allocation2 + $0x18] sm:$0xff]
    %v1046 = vld [vmem:[#allocation2 + $0x20] sm:$0xff]
    %v1047 = vld [vmem:[#allocation2 + $0x28] sm:$0xff]
    %v1048 = vld [vmem:[#allocation2 + $0x30] sm:$0xff]
    %v1049 = vld [vmem:[#allocation2 + $0x38] sm:$0xff]
    %v1050 = vld [vmem:[#allocation2 + $0x40] sm:$0xff]
    %v1051 = vld [vmem:[#allocation2 + $0x48] sm:$0xff]
    %v1052 = vld [vmem:[#allocation2 + $0x50] sm:$0xff]
    %v1053 = vld [vmem:[#allocation2 + $0x58] sm:$0xff]
    %v1054 = vld [vmem:[#allocation2 + $0x60] sm:$0xff]
    %v1055 = vld [vmem:[#allocation2 + $0x68] sm:$0xff]
    %1070 = vrot.lane.b32.xlu0 %v1042, 87
    %v1071 = vpop.permute.xlu0 %1070
    %1072 = vrot.lane.b32.xlu0 %v1043, 87
    %v1073 = vpop.permute.xlu0 %1072
    %1074 = vrot.lane.b32.xlu0 %v1044, 87
    %v1075 = vpop.permute.xlu0 %1074
    %1076 = vrot.lane.b32.xlu0 %v1045, 87
    %v1077 = vpop.permute.xlu0 %1076
    %1078 = vrot.lane.b32.xlu0 %v1046, 87
    %v1079 = vpop.permute.xlu0 %1078
    %1080 = vrot.lane.b32.xlu0 %v1047, 87
    %v1081 = vpop.permute.xlu0 %1080
    %1082 = vrot.lane.b32.xlu0 %v1048, 87
    %v1083 = vpop.permute.xlu0 %1082
    %1084 = vrot.lane.b32.xlu0 %v1049, 87
    %v1085 = vpop.permute.xlu0 %1084
    %1086 = vrot.lane.b32.xlu0 %v1050, 87
    %v1087 = vpop.permute.xlu0 %1086
    %1088 = vrot.lane.b32.xlu0 %v1051, 87
    %v1089 = vpop.permute.xlu0 %1088
    %1090 = vrot.lane.b32.xlu0 %v1052, 87
    %v1091 = vpop.permute.xlu0 %1090
    %1092 = vrot.lane.b32.xlu0 %v1053, 87
    %v1093 = vpop.permute.xlu0 %1092
    %1094 = vrot.lane.b32.xlu0 %v1054, 87
    %v1095 = vpop.permute.xlu0 %1094
    %1096 = vrot.lane.b32.xlu0 %v1055, 87
    %v1097 = vpop.permute.xlu0 %1096
    %vm1098 = vcmask 711680
    %v1099 = vsel %vm1098, %v1071, %v1073
    %v1100 = vsel %vm1098, %v1073, %v1075
    %v1101 = vsel %vm1098, %v1075, %v1077
    %v1102 = vsel %vm1098, %v1077, %v1079
    %v1103 = vsel %vm1098, %v1079, %v1081
    %v1104 = vsel %vm1098, %v1081, %v1083
    %v1105 = vsel %vm1098, %v1085, %v1087
    %v1106 = vsel %vm1098, %v1087, %v1089
    %v1107 = vsel %vm1098, %v1089, %v1091
    %v1108 = vsel %vm1098, %v1091, %v1093
    %v1109 = vsel %vm1098, %v1093, %v1095
    %v1110 = vsel %vm1098, %v1095, %v1097
    %1123 = vst [vmem:[#allocation3 + $0x2a0] sm:$0xff] %v1099
    %1124 = vst [vmem:[#allocation3 + $0x2a8] sm:$0xff] %v1100
    %1125 = vst [vmem:[#allocation3 + $0x2b0] sm:$0xff] %v1101
    %1126 = vst [vmem:[#allocation3 + $0x2b8] sm:$0xff] %v1102
    %1127 = vst [vmem:[#allocation3 + $0x2c0] sm:$0xff] %v1103
    %1128 = vst [vmem:[#allocation3 + $0x2c8] sm:$0xff] %v1104
    %1129 = vst [vmem:[#allocation3 + $0x2d0] sm:$0xff] %v1105
    %1130 = vst [vmem:[#allocation3 + $0x2d8] sm:$0xff] %v1106
    %1131 = vst [vmem:[#allocation3 + $0x2e0] sm:$0xff] %v1107
    %1132 = vst [vmem:[#allocation3 + $0x2e8] sm:$0xff] %v1108
    %1133 = vst [vmem:[#allocation3 + $0x2f0] sm:$0xff] %v1109
    %1134 = vst [vmem:[#allocation3 + $0x2f8] sm:$0xff] %v1110
    %v1135 = vld [vmem:[#allocation2] sm:$0xff]
    %v1136 = vld [vmem:[#allocation2 + $0x8] sm:$0xff]
    %v1137 = vld [vmem:[#allocation2 + $0x10] sm:$0xff]
    %v1138 = vld [vmem:[#allocation2 + $0x18] sm:$0xff]
    %v1139 = vld [vmem:[#allocation2 + $0x20] sm:$0xff]
    %v1140 = vld [vmem:[#allocation2 + $0x28] sm:$0xff]
    %v1141 = vld [vmem:[#allocation2 + $0x30] sm:$0xff]
    %v1142 = vld [vmem:[#allocation2 + $0x38] sm:$0xff]
    %v1143 = vld [vmem:[#allocation2 + $0x40] sm:$0xff]
    %v1144 = vld [vmem:[#allocation2 + $0x48] sm:$0xff]
    %v1145 = vld [vmem:[#allocation2 + $0x50] sm:$0xff]
    %v1146 = vld [vmem:[#allocation2 + $0x58] sm:$0xff]
    %v1147 = vld [vmem:[#allocation2 + $0x60] sm:$0xff]
    %v1148 = vld [vmem:[#allocation2 + $0x68] sm:$0xff]
    %1163 = vrot.lane.b32.xlu0 %v1135, 86
    %v1164 = vpop.permute.xlu0 %1163
    %1165 = vrot.lane.b32.xlu0 %v1136, 86
    %v1166 = vpop.permute.xlu0 %1165
    %1167 = vrot.lane.b32.xlu0 %v1137, 86
    %v1168 = vpop.permute.xlu0 %1167
    %1169 = vrot.lane.b32.xlu0 %v1138, 86
    %v1170 = vpop.permute.xlu0 %1169
    %1171 = vrot.lane.b32.xlu0 %v1139, 86
    %v1172 = vpop.permute.xlu0 %1171
    %1173 = vrot.lane.b32.xlu0 %v1140, 86
    %v1174 = vpop.permute.xlu0 %1173
    %1175 = vrot.lane.b32.xlu0 %v1141, 86
    %v1176 = vpop.permute.xlu0 %1175
    %1177 = vrot.lane.b32.xlu0 %v1142, 86
    %v1178 = vpop.permute.xlu0 %1177
    %1179 = vrot.lane.b32.xlu0 %v1143, 86
    %v1180 = vpop.permute.xlu0 %1179
    %1181 = vrot.lane.b32.xlu0 %v1144, 86
    %v1182 = vpop.permute.xlu0 %1181
    %1183 = vrot.lane.b32.xlu0 %v1145, 86
    %v1184 = vpop.permute.xlu0 %1183
    %1185 = vrot.lane.b32.xlu0 %v1146, 86
    %v1186 = vpop.permute.xlu0 %1185
    %1187 = vrot.lane.b32.xlu0 %v1147, 86
    %v1188 = vpop.permute.xlu0 %1187
    %1189 = vrot.lane.b32.xlu0 %v1148, 86
    %v1190 = vpop.permute.xlu0 %1189
    %vm1191 = vcmask 703488
    %v1192 = vsel %vm1191, %v1164, %v1166
    %v1193 = vsel %vm1191, %v1166, %v1168
    %v1194 = vsel %vm1191, %v1168, %v1170
    %v1195 = vsel %vm1191, %v1170, %v1172
    %v1196 = vsel %vm1191, %v1172, %v1174
    %v1197 = vsel %vm1191, %v1174, %v1176
    %v1198 = vsel %vm1191, %v1178, %v1180
    %v1199 = vsel %vm1191, %v1180, %v1182
    %v1200 = vsel %vm1191, %v1182, %v1184
    %v1201 = vsel %vm1191, %v1184, %v1186
    %v1202 = vsel %vm1191, %v1186, %v1188
    %v1203 = vsel %vm1191, %v1188, %v1190
    %1216 = vst [vmem:[#allocation3 + $0x300] sm:$0xff] %v1192
    %1217 = vst [vmem:[#allocation3 + $0x308] sm:$0xff] %v1193
    %1218 = vst [vmem:[#allocation3 + $0x310] sm:$0xff] %v1194
    %1219 = vst [vmem:[#allocation3 + $0x318] sm:$0xff] %v1195
    %1220 = vst [vmem:[#allocation3 + $0x320] sm:$0xff] %v1196
    %1221 = vst [vmem:[#allocation3 + $0x328] sm:$0xff] %v1197
    %1222 = vst [vmem:[#allocation3 + $0x330] sm:$0xff] %v1198
    %1223 = vst [vmem:[#allocation3 + $0x338] sm:$0xff] %v1199
    %1224 = vst [vmem:[#allocation3 + $0x340] sm:$0xff] %v1200
    %1225 = vst [vmem:[#allocation3 + $0x348] sm:$0xff] %v1201
    %1226 = vst [vmem:[#allocation3 + $0x350] sm:$0xff] %v1202
    %1227 = vst [vmem:[#allocation3 + $0x358] sm:$0xff] %v1203
    %v1228 = vld [vmem:[#allocation6] sm:$0xff]
    %v1229 = vld [vmem:[#allocation6 + $0x8] sm:$0xff]
    %v1230 = vld [vmem:[#allocation6 + $0x10] sm:$0xff]
    %v1231 = vld [vmem:[#allocation6 + $0x18] sm:$0xff]
    %v1232 = vld [vmem:[#allocation6 + $0x20] sm:$0xff]
    %v1233 = vld [vmem:[#allocation6 + $0x28] sm:$0xff]
    %v1234 = vld [vmem:[#allocation6 + $0x30] sm:$0xff]
    %v1235 = vld [vmem:[#allocation6 + $0x38] sm:$0xff]
    %v1236 = vld [vmem:[#allocation3] sm:$0xff]
    %v1237 = vld [vmem:[#allocation3 + $0x8] sm:$0xff]
    %v1238 = vld [vmem:[#allocation3 + $0x10] sm:$0xff]
    %v1239 = vld [vmem:[#allocation3 + $0x18] sm:$0xff]
    %v1240 = vld [vmem:[#allocation3 + $0x20] sm:$0xff]
    %v1241 = vld [vmem:[#allocation3 + $0x28] sm:$0xff]
    %v1242 = vld [vmem:[#allocation3 + $0x30] sm:$0xff]
    %v1243 = vld [vmem:[#allocation3 + $0x38] sm:$0xff]
    %v1244 = vld [vmem:[#allocation3 + $0x40] sm:$0xff]
    %v1245 = vld [vmem:[#allocation3 + $0x48] sm:$0xff]
    %v1246 = vld [vmem:[#allocation3 + $0x50] sm:$0xff]
    %v1247 = vld [vmem:[#allocation3 + $0x58] sm:$0xff]
    %v1248 = vld [vmem:[#allocation3 + $0x60] sm:$0xff]
    %v1249 = vld [vmem:[#allocation3 + $0x68] sm:$0xff]
    %v1250 = vld [vmem:[#allocation3 + $0x70] sm:$0xff]
    %v1251 = vld [vmem:[#allocation3 + $0x78] sm:$0xff]
    %v1252 = vld [vmem:[#allocation3 + $0x80] sm:$0xff]
    %v1253 = vld [vmem:[#allocation3 + $0x88] sm:$0xff]
    %v1254 = vld [vmem:[#allocation3 + $0x90] sm:$0xff]
    %v1255 = vld [vmem:[#allocation3 + $0x98] sm:$0xff]
    %v1256 = vld [vmem:[#allocation3 + $0xa0] sm:$0xff]
    %v1257 = vld [vmem:[#allocation3 + $0xa8] sm:$0xff]
    %v1258 = vld [vmem:[#allocation3 + $0xb0] sm:$0xff]
    %v1259 = vld [vmem:[#allocation3 + $0xb8] sm:$0xff]
    %v1260 = vld [vmem:[#allocation3 + $0xc0] sm:$0xff]
    %v1261 = vld [vmem:[#allocation3 + $0xc8] sm:$0xff]
    %v1262 = vld [vmem:[#allocation3 + $0xd0] sm:$0xff]
    %v1263 = vld [vmem:[#allocation3 + $0xd8] sm:$0xff]
    %v1264 = vld [vmem:[#allocation3 + $0xe0] sm:$0xff]
    %v1265 = vld [vmem:[#allocation3 + $0xe8] sm:$0xff]
    %v1266 = vld [vmem:[#allocation3 + $0xf0] sm:$0xff]
    %v1267 = vld [vmem:[#allocation3 + $0xf8] sm:$0xff]
    %v1268 = vld [vmem:[#allocation3 + $0x100] sm:$0xff]
    %v1269 = vld [vmem:[#allocation3 + $0x108] sm:$0xff]
    %v1270 = vld [vmem:[#allocation3 + $0x110] sm:$0xff]
    %v1271 = vld [vmem:[#allocation3 + $0x118] sm:$0xff]
    %v1272 = vld [vmem:[#allocation3 + $0x120] sm:$0xff]
    %v1273 = vld [vmem:[#allocation3 + $0x128] sm:$0xff]
    %v1274 = vld [vmem:[#allocation3 + $0x130] sm:$0xff]
    %v1275 = vld [vmem:[#allocation3 + $0x138] sm:$0xff]
    %v1276 = vld [vmem:[#allocation3 + $0x140] sm:$0xff]
    %v1277 = vld [vmem:[#allocation3 + $0x148] sm:$0xff]
    %v1278 = vld [vmem:[#allocation3 + $0x150] sm:$0xff]
    %v1279 = vld [vmem:[#allocation3 + $0x158] sm:$0xff]
    %v1280 = vld [vmem:[#allocation3 + $0x160] sm:$0xff]
    %v1281 = vld [vmem:[#allocation3 + $0x168] sm:$0xff]
    %v1282 = vld [vmem:[#allocation3 + $0x170] sm:$0xff]
    %v1283 = vld [vmem:[#allocation3 + $0x178] sm:$0xff]
    %v1284 = vld [vmem:[#allocation3 + $0x180] sm:$0xff]
    %v1285 = vld [vmem:[#allocation3 + $0x188] sm:$0xff]
    %v1286 = vld [vmem:[#allocation3 + $0x190] sm:$0xff]
    %v1287 = vld [vmem:[#allocation3 + $0x198] sm:$0xff]
    %v1288 = vld [vmem:[#allocation3 + $0x1a0] sm:$0xff]
    %v1289 = vld [vmem:[#allocation3 + $0x1a8] sm:$0xff]
    %v1290 = vld [vmem:[#allocation3 + $0x1b0] sm:$0xff]
    %v1291 = vld [vmem:[#allocation3 + $0x1b8] sm:$0xff]
    %v1292 = vld [vmem:[#allocation3 + $0x1c0] sm:$0xff]
    %v1293 = vld [vmem:[#allocation3 + $0x1c8] sm:$0xff]
    %v1294 = vld [vmem:[#allocation3 + $0x1d0] sm:$0xff]
    %v1295 = vld [vmem:[#allocation3 + $0x1d8] sm:$0xff]
    %v1296 = vld [vmem:[#allocation3 + $0x1e0] sm:$0xff]
    %v1297 = vld [vmem:[#allocation3 + $0x1e8] sm:$0xff]
    %v1298 = vld [vmem:[#allocation3 + $0x1f0] sm:$0xff]
    %v1299 = vld [vmem:[#allocation3 + $0x1f8] sm:$0xff]
    %v1300 = vld [vmem:[#allocation3 + $0x200] sm:$0xff]
    %v1301 = vld [vmem:[#allocation3 + $0x208] sm:$0xff]
    %v1302 = vld [vmem:[#allocation3 + $0x210] sm:$0xff]
    %v1303 = vld [vmem:[#allocation3 + $0x218] sm:$0xff]
    %v1304 = vld [vmem:[#allocation3 + $0x220] sm:$0xff]
    %v1305 = vld [vmem:[#allocation3 + $0x228] sm:$0xff]
    %v1306 = vld [vmem:[#allocation3 + $0x230] sm:$0xff]
    %v1307 = vld [vmem:[#allocation3 + $0x238] sm:$0xff]
    %v1308 = vld [vmem:[#allocation3 + $0x240] sm:$0xff]
    %v1309 = vld [vmem:[#allocation3 + $0x248] sm:$0xff]
    %v1310 = vld [vmem:[#allocation3 + $0x250] sm:$0xff]
    %v1311 = vld [vmem:[#allocation3 + $0x258] sm:$0xff]
    %v1312 = vld [vmem:[#allocation3 + $0x260] sm:$0xff]
    %v1313 = vld [vmem:[#allocation3 + $0x268] sm:$0xff]
    %v1314 = vld [vmem:[#allocation3 + $0x270] sm:$0xff]
    %v1315 = vld [vmem:[#allocation3 + $0x278] sm:$0xff]
    %v1316 = vld [vmem:[#allocation3 + $0x280] sm:$0xff]
    %v1317 = vld [vmem:[#allocation3 + $0x288] sm:$0xff]
    %v1318 = vld [vmem:[#allocation3 + $0x290] sm:$0xff]
    %v1319 = vld [vmem:[#allocation3 + $0x298] sm:$0xff]
    %v1320 = vld [vmem:[#allocation3 + $0x2a0] sm:$0xff]
    %v1321 = vld [vmem:[#allocation3 + $0x2a8] sm:$0xff]
    %v1322 = vld [vmem:[#allocation3 + $0x2b0] sm:$0xff]
    %v1323 = vld [vmem:[#allocation3 + $0x2b8] sm:$0xff]
    %v1324 = vld [vmem:[#allocation3 + $0x2c0] sm:$0xff]
    %v1325 = vld [vmem:[#allocation3 + $0x2c8] sm:$0xff]
    %v1326 = vld [vmem:[#allocation3 + $0x2d0] sm:$0xff]
    %v1327 = vld [vmem:[#allocation3 + $0x2d8] sm:$0xff]
    %v1328 = vld [vmem:[#allocation3 + $0x2e0] sm:$0xff]
    %v1329 = vld [vmem:[#allocation3 + $0x2e8] sm:$0xff]
    %v1330 = vld [vmem:[#allocation3 + $0x2f0] sm:$0xff]
    %v1331 = vld [vmem:[#allocation3 + $0x2f8] sm:$0xff]
    %v1332 = vld [vmem:[#allocation3 + $0x300] sm:$0xff]
    %v1333 = vld [vmem:[#allocation3 + $0x308] sm:$0xff]
    %v1334 = vld [vmem:[#allocation3 + $0x310] sm:$0xff]
    %v1335 = vld [vmem:[#allocation3 + $0x318] sm:$0xff]
    %v1336 = vld [vmem:[#allocation3 + $0x320] sm:$0xff]
    %v1337 = vld [vmem:[#allocation3 + $0x328] sm:$0xff]
    %v1338 = vld [vmem:[#allocation3 + $0x330] sm:$0xff]
    %v1339 = vld [vmem:[#allocation3 + $0x338] sm:$0xff]
    %v1340 = vld [vmem:[#allocation3 + $0x340] sm:$0xff]
    %v1341 = vld [vmem:[#allocation3 + $0x348] sm:$0xff]
    %v1342 = vld [vmem:[#allocation3 + $0x350] sm:$0xff]
    %v1343 = vld [vmem:[#allocation3 + $0x358] sm:$0xff]
    %v1344 = vld [vmem:[%s4] sm:$0xff]
    %v1345 = vld [vmem:[%s4 + $0x8] sm:$0xff]
    %v1346 = vld [vmem:[%s4 + $0x10] sm:$0xff]
    %v1347 = vld [vmem:[%s4 + $0x18] sm:$0xff]
    %1349 = vset.pattern.permute.xlu0 0
    %1350 = vperm.xlu0 %1349, %v1344
    %v1351 = vpop.permute.xlu0 %1350
    %1354 = vset.pattern.permute.xlu0 0
    %1355 = vperm.xlu0 %1354, %v1345
    %v1356 = vpop.permute.xlu0 %1355
    %1359 = vset.pattern.permute.xlu0 0
    %1360 = vperm.xlu0 %1359, %v1346
    %v1361 = vpop.permute.xlu0 %1360
    %1364 = vset.pattern.permute.xlu0 0
    %1365 = vperm.xlu0 %1364, %v1347
    %v1366 = vpop.permute.xlu0 %1365
    %vm1368 = vcmask 130048
    %v1370 = vsel %vm1368, %v1229, 0
    %v1373 = vsel %vm1368, %v1231, 0
    %v1376 = vsel %vm1368, %v1233, 0
    %v1379 = vsel %vm1368, %v1235, 0
    %1381 = vmatprep.subr.mxu0 %v1327
    %1382 = vmatpush1.msra.mxu0 %v1326
    %1383 = vmatprep.subr.mxu0 %v1321
    %1384 = vmatpush1.msra.mxu0 %v1320
    %1385 = vmatprep.subr.mxu0 %v1315
    %1386 = vmatpush1.msra.mxu0 %v1314
    %1387 = vmatprep.subr.mxu0 %v1309
    %1388 = vmatpush1.msra.mxu0 %v1308
    %1389 = vmatprep.subr.mxu0 %v1303
    %1390 = vmatpush1.msra.mxu0 %v1302
    %1391 = vmatprep.subr.mxu0 %v1297
    %1392 = vmatpush1.msra.mxu0 %v1296
    %1393 = vmatprep.subr.mxu0 %v1291
    %1394 = vmatpush1.msra.mxu0 %v1290
    %1395 = vmatprep.subr.mxu0 %v1285
    %1396 = vmatpush1.msra.mxu0 %v1284
    %1397 = vmatprep.subr.mxu0 %v1279
    %1398 = vmatpush1.msra.mxu0 %v1278
    %1399 = vmatprep.subr.mxu0 %v1273
    %1400 = vmatpush1.msra.mxu0 %v1272
    %1401 = vmatprep.subr.mxu0 %v1267
    %1402 = vmatpush1.msra.mxu0 %v1266
    %1403 = vmatprep.subr.mxu0 %v1261
    %1404 = vmatpush1.msra.mxu0 %v1260
    %1405 = vmatprep.subr.mxu0 %v1255
    %1406 = vmatpush1.msra.mxu0 %v1254
    %1407 = vmatprep.subr.mxu0 %v1249
    %1408 = vmatpush1.msra.mxu0 %v1248
    %1409 = vmatprep.subr.mxu0 %v1243
    %1410 = vmatpush1.msra.mxu0 %v1242
    %1411 = vmatprep.subr.mxu0 %v1237
    %1412 = vmatpush1.msra.mxu0 %v1236
    %1413 = vmatprep.subr.mxu0 0.0
    %1414 = vmatpush2.msra.mxu0 0.0
    %1415 = vmatprep.subr.mxu0 0.0
    %1416 = vmatpush2.msra.mxu0 0.0
    %1417 = vmatprep.subr.mxu0 0.0
    %1418 = vmatpush2.msra.mxu0 0.0
    %1419 = vmatprep.subr.mxu0 0.0
    %1420 = vmatpush2.msra.mxu0 0.0
    %1421 = vmatprep.subr.mxu0 0.0
    %1422 = vmatpush2.msra.mxu0 0.0
    %1423 = vmatprep.subr.mxu0 0.0
    %1424 = vmatpush2.msra.mxu0 0.0
    %1425 = vmatprep.subr.mxu0 0.0
    %1426 = vmatpush2.msra.mxu0 0.0
    %1427 = vmatprep.subr.mxu0 0.0
    %1428 = vmatpush2.msra.mxu0 0.0
    %1429 = vmatprep.subr.mxu0 0.0
    %1430 = vmatpush2.msra.mxu0 0.0
    %1431 = vmatprep.subr.mxu0 0.0
    %1432 = vmatpush2.msra.mxu0 0.0
    %1433 = vmatprep.subr.mxu0 0.0
    %1434 = vmatpush2.msra.mxu0 0.0
    %1435 = vmatprep.subr.mxu0 0.0
    %1436 = vmatpush2.msra.mxu0 0.0
    %1437 = vmatprep.subr.mxu0 0.0
    %1438 = vmatpush2.msra.mxu0 0.0
    %1439 = vmatprep.subr.mxu0 0.0
    %1440 = vmatpush2.msra.mxu0 0.0
    %1441 = vmatprep.subr.mxu0 %v1339
    %1442 = vmatpush2.msra.mxu0 %v1338
    %1443 = vmatprep.subr.mxu0 %v1333
    %1444 = vmatpush2.msra.mxu0 %v1332
    %1445 = vmatprep.mubr.f32.mxu0 %v1370
    %1446 = vmatmul.mubr.f32.gmra.mxu0 %v1228
    %v1447 = vpop.f32.mrf.mxu0
    %v1448 = vadd.f32 %v1351, %v1447
    %v1449 = vpop.f32.mrf.mxu0
    %v1450 = vadd.f32 %v1351, %v1449
    %1451 = vmatprep.mubr.f32.mxu0 %v1373
    %1452 = vmatmul.mubr.f32.gmra.mxu0 %v1230
    %v1453 = vpop.f32.mrf.mxu0
    %v1454 = vadd.f32 %v1356, %v1453
    %v1455 = vpop.f32.mrf.mxu0
    %v1456 = vadd.f32 %v1356, %v1455
    %1457 = vmatprep.mubr.f32.mxu0 %v1376
    %1458 = vmatmul.mubr.f32.gmra.mxu0 %v1232
    %v1459 = vpop.f32.mrf.mxu0
    %v1460 = vadd.f32 %v1361, %v1459
    %v1461 = vpop.f32.mrf.mxu0
    %v1462 = vadd.f32 %v1361, %v1461
    %1463 = vmatprep.mubr.f32.mxu0 %v1379
    %1464 = vmatmul.mubr.f32.gmra.mxu0 %v1234
    %v1465 = vpop.f32.mrf.mxu0
    %v1466 = vadd.f32 %v1366, %v1465
    %v1467 = vpop.f32.mrf.mxu0
    %v1468 = vadd.f32 %v1366, %v1467
    %1469 = vdwg.mxu0
    %1470 = vmatprep.subr.mxu0 %v1329
    %1471 = vmatpush1.msra.mxu0 %v1328
    %1472 = vmatprep.subr.mxu0 %v1323
    %1473 = vmatpush1.msra.mxu0 %v1322
    %1474 = vmatprep.subr.mxu0 %v1317
    %1475 = vmatpush1.msra.mxu0 %v1316
    %1476 = vmatprep.subr.mxu0 %v1311
    %1477 = vmatpush1.msra.mxu0 %v1310
    %1478 = vmatprep.subr.mxu0 %v1305
    %1479 = vmatpush1.msra.mxu0 %v1304
    %1480 = vmatprep.subr.mxu0 %v1299
    %1481 = vmatpush1.msra.mxu0 %v1298
    %1482 = vmatprep.subr.mxu0 %v1293
    %1483 = vmatpush1.msra.mxu0 %v1292
    %1484 = vmatprep.subr.mxu0 %v1287
    %1485 = vmatpush1.msra.mxu0 %v1286
    %1486 = vmatprep.subr.mxu0 %v1281
    %1487 = vmatpush1.msra.mxu0 %v1280
    %1488 = vmatprep.subr.mxu0 %v1275
    %1489 = vmatpush1.msra.mxu0 %v1274
    %1490 = vmatprep.subr.mxu0 %v1269
    %1491 = vmatpush1.msra.mxu0 %v1268
    %1492 = vmatprep.subr.mxu0 %v1263
    %1493 = vmatpush1.msra.mxu0 %v1262
    %1494 = vmatprep.subr.mxu0 %v1257
    %1495 = vmatpush1.msra.mxu0 %v1256
    %1496 = vmatprep.subr.mxu0 %v1251
    %1497 = vmatpush1.msra.mxu0 %v1250
    %1498 = vmatprep.subr.mxu0 %v1245
    %1499 = vmatpush1.msra.mxu0 %v1244
    %1500 = vmatprep.subr.mxu0 %v1239
    %1501 = vmatpush1.msra.mxu0 %v1238
    %1502 = vmatprep.subr.mxu0 0.0
    %1503 = vmatpush2.msra.mxu0 0.0
    %1504 = vmatprep.subr.mxu0 0.0
    %1505 = vmatpush2.msra.mxu0 0.0
    %1506 = vmatprep.subr.mxu0 0.0
    %1507 = vmatpush2.msra.mxu0 0.0
    %1508 = vmatprep.subr.mxu0 0.0
    %1509 = vmatpush2.msra.mxu0 0.0
    %1510 = vmatprep.subr.mxu0 0.0
    %1511 = vmatpush2.msra.mxu0 0.0
    %1512 = vmatprep.subr.mxu0 0.0
    %1513 = vmatpush2.msra.mxu0 0.0
    %1514 = vmatprep.subr.mxu0 0.0
    %1515 = vmatpush2.msra.mxu0 0.0
    %1516 = vmatprep.subr.mxu0 0.0
    %1517 = vmatpush2.msra.mxu0 0.0
    %1518 = vmatprep.subr.mxu0 0.0
    %1519 = vmatpush2.msra.mxu0 0.0
    %1520 = vmatprep.subr.mxu0 0.0
    %1521 = vmatpush2.msra.mxu0 0.0
    %1522 = vmatprep.subr.mxu0 0.0
    %1523 = vmatpush2.msra.mxu0 0.0
    %1524 = vmatprep.subr.mxu0 0.0
    %1525 = vmatpush2.msra.mxu0 0.0
    %1526 = vmatprep.subr.mxu0 0.0
    %1527 = vmatpush2.msra.mxu0 0.0
    %1528 = vmatprep.subr.mxu0 0.0
    %1529 = vmatpush2.msra.mxu0 0.0
    %1530 = vmatprep.subr.mxu0 %v1341
    %1531 = vmatpush2.msra.mxu0 %v1340
    %1532 = vmatprep.subr.mxu0 %v1335
    %1533 = vmatpush2.msra.mxu0 %v1334
    %1534 = vmatprep.mubr.f32.mxu0 %v1370
    %1535 = vmatmul.mubr.f32.gmra.mxu0 %v1228
    %v1536 = vpop.f32.mrf.mxu0
    %v1537 = vadd.f32 %v1351, %v1536
    %v1538 = vpop.f32.mrf.mxu0
    %v1539 = vadd.f32 %v1351, %v1538
    %1540 = vmatprep.mubr.f32.mxu0 %v1373
    %1541 = vmatmul.mubr.f32.gmra.mxu0 %v1230
    %v1542 = vpop.f32.mrf.mxu0
    %v1543 = vadd.f32 %v1356, %v1542
    %v1544 = vpop.f32.mrf.mxu0
    %v1545 = vadd.f32 %v1356, %v1544
    %1546 = vmatprep.mubr.f32.mxu0 %v1376
    %1547 = vmatmul.mubr.f32.gmra.mxu0 %v1232
    %v1548 = vpop.f32.mrf.mxu0
    %v1549 = vadd.f32 %v1361, %v1548
    %v1550 = vpop.f32.mrf.mxu0
    %v1551 = vadd.f32 %v1361, %v1550
    %1552 = vmatprep.mubr.f32.mxu0 %v1379
    %1553 = vmatmul.mubr.f32.gmra.mxu0 %v1234
    %v1554 = vpop.f32.mrf.mxu0
    %v1555 = vadd.f32 %v1366, %v1554
    %v1556 = vpop.f32.mrf.mxu0
    %v1557 = vadd.f32 %v1366, %v1556
    %1558 = vdwg.mxu0
    %1559 = vmatprep.subr.mxu0 %v1331
    %1560 = vmatpush1.msra.mxu0 %v1330
    %1561 = vmatprep.subr.mxu0 %v1325
    %1562 = vmatpush1.msra.mxu0 %v1324
    %1563 = vmatprep.subr.mxu0 %v1319
    %1564 = vmatpush1.msra.mxu0 %v1318
    %1565 = vmatprep.subr.mxu0 %v1313
    %1566 = vmatpush1.msra.mxu0 %v1312
    %1567 = vmatprep.subr.mxu0 %v1307
    %1568 = vmatpush1.msra.mxu0 %v1306
    %1569 = vmatprep.subr.mxu0 %v1301
    %1570 = vmatpush1.msra.mxu0 %v1300
    %1571 = vmatprep.subr.mxu0 %v1295
    %1572 = vmatpush1.msra.mxu0 %v1294
    %1573 = vmatprep.subr.mxu0 %v1289
    %1574 = vmatpush1.msra.mxu0 %v1288
    %1575 = vmatprep.subr.mxu0 %v1283
    %1576 = vmatpush1.msra.mxu0 %v1282
    %1577 = vmatprep.subr.mxu0 %v1277
    %1578 = vmatpush1.msra.mxu0 %v1276
    %1579 = vmatprep.subr.mxu0 %v1271
    %1580 = vmatpush1.msra.mxu0 %v1270
    %1581 = vmatprep.subr.mxu0 %v1265
    %1582 = vmatpush1.msra.mxu0 %v1264
    %1583 = vmatprep.subr.mxu0 %v1259
    %1584 = vmatpush1.msra.mxu0 %v1258
    %1585 = vmatprep.subr.mxu0 %v1253
    %1586 = vmatpush1.msra.mxu0 %v1252
    %1587 = vmatprep.subr.mxu0 %v1247
    %1588 = vmatpush1.msra.mxu0 %v1246
    %1589 = vmatprep.subr.mxu0 %v1241
    %1590 = vmatpush1.msra.mxu0 %v1240
    %1591 = vmatprep.subr.mxu0 0.0
    %1592 = vmatpush2.msra.mxu0 0.0
    %1593 = vmatprep.subr.mxu0 0.0
    %1594 = vmatpush2.msra.mxu0 0.0
    %1595 = vmatprep.subr.mxu0 0.0
    %1596 = vmatpush2.msra.mxu0 0.0
    %1597 = vmatprep.subr.mxu0 0.0
    %1598 = vmatpush2.msra.mxu0 0.0
    %1599 = vmatprep.subr.mxu0 0.0
    %1600 = vmatpush2.msra.mxu0 0.0
    %1601 = vmatprep.subr.mxu0 0.0
    %1602 = vmatpush2.msra.mxu0 0.0
    %1603 = vmatprep.subr.mxu0 0.0
    %1604 = vmatpush2.msra.mxu0 0.0
    %1605 = vmatprep.subr.mxu0 0.0
    %1606 = vmatpush2.msra.mxu0 0.0
    %1607 = vmatprep.subr.mxu0 0.0
    %1608 = vmatpush2.msra.mxu0 0.0
    %1609 = vmatprep.subr.mxu0 0.0
    %1610 = vmatpush2.msra.mxu0 0.0
    %1611 = vmatprep.subr.mxu0 0.0
    %1612 = vmatpush2.msra.mxu0 0.0
    %1613 = vmatprep.subr.mxu0 0.0
    %1614 = vmatpush2.msra.mxu0 0.0
    %1615 = vmatprep.subr.mxu0 0.0
    %1616 = vmatpush2.msra.mxu0 0.0
    %1617 = vmatprep.subr.mxu0 0.0
    %1618 = vmatpush2.msra.mxu0 0.0
    %1619 = vmatprep.subr.mxu0 %v1343
    %1620 = vmatpush2.msra.mxu0 %v1342
    %1621 = vmatprep.subr.mxu0 %v1337
    %1622 = vmatpush2.msra.mxu0 %v1336
    %1623 = vmatprep.mubr.f32.mxu0 %v1370
    %1624 = vmatmul.mubr.f32.gmra.mxu0 %v1228
    %v1625 = vpop.f32.mrf.mxu0
    %v1626 = vadd.f32 %v1351, %v1625
    %v1627 = vpop.f32.mrf.mxu0
    %v1628 = vadd.f32 %v1351, %v1627
    %1629 = vmatprep.mubr.f32.mxu0 %v1373
    %1630 = vmatmul.mubr.f32.gmra.mxu0 %v1230
    %v1631 = vpop.f32.mrf.mxu0
    %v1632 = vadd.f32 %v1356, %v1631
    %v1633 = vpop.f32.mrf.mxu0
    %v1634 = vadd.f32 %v1356, %v1633
    %1635 = vmatprep.mubr.f32.mxu0 %v1376
    %1636 = vmatmul.mubr.f32.gmra.mxu0 %v1232
    %v1637 = vpop.f32.mrf.mxu0
    %v1638 = vadd.f32 %v1361, %v1637
    %v1639 = vpop.f32.mrf.mxu0
    %v1640 = vadd.f32 %v1361, %v1639
    %1641 = vmatprep.mubr.f32.mxu0 %v1379
    %1642 = vmatmul.mubr.f32.gmra.mxu0 %v1234
    %v1643 = vpop.f32.mrf.mxu0
    %v1644 = vadd.f32 %v1366, %v1643
    %v1645 = vpop.f32.mrf.mxu0
    %v1646 = vadd.f32 %v1366, %v1645
    %1647 = vdwg.mxu0
    %v1648 = vtanh.pop %v1448
    %v1649 = vtanh.pop %v1450
    %v1650 = vtanh.pop %v1537
    %v1651 = vtanh.pop %v1539
    %v1652 = vtanh.pop %v1626
    %v1653 = vtanh.pop %v1628
    %v1654 = vtanh.pop %v1454
    %v1655 = vtanh.pop %v1456
    %v1656 = vtanh.pop %v1543
    %v1657 = vtanh.pop %v1545
    %v1658 = vtanh.pop %v1632
    %v1659 = vtanh.pop %v1634
    %v1660 = vtanh.pop %v1460
    %v1661 = vtanh.pop %v1462
    %v1662 = vtanh.pop %v1549
    %v1663 = vtanh.pop %v1551
    %v1664 = vtanh.pop %v1638
    %v1665 = vtanh.pop %v1640
    %v1666 = vtanh.pop %v1466
    %v1667 = vtanh.pop %v1468
    %v1668 = vtanh.pop %v1555
    %v1669 = vtanh.pop %v1557
    %v1670 = vtanh.pop %v1644
    %v1671 = vtanh.pop %v1646
    %1672 = vst [vmem:[%s5] sm:$0xff] %v1648
    %1673 = vst [vmem:[%s5 + $0x8] sm:$0xff] %v1649
    %vm1674 = vcmask 523264
    %1675 = vst.msk [vmem:[%s5 + $0x10] sm:$0xff] %vm1674, %v1650
    %1676 = vst [vmem:[%s5 + $0x18] sm:$0xff] %v1654
    %1677 = vst [vmem:[%s5 + $0x20] sm:$0xff] %v1655
    %1678 = vst.msk [vmem:[%s5 + $0x28] sm:$0xff] %vm1674, %v1656
    %1679 = vst [vmem:[%s5 + $0x30] sm:$0xff] %v1660
    %1680 = vst [vmem:[%s5 + $0x38] sm:$0xff] %v1661
    %1681 = vst.msk [vmem:[%s5 + $0x40] sm:$0xff] %vm1674, %v1662
    %1682 = vst [vmem:[%s5 + $0x48] sm:$0xff] %v1666
    %1683 = vst [vmem:[%s5 + $0x50] sm:$0xff] %v1667
    %1684 = vst.msk [vmem:[%s5 + $0x58] sm:$0xff] %vm1674, %v1668
    %s1685 = scalar_lea.vmem %s5, 96
    %1686 = vst [vmem:[%s1685] sm:$0xff] %v1651
    %1687 = vst [vmem:[%s1685 + $0x8] sm:$0xff] %v1652
    %1688 = vst.msk [vmem:[%s1685 + $0x10] sm:$0xff] %vm1674, %v1653
    %1689 = vst [vmem:[%s1685 + $0x18] sm:$0xff] %v1657
    %1690 = vst [vmem:[%s1685 + $0x20] sm:$0xff] %v1658
    %1691 = vst.msk [vmem:[%s1685 + $0x28] sm:$0xff] %vm1674, %v1659
    %1692 = vst [vmem:[%s1685 + $0x30] sm:$0xff] %v1663
    %1693 = vst [vmem:[%s1685 + $0x38] sm:$0xff] %v1664
    %1694 = vst.msk [vmem:[%s1685 + $0x40] sm:$0xff] %vm1674, %v1665
    %1695 = vst [vmem:[%s1685 + $0x48] sm:$0xff] %v1669
    %1696 = vst [vmem:[%s1685 + $0x50] sm:$0xff] %v1670
    %1697 = vst.msk [vmem:[%s1685 + $0x58] sm:$0xff] %vm1674, %v1671
    // Predicated region
    $region30: #{critic_forward.2} parent=1 // pred_check
      _
    $region31: #{critic_forward.2} parent=1 // pred_check_branch
      %1699 = sbr.rel (0) target = $region33
    $region32: #{critic_forward.2} parent=1 // pred_region
      _
    $region33: #{critic_forward.2} parent=1 // pred_fallthru
      _
    // Predicated region
    $region34: #{critic_forward.2} parent=1 // pred_check
      _
    $region35: #{critic_forward.2} parent=1 // pred_check_branch
      %1701 = sbr.rel (0) target = $region37
    $region36: #{critic_forward.2} parent=1 // pred_region
      _
    $region37: #{critic_forward.2} parent=1 // pred_fallthru
      _
    %1702 = vsyncpa [#allocation5], 1
    %1703 = vsyncpa [#allocation7], 1

// kernel: critic_forward.3
$region0: #{critic_forward.3}
  #allocation0 [shape = 'u32[]', space=smem, size = 0x4, offset = 0x4, fixed_abs, tag = 'smem constant byte address 0x4 - core index']
  #allocation1 [shape = 'u32[144,128]{1,0:T(1,128)}', space=vmem, size = 0x12000, scoped, tag = 'internal scratch']
  #allocation2 [shape = 'f32[2,256]{1,0:T(2,128)}', space=vmem, size = 0x800, scoped, tag = 'scratch operand']
  #allocation3 [shape = 'f32[1,1]{1,0:T(1,128)S(1)}', space=vmem, size = 0x200, scoped, tag = 'scoped memory for critic_forward.3']
  %s0 = inlined_call_operand.vmem [shape: f32[2,10240], index: 0, kind: input, shape index: {}]
  %s1 = inlined_call_operand.hbm [shape: f32[10240,256], index: 1, kind: input, shape index: {}]
  %s2 = inlined_call_operand.hbm [shape: f32[1,256], index: 2, kind: input, shape index: {}]
  %s3 = inlined_call_operand.hbm [shape: f32[1,256], index: 3, kind: input, shape index: {}]
  %s4 = inlined_call_operand.<no memory space> [shape: f32[1,1], index: 4, kind: input, shape index: {}]
  %s5 = inlined_call_operand.vmem [shape: f32[2,1], index: 5, kind: output, shape index: {}]
  %s6 = sld [smem:[#allocation0]]
  $region73: #{critic_forward.3} parent=0
    _
  %s8 = ssub.s32 1, %s6
  %s9 = scalar_select 0, %s8, %s6
  %v10 = vstv %s4
  %11 = vst [vmem:[#allocation3] sm:$0x1] %v10
  $region1: #{critic_forward.3} parent=0
    #allocation4 [shape = 'u8[10485760]{0}', space=vmem, size = 0xa00000, scoped, tag = 'input window, operand 1']
    #allocation5 [shape = 's32[2]{0}', space=sflag, size = 0x8, scoped, tag = 'scoped memory for critic_forward.3']
    #allocation6 [shape = 'u8[1024]{0}', space=vmem, size = 0x400, scoped, tag = 'input window, operand 2, single buffered']
    #allocation7 [shape = 's32[1]{0}', space=sflag, size = 0x4, scoped, tag = 'scoped memory for critic_forward.3']
    #allocation8 [shape = 'u8[1024]{0}', space=vmem, size = 0x400, scoped, tag = 'input window, operand 3, single buffered']
    %12 = vsyncpa [#allocation5], 0
    %s13 = scalar_lea.sflag [#allocation5], 1
    %14 = vsyncpa %s13, 0
    %15 = vsyncpa [#allocation7], 0
    loop: start=0, step=1, limit=4
    $region2: #{critic_forward.3} parent=1 // loop_pre_header
      _
    $region3: #{critic_forward.3} parent=1 // loop_header
      %s17 = sphi 0, %s21
      %p18 = scmp.ge.s32.totalorder %s17, 4
      %s27 = sphi 0, %s29
      %s30 = sphi 0, %s27
      %s31 = sphi 0, %s30
      %s47 = sphi 0, %s31
      %s53 = sphi 0, %s55
      %s56 = sphi 0, %s53
      %s57 = sphi 0, %s56
      %s73 = sphi 0, %s57
      %s77 = sphi 0, %s77
      %s79 = sphi 0, %s77
      %s80 = sphi 0, %s79
      %s94 = sphi 0, %s80
      %s98 = sphi 0, %s98
      %s100 = sphi 0, %s98
      %s101 = sphi 0, %s100
      %s115 = sphi 0, %s101
      %s119 = sphi 0, %s119
      %s121 = sphi 0, %s119
      %s122 = sphi 0, %s121
      %s136 = sphi 0, %s122
      %s140 = sphi 0, %s140
      %s142 = sphi 0, %s140
      %s143 = sphi 0, %s142
      %s157 = sphi 0, %s143
    $region4: #{critic_forward.3} parent=1 // loop_header_branch
      %20 = sbr.rel (%p18) target = $region8
    $region5: #{critic_forward.3} parent=1 // loop_body
      %s22 = ssub.s32 %s17, 1
      %s23 = ssub.s32 %s17, 2
      %s24 = sadd.s32 %s17, 1
      %s25 = ssub.s32 %s17, %s24
      %p26 = scmp.eq.s32.totalorder %s25, 0
      %s28 = sadd.s32 %s27, 1
      %s29 = scalar_select %p26, %s27, %s28
      %p32 = pneg %p26
      %p33 = scmp.eq.s32.totalorder %s17, 1
      %p34 = por %p32, %p33
      %p35 = scmp.ne.s32.totalorder %s27, %s30
      %p36 = scmp.eq.s32.totalorder %s17, 0
      %p37 = por %p35, %p36
      %p38 = scmp.ne.s32.totalorder %s27, %s30
      %p39 = scmp.eq.s32.totalorder %s22, 1
      %p40 = por %p38, %p39
      %p41 = scmp.ne.s32.totalorder %s30, %s31
      %p42 = scmp.eq.s32.totalorder %s22, 0
      %p43 = por %p41, %p42
      %p44 = scmp.ne.s32.totalorder %s30, %s31
      %p45 = scmp.eq.s32.totalorder %s23, 1
      %p46 = por %p44, %p45
      %p48 = scmp.ne.s32.totalorder %s31, %s47
      %p49 = scmp.eq.s32.totalorder %s23, 0
      %p50 = por %p48, %p49
      %s51 = ssub.s32 %s17, %s24
      %p52 = scmp.eq.s32.totalorder %s51, 0
      %s54 = sadd.s32 %s53, 1
      %s55 = scalar_select %p52, %s53, %s54
      %p58 = pneg %p52
      %p59 = scmp.eq.s32.totalorder %s17, 1
      %p60 = por %p58, %p59
      %p61 = scmp.ne.s32.totalorder %s53, %s56
      %p62 = scmp.eq.s32.totalorder %s17, 0
      %p63 = por %p61, %p62
      %p64 = scmp.ne.s32.totalorder %s53, %s56
      %p65 = scmp.eq.s32.totalorder %s22, 1
      %p66 = por %p64, %p65
      %p67 = scmp.ne.s32.totalorder %s56, %s57
      %p68 = scmp.eq.s32.totalorder %s22, 0
      %p69 = por %p67, %p68
      %p70 = scmp.ne.s32.totalorder %s56, %s57
      %p71 = scmp.eq.s32.totalorder %s23, 1
      %p72 = por %p70, %p71
      %p74 = scmp.ne.s32.totalorder %s57, %s73
      %p75 = scmp.eq.s32.totalorder %s23, 0
      %p76 = por %p74, %p75
      %s78 = sadd.s32 %s77, 1
      %p81 = scmp.eq.s32.totalorder %s17, 1
      %p82 = scmp.ne.s32.totalorder %s77, %s79
      %p83 = scmp.eq.s32.totalorder %s17, 0
      %p84 = por %p82, %p83
      %p85 = scmp.ne.s32.totalorder %s77, %s79
      %p86 = scmp.eq.s32.totalorder %s22, 1
      %p87 = por %p85, %p86
      %p88 = scmp.ne.s32.totalorder %s79, %s80
      %p89 = scmp.eq.s32.totalorder %s22, 0
      %p90 = por %p88, %p89
      %p91 = scmp.ne.s32.totalorder %s79, %s80
      %p92 = scmp.eq.s32.totalorder %s23, 1
      %p93 = por %p91, %p92
      %p95 = scmp.ne.s32.totalorder %s80, %s94
      %p96 = scmp.eq.s32.totalorder %s23, 0
      %p97 = por %p95, %p96
      %s99 = sadd.s32 %s98, 1
      %p102 = scmp.eq.s32.totalorder %s17, 1
      %p103 = scmp.ne.s32.totalorder %s98, %s100
      %p104 = scmp.eq.s32.totalorder %s17, 0
      %p105 = por %p103, %p104
      %p106 = scmp.ne.s32.totalorder %s98, %s100
      %p107 = scmp.eq.s32.totalorder %s22, 1
      %p108 = por %p106, %p107
      %p109 = scmp.ne.s32.totalorder %s100, %s101
      %p110 = scmp.eq.s32.totalorder %s22, 0
      %p111 = por %p109, %p110
      %p112 = scmp.ne.s32.totalorder %s100, %s101
      %p113 = scmp.eq.s32.totalorder %s23, 1
      %p114 = por %p112, %p113
      %p116 = scmp.ne.s32.totalorder %s101, %s115
      %p117 = scmp.eq.s32.totalorder %s23, 0
      %p118 = por %p116, %p117
      %s120 = sadd.s32 %s119, 1
      %p123 = scmp.eq.s32.totalorder %s17, 1
      %p124 = scmp.ne.s32.totalorder %s119, %s121
      %p125 = scmp.eq.s32.totalorder %s17, 0
      %p126 = por %p124, %p125
      %p127 = scmp.ne.s32.totalorder %s119, %s121
      %p128 = scmp.eq.s32.totalorder %s22, 1
      %p129 = por %p127, %p128
      %p130 = scmp.ne.s32.totalorder %s121, %s122
      %p131 = scmp.eq.s32.totalorder %s22, 0
      %p132 = por %p130, %p131
      %p133 = scmp.ne.s32.totalorder %s121, %s122
      %p134 = scmp.eq.s32.totalorder %s23, 1
      %p135 = por %p133, %p134
      %p137 = scmp.ne.s32.totalorder %s122, %s136
      %p138 = scmp.eq.s32.totalorder %s23, 0
      %p139 = por %p137, %p138
      %s141 = sadd.s32 %s140, 1
      %p144 = scmp.eq.s32.totalorder %s17, 1
      %p145 = scmp.ne.s32.totalorder %s140, %s142
      %p146 = scmp.eq.s32.totalorder %s17, 0
      %p147 = por %p145, %p146
      %p148 = scmp.ne.s32.totalorder %s140, %s142
      %p149 = scmp.eq.s32.totalorder %s22, 1
      %p150 = por %p148, %p149
      %p151 = scmp.ne.s32.totalorder %s142, %s143
      %p152 = scmp.eq.s32.totalorder %s22, 0
      %p153 = por %p151, %p152
      %p154 = scmp.ne.s32.totalorder %s142, %s143
      %p155 = scmp.eq.s32.totalorder %s23, 1
      %p156 = por %p154, %p155
      %p158 = scmp.ne.s32.totalorder %s143, %s157
      %p159 = scmp.eq.s32.totalorder %s23, 0
      %p160 = por %p158, %p159
      %p161 = scmp.le.s32.totalorder 1, %s17
      %p162 = scmp.lt.s32.totalorder %s17, 3
      %p163 = pnand %p161, %p162
      %p164 = pneg %p163
      // Predicated region
      $region9: #{critic_forward.3} parent=5 // pred_check
        _
      $region10: #{critic_forward.3} parent=5 // pred_check_branch
        %166 = sbr.rel (%p163) target = $region12
      $region11: #{critic_forward.3} parent=5 // pred_region
        %s167 = ssub.s32 %s17, 1
        // Predicated region
        $region13: #{critic_forward.3} parent=11 // pred_check
          %p168 = pneg %p90
        $region14: #{critic_forward.3} parent=11 // pred_check_branch
          %170 = sbr.rel (%p168) target = $region16
        $region15: #{critic_forward.3} parent=11 // pred_region
          %s172 = ssub.s32 32, 32
          %173 = vsyncadd [#allocation7], %s172
          %s175 = sshll.u32 [#allocation6], 4
          %s176 = int_to_ptr.vmem [resolvable:$true] %s175
          %178 = dma.hbm_to_vmem [thread:$0]  %s2, 32, %s176, [#allocation7]
        $region16: #{critic_forward.3} parent=11 // pred_fallthru
          _
        // Predicated region
        $region17: #{critic_forward.3} parent=11 // pred_check
          %p179 = pneg %p111
        $region18: #{critic_forward.3} parent=11 // pred_check_branch
          %181 = sbr.rel (%p179) target = $region20
        $region19: #{critic_forward.3} parent=11 // pred_region
          %s183 = ssub.s32 32, 32
          %184 = vsyncadd [#allocation7], %s183
          %s186 = sshll.u32 [#allocation8], 4
          %s187 = int_to_ptr.vmem [resolvable:$true] %s186
          %189 = dma.hbm_to_vmem [thread:$0]  %s3, 32, %s187, [#allocation7]
        $region20: #{critic_forward.3} parent=11 // pred_fallthru
          _
        // Predicated region
        $region21: #{critic_forward.3} parent=11 // pred_check
          %p190 = pneg %p132
        $region22: #{critic_forward.3} parent=11 // pred_check_branch
          %192 = sbr.rel (%p190) target = $region24
        $region23: #{critic_forward.3} parent=11 // pred_region
          _
        $region24: #{critic_forward.3} parent=11 // pred_fallthru
          _
      $region12: #{critic_forward.3} parent=5 // pred_fallthru
        _
      %p193 = scmp.lt.s32.totalorder %s17, 2
      // Predicated region
      $region25: #{critic_forward.3} parent=5 // pred_check
        %p194 = pneg %p193
      $region26: #{critic_forward.3} parent=5 // pred_check_branch
        %196 = sbr.rel (%p194) target = $region28
      $region27: #{critic_forward.3} parent=5 // pred_region
        // Predicated region
        $region29: #{critic_forward.3} parent=27 // pred_check
          %p197 = pneg %p37
        $region30: #{critic_forward.3} parent=27 // pred_check_branch
          %199 = sbr.rel (%p197) target = $region32
        $region31: #{critic_forward.3} parent=27 // pred_region
          %s200 = smul.u32 40, %s17
          %p201 = scmp.lt.s32.totalorder %s200, 79
          %s202 = scalar_select %p201, %s200, 79
          %s203 = smul.addr %s202, 2
          %s204 = scalar_lea.vmem %s0, %s203
          %s205 = smul.u32 40, %s17
        $region32: #{critic_forward.3} parent=27 // pred_fallthru
          _
        // Predicated region
        $region33: #{critic_forward.3} parent=27 // pred_check
          %p206 = pneg %p63
        $region34: #{critic_forward.3} parent=27 // pred_check_branch
          %208 = sbr.rel (%p206) target = $region36
        $region35: #{critic_forward.3} parent=27 // pred_region
          %s209 = sand.u32 %s53, 1
          %s210 = scalar_lea.sflag [#allocation5], %s209
          %s211 = sand.u32 %s53, 1
          %s212 = smul.addr %s211, 10240
          %s213 = scalar_lea.vmem [#allocation4], %s212
          %s214 = smul.u32 640, %s17
          %s216 = ssub.s32 163840, 163840
          %217 = vsyncadd %s210, %s216
          %s218 = smul.addr %s214, 2
          %s219 = smul.addr %s218, 128
          %s220 = scalar_lea.hbm %s1, %s219
          %s221 = sshll.u32 %s213, 4
          %s222 = int_to_ptr.vmem [resolvable:$true] %s221
          %227 = dma.hbm_to_vmem [thread:$0]  %s220, 163840, %s222, %s210, 256, 256, 16
        $region36: #{critic_forward.3} parent=27 // pred_fallthru
          _
      $region28: #{critic_forward.3} parent=5 // pred_fallthru
        _
      %p228 = scmp.le.s32.totalorder 1, %s17
      %p229 = scmp.lt.s32.totalorder %s17, 3
      %p230 = pnand %p228, %p229
      %p231 = pneg %p230
      // Predicated region
      $region37: #{critic_forward.3} parent=5 // pred_check
        _
      $region38: #{critic_forward.3} parent=5 // pred_check_branch
        %233 = sbr.rel (%p230) target = $region40
      $region39: #{critic_forward.3} parent=5 // pred_region
        %s234 = ssub.s32 %s17, 1
        %s235 = sand.u32 %s56, 1
        %s236 = scalar_lea.sflag [#allocation5], %s235
        %s237 = sand.u32 %s56, 1
        %s238 = smul.addr %s237, 10240
        %s239 = scalar_lea.vmem [#allocation4], %s238
        // Predicated region
        $region41: #{critic_forward.3} parent=39 // pred_check
          %p240 = pneg %p69
        $region42: #{critic_forward.3} parent=39 // pred_check_branch
          %242 = sbr.rel (%p240) target = $region44
        $region43: #{critic_forward.3} parent=39 // pred_region
          %243 = dma.done %s236, 163840
        $region44: #{critic_forward.3} parent=39 // pred_fallthru
          _
        // Predicated region
        $region45: #{critic_forward.3} parent=39 // pred_check
          %p244 = pneg %p90
        $region46: #{critic_forward.3} parent=39 // pred_check_branch
          %246 = sbr.rel (%p244) target = $region48
        $region47: #{critic_forward.3} parent=39 // pred_region
          %247 = dma.done [#allocation7], 32
        $region48: #{critic_forward.3} parent=39 // pred_fallthru
          _
        // Predicated region
        $region49: #{critic_forward.3} parent=39 // pred_check
          %p248 = pneg %p111
        $region50: #{critic_forward.3} parent=39 // pred_check_branch
          %250 = sbr.rel (%p248) target = $region52
        $region51: #{critic_forward.3} parent=39 // pred_region
          %251 = dma.done [#allocation7], 32
        $region52: #{critic_forward.3} parent=39 // pred_fallthru
          _
        %s252 = smul.u32 40, %s22
        %p253 = scmp.lt.s32.totalorder %s252, 79
        %s254 = scalar_select %p253, %s252, 79
        %s255 = smul.addr %s254, 2
        %s256 = scalar_lea.vmem %s0, %s255
        %p257 = pneg %p43
        %p258 = pneg %p40
        %s259 = sand.u32 %s56, 1
        %s260 = scalar_lea.sflag [#allocation5], %s259
        %s261 = sand.u32 %s56, 1
        %s262 = smul.addr %s261, 10240
        %s263 = scalar_lea.vmem [#allocation4], %s262
        %p264 = pneg %p69
        %p265 = pneg %p66
        %p266 = pneg %p90
        %p267 = pneg %p87
        %p268 = pneg %p111
        %p269 = pneg %p108
        %p270 = pneg %p132
        %p271 = pneg %p129
        %p272 = pneg %p153
        %p273 = pneg %p150
        %s274 = smul.u32 40, %s22
        %p275 = scmp.lt.s32.totalorder %s274, 79
        %s276 = scalar_select %p275, %s274, 79
        %s277 = smul.addr %s276, 2
        %s278 = scalar_lea.vmem %s0, %s277
        %s279 = smul.u32 40, %s22
        %s280 = smul.u32 640, %s22
        %p281 = scmp.eq.s32.totalorder %s22, 0
        // Predicated region
        $region53: #{critic_forward.3} parent=39 // pred_check
          %p282 = pneg %p281
        $region54: #{critic_forward.3} parent=39 // pred_check_branch
          %284 = sbr.rel (%p282) target = $region56
        $region55: #{critic_forward.3} parent=39 // pred_region
          %285 = vst [vmem:[#allocation2] sm:$0xf] 0.0
        $region56: #{critic_forward.3} parent=39 // pred_fallthru
          _
        %v286 = vld [vmem:[#allocation2] sm:$0xf]
        %v287 = vld [vmem:[%s278] sm:$0xff]
        %v288 = vld [vmem:[%s278 + $0x8] sm:$0xff]
        %v289 = vld [vmem:[%s278 + $0x10] sm:$0xff]
        %v290 = vld [vmem:[%s278 + $0x18] sm:$0xff]
        %v291 = vld [vmem:[%s278 + $0x20] sm:$0xff]
        %v292 = vld [vmem:[%s278 + $0x28] sm:$0xff]
        %v293 = vld [vmem:[%s278 + $0x30] sm:$0xff]
        %v294 = vld [vmem:[%s278 + $0x38] sm:$0xff]
        %v295 = vld [vmem:[%s278 + $0x40] sm:$0xff]
        %v296 = vld [vmem:[%s278 + $0x48] sm:$0xff]
        %v297 = vld [vmem:[%s239] sm:$0xff]
        %v298 = vld [vmem:[%s239 + $0x8] sm:$0xff]
        %v299 = vld [vmem:[%s239 + $0x10] sm:$0xff]
        %v300 = vld [vmem:[%s239 + $0x18] sm:$0xff]
        %v301 = vld [vmem:[%s239 + $0x20] sm:$0xff]
        %v302 = vld [vmem:[%s239 + $0x28] sm:$0xff]
        %v303 = vld [vmem:[%s239 + $0x30] sm:$0xff]
        %v304 = vld [vmem:[%s239 + $0x38] sm:$0xff]
        %v305 = vld [vmem:[%s239 + $0x40] sm:$0xff]
        %v306 = vld [vmem:[%s239 + $0x48] sm:$0xff]
        %v307 = vld [vmem:[%s239 + $0x50] sm:$0xff]
        %v308 = vld [vmem:[%s239 + $0x58] sm:$0xff]
        %v309 = vld [vmem:[%s239 + $0x60] sm:$0xff]
        %v310 = vld [vmem:[%s239 + $0x68] sm:$0xff]
        %v311 = vld [vmem:[%s239 + $0x70] sm:$0xff]
        %v312 = vld [vmem:[%s239 + $0x78] sm:$0xff]
        %v313 = vld [vmem:[%s239 + $0x80] sm:$0xff]
        %v314 = vld [vmem:[%s239 + $0x88] sm:$0xff]
        %v315 = vld [vmem:[%s239 + $0x90] sm:$0xff]
        %v316 = vld [vmem:[%s239 + $0x98] sm:$0xff]
        %v317 = vld [vmem:[%s239 + $0xa0] sm:$0xff]
        %v318 = vld [vmem:[%s239 + $0xa8] sm:$0xff]
        %v319 = vld [vmem:[%s239 + $0xb0] sm:$0xff]
        %v320 = vld [vmem:[%s239 + $0xb8] sm:$0xff]
        %v321 = vld [vmem:[%s239 + $0xc0] sm:$0xff]
        %v322 = vld [vmem:[%s239 + $0xc8] sm:$0xff]
        %v323 = vld [vmem:[%s239 + $0xd0] sm:$0xff]
        %v324 = vld [vmem:[%s239 + $0xd8] sm:$0xff]
        %v325 = vld [vmem:[%s239 + $0xe0] sm:$0xff]
        %v326 = vld [vmem:[%s239 + $0xe8] sm:$0xff]
        %v327 = vld [vmem:[%s239 + $0xf0] sm:$0xff]
        %v328 = vld [vmem:[%s239 + $0xf8] sm:$0xff]
        %v329 = vld [vmem:[%s239 + $0x100] sm:$0xff]
        %v330 = vld [vmem:[%s239 + $0x108] sm:$0xff]
        %v331 = vld [vmem:[%s239 + $0x110] sm:$0xff]
        %v332 = vld [vmem:[%s239 + $0x118] sm:$0xff]
        %v333 = vld [vmem:[%s239 + $0x120] sm:$0xff]
        %v334 = vld [vmem:[%s239 + $0x128] sm:$0xff]
        %v335 = vld [vmem:[%s239 + $0x130] sm:$0xff]
        %v336 = vld [vmem:[%s239 + $0x138] sm:$0xff]
        %v337 = vld [vmem:[%s239 + $0x140] sm:$0xff]
        %v338 = vld [vmem:[%s239 + $0x148] sm:$0xff]
        %v339 = vld [vmem:[%s239 + $0x150] sm:$0xff]
        %v340 = vld [vmem:[%s239 + $0x158] sm:$0xff]
        %v341 = vld [vmem:[%s239 + $0x160] sm:$0xff]
        %v342 = vld [vmem:[%s239 + $0x168] sm:$0xff]
        %v343 = vld [vmem:[%s239 + $0x170] sm:$0xff]
        %v344 = vld [vmem:[%s239 + $0x178] sm:$0xff]
        %v345 = vld [vmem:[%s239 + $0x180] sm:$0xff]
        %v346 = vld [vmem:[%s239 + $0x188] sm:$0xff]
        %v347 = vld [vmem:[%s239 + $0x190] sm:$0xff]
        %v348 = vld [vmem:[%s239 + $0x198] sm:$0xff]
        %v349 = vld [vmem:[%s239 + $0x1a0] sm:$0xff]
        %v350 = vld [vmem:[%s239 + $0x1a8] sm:$0xff]
        %v351 = vld [vmem:[%s239 + $0x1b0] sm:$0xff]
        %v352 = vld [vmem:[%s239 + $0x1b8] sm:$0xff]
        %v353 = vld [vmem:[%s239 + $0x1c0] sm:$0xff]
        %v354 = vld [vmem:[%s239 + $0x1c8] sm:$0xff]
        %v355 = vld [vmem:[%s239 + $0x1d0] sm:$0xff]
        %v356 = vld [vmem:[%s239 + $0x1d8] sm:$0xff]
        %v357 = vld [vmem:[%s239 + $0x1e0] sm:$0xff]
        %v358 = vld [vmem:[%s239 + $0x1e8] sm:$0xff]
        %v359 = vld [vmem:[%s239 + $0x1f0] sm:$0xff]
        %v360 = vld [vmem:[%s239 + $0x1f8] sm:$0xff]
        %v361 = vld [vmem:[%s239 + $0x200] sm:$0xff]
        %v362 = vld [vmem:[%s239 + $0x208] sm:$0xff]
        %v363 = vld [vmem:[%s239 + $0x210] sm:$0xff]
        %v364 = vld [vmem:[%s239 + $0x218] sm:$0xff]
        %v365 = vld [vmem:[%s239 + $0x220] sm:$0xff]
        %v366 = vld [vmem:[%s239 + $0x228] sm:$0xff]
        %v367 = vld [vmem:[%s239 + $0x230] sm:$0xff]
        %v368 = vld [vmem:[%s239 + $0x238] sm:$0xff]
        %v369 = vld [vmem:[%s239 + $0x240] sm:$0xff]
        %v370 = vld [vmem:[%s239 + $0x248] sm:$0xff]
        %v371 = vld [vmem:[%s239 + $0x250] sm:$0xff]
        %v372 = vld [vmem:[%s239 + $0x258] sm:$0xff]
        %v373 = vld [vmem:[%s239 + $0x260] sm:$0xff]
        %v374 = vld [vmem:[%s239 + $0x268] sm:$0xff]
        %v375 = vld [vmem:[%s239 + $0x270] sm:$0xff]
        %v376 = vld [vmem:[%s239 + $0x278] sm:$0xff]
        %v377 = vld [vmem:[%s239 + $0x280] sm:$0xff]
        %v378 = vld [vmem:[%s239 + $0x288] sm:$0xff]
        %v379 = vld [vmem:[%s239 + $0x290] sm:$0xff]
        %v380 = vld [vmem:[%s239 + $0x298] sm:$0xff]
        %v381 = vld [vmem:[%s239 + $0x2a0] sm:$0xff]
        %v382 = vld [vmem:[%s239 + $0x2a8] sm:$0xff]
        %v383 = vld [vmem:[%s239 + $0x2b0] sm:$0xff]
        %v384 = vld [vmem:[%s239 + $0x2b8] sm:$0xff]
        %v385 = vld [vmem:[%s239 + $0x2c0] sm:$0xff]
        %v386 = vld [vmem:[%s239 + $0x2c8] sm:$0xff]
        %v387 = vld [vmem:[%s239 + $0x2d0] sm:$0xff]
        %v388 = vld [vmem:[%s239 + $0x2d8] sm:$0xff]
        %v389 = vld [vmem:[%s239 + $0x2e0] sm:$0xff]
        %v390 = vld [vmem:[%s239 + $0x2e8] sm:$0xff]
        %v391 = vld [vmem:[%s239 + $0x2f0] sm:$0xff]
        %v392 = vld [vmem:[%s239 + $0x2f8] sm:$0xff]
        %v393 = vld [vmem:[%s239 + $0x300] sm:$0xff]
        %v394 = vld [vmem:[%s239 + $0x308] sm:$0xff]
        %v395 = vld [vmem:[%s239 + $0x310] sm:$0xff]
        %v396 = vld [vmem:[%s239 + $0x318] sm:$0xff]
        %v397 = vld [vmem:[%s239 + $0x320] sm:$0xff]
        %v398 = vld [vmem:[%s239 + $0x328] sm:$0xff]
        %v399 = vld [vmem:[%s239 + $0x330] sm:$0xff]
        %v400 = vld [vmem:[%s239 + $0x338] sm:$0xff]
        %v401 = vld [vmem:[%s239 + $0x340] sm:$0xff]
        %v402 = vld [vmem:[%s239 + $0x348] sm:$0xff]
        %v403 = vld [vmem:[%s239 + $0x350] sm:$0xff]
        %v404 = vld [vmem:[%s239 + $0x358] sm:$0xff]
        %v405 = vld [vmem:[%s239 + $0x360] sm:$0xff]
        %v406 = vld [vmem:[%s239 + $0x368] sm:$0xff]
        %v407 = vld [vmem:[%s239 + $0x370] sm:$0xff]
        %v408 = vld [vmem:[%s239 + $0x378] sm:$0xff]
        %v409 = vld [vmem:[%s239 + $0x380] sm:$0xff]
        %v410 = vld [vmem:[%s239 + $0x388] sm:$0xff]
        %v411 = vld [vmem:[%s239 + $0x390] sm:$0xff]
        %v412 = vld [vmem:[%s239 + $0x398] sm:$0xff]
        %v413 = vld [vmem:[%s239 + $0x3a0] sm:$0xff]
        %v414 = vld [vmem:[%s239 + $0x3a8] sm:$0xff]
        %v415 = vld [vmem:[%s239 + $0x3b0] sm:$0xff]
        %v416 = vld [vmem:[%s239 + $0x3b8] sm:$0xff]
        %v417 = vld [vmem:[%s239 + $0x3c0] sm:$0xff]
        %v418 = vld [vmem:[%s239 + $0x3c8] sm:$0xff]
        %v419 = vld [vmem:[%s239 + $0x3d0] sm:$0xff]
        %v420 = vld [vmem:[%s239 + $0x3d8] sm:$0xff]
        %v421 = vld [vmem:[%s239 + $0x3e0] sm:$0xff]
        %v422 = vld [vmem:[%s239 + $0x3e8] sm:$0xff]
        %v423 = vld [vmem:[%s239 + $0x3f0] sm:$0xff]
        %v424 = vld [vmem:[%s239 + $0x3f8] sm:$0xff]
        %v425 = vld [vmem:[%s239 + $0x400] sm:$0xff]
        %v426 = vld [vmem:[%s239 + $0x408] sm:$0xff]
        %v427 = vld [vmem:[%s239 + $0x410] sm:$0xff]
        %v428 = vld [vmem:[%s239 + $0x418] sm:$0xff]
        %v429 = vld [vmem:[%s239 + $0x420] sm:$0xff]
        %v430 = vld [vmem:[%s239 + $0x428] sm:$0xff]
        %v431 = vld [vmem:[%s239 + $0x430] sm:$0xff]
        %v432 = vld [vmem:[%s239 + $0x438] sm:$0xff]
        %v433 = vld [vmem:[%s239 + $0x440] sm:$0xff]
        %v434 = vld [vmem:[%s239 + $0x448] sm:$0xff]
        %v435 = vld [vmem:[%s239 + $0x450] sm:$0xff]
        %v436 = vld [vmem:[%s239 + $0x458] sm:$0xff]
        %v437 = vld [vmem:[%s239 + $0x460] sm:$0xff]
        %v438 = vld [vmem:[%s239 + $0x468] sm:$0xff]
        %v439 = vld [vmem:[%s239 + $0x470] sm:$0xff]
        %v440 = vld [vmem:[%s239 + $0x478] sm:$0xff]
        %v441 = vld [vmem:[%s239 + $0x480] sm:$0xff]
        %v442 = vld [vmem:[%s239 + $0x488] sm:$0xff]
        %v443 = vld [vmem:[%s239 + $0x490] sm:$0xff]
        %v444 = vld [vmem:[%s239 + $0x498] sm:$0xff]
        %v445 = vld [vmem:[%s239 + $0x4a0] sm:$0xff]
        %v446 = vld [vmem:[%s239 + $0x4a8] sm:$0xff]
        %v447 = vld [vmem:[%s239 + $0x4b0] sm:$0xff]
        %v448 = vld [vmem:[%s239 + $0x4b8] sm:$0xff]
        %v449 = vld [vmem:[%s239 + $0x4c0] sm:$0xff]
        %v450 = vld [vmem:[%s239 + $0x4c8] sm:$0xff]
        %v451 = vld [vmem:[%s239 + $0x4d0] sm:$0xff]
        %v452 = vld [vmem:[%s239 + $0x4d8] sm:$0xff]
        %v453 = vld [vmem:[%s239 + $0x4e0] sm:$0xff]
        %v454 = vld [vmem:[%s239 + $0x4e8] sm:$0xff]
        %v455 = vld [vmem:[%s239 + $0x4f0] sm:$0xff]
        %v456 = vld [vmem:[%s239 + $0x4f8] sm:$0xff]
        %v457 = vld [vmem:[%s239 + $0x500] sm:$0xff]
        %v458 = vld [vmem:[%s239 + $0x508] sm:$0xff]
        %v459 = vld [vmem:[%s239 + $0x510] sm:$0xff]
        %v460 = vld [vmem:[%s239 + $0x518] sm:$0xff]
        %v461 = vld [vmem:[%s239 + $0x520] sm:$0xff]
        %v462 = vld [vmem:[%s239 + $0x528] sm:$0xff]
        %v463 = vld [vmem:[%s239 + $0x530] sm:$0xff]
        %v464 = vld [vmem:[%s239 + $0x538] sm:$0xff]
        %v465 = vld [vmem:[%s239 + $0x540] sm:$0xff]
        %v466 = vld [vmem:[%s239 + $0x548] sm:$0xff]
        %v467 = vld [vmem:[%s239 + $0x550] sm:$0xff]
        %v468 = vld [vmem:[%s239 + $0x558] sm:$0xff]
        %v469 = vld [vmem:[%s239 + $0x560] sm:$0xff]
        %v470 = vld [vmem:[%s239 + $0x568] sm:$0xff]
        %v471 = vld [vmem:[%s239 + $0x570] sm:$0xff]
        %v472 = vld [vmem:[%s239 + $0x578] sm:$0xff]
        %v473 = vld [vmem:[%s239 + $0x580] sm:$0xff]
        %v474 = vld [vmem:[%s239 + $0x588] sm:$0xff]
        %v475 = vld [vmem:[%s239 + $0x590] sm:$0xff]
        %v476 = vld [vmem:[%s239 + $0x598] sm:$0xff]
        %v477 = vld [vmem:[%s239 + $0x5a0] sm:$0xff]
        %v478 = vld [vmem:[%s239 + $0x5a8] sm:$0xff]
        %v479 = vld [vmem:[%s239 + $0x5b0] sm:$0xff]
        %v480 = vld [vmem:[%s239 + $0x5b8] sm:$0xff]
        %v481 = vld [vmem:[%s239 + $0x5c0] sm:$0xff]
        %v482 = vld [vmem:[%s239 + $0x5c8] sm:$0xff]
        %v483 = vld [vmem:[%s239 + $0x5d0] sm:$0xff]
        %v484 = vld [vmem:[%s239 + $0x5d8] sm:$0xff]
        %v485 = vld [vmem:[%s239 + $0x5e0] sm:$0xff]
        %v486 = vld [vmem:[%s239 + $0x5e8] sm:$0xff]
        %v487 = vld [vmem:[%s239 + $0x5f0] sm:$0xff]
        %v488 = vld [vmem:[%s239 + $0x5f8] sm:$0xff]
        %v489 = vld [vmem:[%s239 + $0x600] sm:$0xff]
        %v490 = vld [vmem:[%s239 + $0x608] sm:$0xff]
        %v491 = vld [vmem:[%s239 + $0x610] sm:$0xff]
        %v492 = vld [vmem:[%s239 + $0x618] sm:$0xff]
        %v493 = vld [vmem:[%s239 + $0x620] sm:$0xff]
        %v494 = vld [vmem:[%s239 + $0x628] sm:$0xff]
        %v495 = vld [vmem:[%s239 + $0x630] sm:$0xff]
        %v496 = vld [vmem:[%s239 + $0x638] sm:$0xff]
        %v497 = vld [vmem:[%s239 + $0x640] sm:$0xff]
        %v498 = vld [vmem:[%s239 + $0x648] sm:$0xff]
        %v499 = vld [vmem:[%s239 + $0x650] sm:$0xff]
        %v500 = vld [vmem:[%s239 + $0x658] sm:$0xff]
        %v501 = vld [vmem:[%s239 + $0x660] sm:$0xff]
        %v502 = vld [vmem:[%s239 + $0x668] sm:$0xff]
        %v503 = vld [vmem:[%s239 + $0x670] sm:$0xff]
        %v504 = vld [vmem:[%s239 + $0x678] sm:$0xff]
        %v505 = vld [vmem:[%s239 + $0x680] sm:$0xff]
        %v506 = vld [vmem:[%s239 + $0x688] sm:$0xff]
        %v507 = vld [vmem:[%s239 + $0x690] sm:$0xff]
        %v508 = vld [vmem:[%s239 + $0x698] sm:$0xff]
        %v509 = vld [vmem:[%s239 + $0x6a0] sm:$0xff]
        %v510 = vld [vmem:[%s239 + $0x6a8] sm:$0xff]
        %v511 = vld [vmem:[%s239 + $0x6b0] sm:$0xff]
        %v512 = vld [vmem:[%s239 + $0x6b8] sm:$0xff]
        %v513 = vld [vmem:[%s239 + $0x6c0] sm:$0xff]
        %v514 = vld [vmem:[%s239 + $0x6c8] sm:$0xff]
        %v515 = vld [vmem:[%s239 + $0x6d0] sm:$0xff]
        %v516 = vld [vmem:[%s239 + $0x6d8] sm:$0xff]
        %v517 = vld [vmem:[%s239 + $0x6e0] sm:$0xff]
        %v518 = vld [vmem:[%s239 + $0x6e8] sm:$0xff]
        %v519 = vld [vmem:[%s239 + $0x6f0] sm:$0xff]
        %v520 = vld [vmem:[%s239 + $0x6f8] sm:$0xff]
        %v521 = vld [vmem:[%s239 + $0x700] sm:$0xff]
        %v522 = vld [vmem:[%s239 + $0x708] sm:$0xff]
        %v523 = vld [vmem:[%s239 + $0x710] sm:$0xff]
        %v524 = vld [vmem:[%s239 + $0x718] sm:$0xff]
        %v525 = vld [vmem:[%s239 + $0x720] sm:$0xff]
        %v526 = vld [vmem:[%s239 + $0x728] sm:$0xff]
        %v527 = vld [vmem:[%s239 + $0x730] sm:$0xff]
        %v528 = vld [vmem:[%s239 + $0x738] sm:$0xff]
        %v529 = vld [vmem:[%s239 + $0x740] sm:$0xff]
        %v530 = vld [vmem:[%s239 + $0x748] sm:$0xff]
        %v531 = vld [vmem:[%s239 + $0x750] sm:$0xff]
        %v532 = vld [vmem:[%s239 + $0x758] sm:$0xff]
        %v533 = vld [vmem:[%s239 + $0x760] sm:$0xff]
        %v534 = vld [vmem:[%s239 + $0x768] sm:$0xff]
        %v535 = vld [vmem:[%s239 + $0x770] sm:$0xff]
        %v536 = vld [vmem:[%s239 + $0x778] sm:$0xff]
        %v537 = vld [vmem:[%s239 + $0x780] sm:$0xff]
        %v538 = vld [vmem:[%s239 + $0x788] sm:$0xff]
        %v539 = vld [vmem:[%s239 + $0x790] sm:$0xff]
        %v540 = vld [vmem:[%s239 + $0x798] sm:$0xff]
        %v541 = vld [vmem:[%s239 + $0x7a0] sm:$0xff]
        %v542 = vld [vmem:[%s239 + $0x7a8] sm:$0xff]
        %v543 = vld [vmem:[%s239 + $0x7b0] sm:$0xff]
        %v544 = vld [vmem:[%s239 + $0x7b8] sm:$0xff]
        %v545 = vld [vmem:[%s239 + $0x7c0] sm:$0xff]
        %v546 = vld [vmem:[%s239 + $0x7c8] sm:$0xff]
        %v547 = vld [vmem:[%s239 + $0x7d0] sm:$0xff]
        %v548 = vld [vmem:[%s239 + $0x7d8] sm:$0xff]
        %v549 = vld [vmem:[%s239 + $0x7e0] sm:$0xff]
        %v550 = vld [vmem:[%s239 + $0x7e8] sm:$0xff]
        %v551 = vld [vmem:[%s239 + $0x7f0] sm:$0xff]
        %v552 = vld [vmem:[%s239 + $0x7f8] sm:$0xff]
        %v553 = vld [vmem:[%s239 + $0x800] sm:$0xff]
        %v554 = vld [vmem:[%s239 + $0x808] sm:$0xff]
        %v555 = vld [vmem:[%s239 + $0x810] sm:$0xff]
        %v556 = vld [vmem:[%s239 + $0x818] sm:$0xff]
        %v557 = vld [vmem:[%s239 + $0x820] sm:$0xff]
        %v558 = vld [vmem:[%s239 + $0x828] sm:$0xff]
        %v559 = vld [vmem:[%s239 + $0x830] sm:$0xff]
        %v560 = vld [vmem:[%s239 + $0x838] sm:$0xff]
        %v561 = vld [vmem:[%s239 + $0x840] sm:$0xff]
        %v562 = vld [vmem:[%s239 + $0x848] sm:$0xff]
        %v563 = vld [vmem:[%s239 + $0x850] sm:$0xff]
        %v564 = vld [vmem:[%s239 + $0x858] sm:$0xff]
        %v565 = vld [vmem:[%s239 + $0x860] sm:$0xff]
        %v566 = vld [vmem:[%s239 + $0x868] sm:$0xff]
        %v567 = vld [vmem:[%s239 + $0x870] sm:$0xff]
        %v568 = vld [vmem:[%s239 + $0x878] sm:$0xff]
        %v569 = vld [vmem:[%s239 + $0x880] sm:$0xff]
        %v570 = vld [vmem:[%s239 + $0x888] sm:$0xff]
        %v571 = vld [vmem:[%s239 + $0x890] sm:$0xff]
        %v572 = vld [vmem:[%s239 + $0x898] sm:$0xff]
        %v573 = vld [vmem:[%s239 + $0x8a0] sm:$0xff]
        %v574 = vld [vmem:[%s239 + $0x8a8] sm:$0xff]
        %v575 = vld [vmem:[%s239 + $0x8b0] sm:$0xff]
        %v576 = vld [vmem:[%s239 + $0x8b8] sm:$0xff]
        %v577 = vld [vmem:[%s239 + $0x8c0] sm:$0xff]
        %v578 = vld [vmem:[%s239 + $0x8c8] sm:$0xff]
        %v579 = vld [vmem:[%s239 + $0x8d0] sm:$0xff]
        %v580 = vld [vmem:[%s239 + $0x8d8] sm:$0xff]
        %v581 = vld [vmem:[%s239 + $0x8e0] sm:$0xff]
        %v582 = vld [vmem:[%s239 + $0x8e8] sm:$0xff]
        %v583 = vld [vmem:[%s239 + $0x8f0] sm:$0xff]
        %v584 = vld [vmem:[%s239 + $0x8f8] sm:$0xff]
        %v585 = vld [vmem:[%s239 + $0x900] sm:$0xff]
        %v586 = vld [vmem:[%s239 + $0x908] sm:$0xff]
        %v587 = vld [vmem:[%s239 + $0x910] sm:$0xff]
        %v588 = vld [vmem:[%s239 + $0x918] sm:$0xff]
        %v589 = vld [vmem:[%s239 + $0x920] sm:$0xff]
        %v590 = vld [vmem:[%s239 + $0x928] sm:$0xff]
        %v591 = vld [vmem:[%s239 + $0x930] sm:$0xff]
        %v592 = vld [vmem:[%s239 + $0x938] sm:$0xff]
        %v593 = vld [vmem:[%s239 + $0x940] sm:$0xff]
        %v594 = vld [vmem:[%s239 + $0x948] sm:$0xff]
        %v595 = vld [vmem:[%s239 + $0x950] sm:$0xff]
        %v596 = vld [vmem:[%s239 + $0x958] sm:$0xff]
        %v597 = vld [vmem:[%s239 + $0x960] sm:$0xff]
        %v598 = vld [vmem:[%s239 + $0x968] sm:$0xff]
        %v599 = vld [vmem:[%s239 + $0x970] sm:$0xff]
        %v600 = vld [vmem:[%s239 + $0x978] sm:$0xff]
        %v601 = vld [vmem:[%s239 + $0x980] sm:$0xff]
        %v602 = vld [vmem:[%s239 + $0x988] sm:$0xff]
        %v603 = vld [vmem:[%s239 + $0x990] sm:$0xff]
        %v604 = vld [vmem:[%s239 + $0x998] sm:$0xff]
        %v605 = vld [vmem:[%s239 + $0x9a0] sm:$0xff]
        %v606 = vld [vmem:[%s239 + $0x9a8] sm:$0xff]
        %v607 = vld [vmem:[%s239 + $0x9b0] sm:$0xff]
        %v608 = vld [vmem:[%s239 + $0x9b8] sm:$0xff]
        %v609 = vld [vmem:[%s239 + $0x9c0] sm:$0xff]
        %v610 = vld [vmem:[%s239 + $0x9c8] sm:$0xff]
        %v611 = vld [vmem:[%s239 + $0x9d0] sm:$0xff]
        %v612 = vld [vmem:[%s239 + $0x9d8] sm:$0xff]
        %v613 = vld [vmem:[%s239 + $0x9e0] sm:$0xff]
        %v614 = vld [vmem:[%s239 + $0x9e8] sm:$0xff]
        %v615 = vld [vmem:[%s239 + $0x9f0] sm:$0xff]
        %v616 = vld [vmem:[%s239 + $0x9f8] sm:$0xff]
        %v617 = vld [vmem:[%s239 + $0xa00] sm:$0xff]
        %v618 = vld [vmem:[%s239 + $0xa08] sm:$0xff]
        %v619 = vld [vmem:[%s239 + $0xa10] sm:$0xff]
        %v620 = vld [vmem:[%s239 + $0xa18] sm:$0xff]
        %v621 = vld [vmem:[%s239 + $0xa20] sm:$0xff]
        %v622 = vld [vmem:[%s239 + $0xa28] sm:$0xff]
        %v623 = vld [vmem:[%s239 + $0xa30] sm:$0xff]
        %v624 = vld [vmem:[%s239 + $0xa38] sm:$0xff]
        %v625 = vld [vmem:[%s239 + $0xa40] sm:$0xff]
        %v626 = vld [vmem:[%s239 + $0xa48] sm:$0xff]
        %v627 = vld [vmem:[%s239 + $0xa50] sm:$0xff]
        %v628 = vld [vmem:[%s239 + $0xa58] sm:$0xff]
        %v629 = vld [vmem:[%s239 + $0xa60] sm:$0xff]
        %v630 = vld [vmem:[%s239 + $0xa68] sm:$0xff]
        %v631 = vld [vmem:[%s239 + $0xa70] sm:$0xff]
        %v632 = vld [vmem:[%s239 + $0xa78] sm:$0xff]
        %v633 = vld [vmem:[%s239 + $0xa80] sm:$0xff]
        %v634 = vld [vmem:[%s239 + $0xa88] sm:$0xff]
        %v635 = vld [vmem:[%s239 + $0xa90] sm:$0xff]
        %v636 = vld [vmem:[%s239 + $0xa98] sm:$0xff]
        %v637 = vld [vmem:[%s239 + $0xaa0] sm:$0xff]
        %v638 = vld [vmem:[%s239 + $0xaa8] sm:$0xff]
        %v639 = vld [vmem:[%s239 + $0xab0] sm:$0xff]
        %v640 = vld [vmem:[%s239 + $0xab8] sm:$0xff]
        %v641 = vld [vmem:[%s239 + $0xac0] sm:$0xff]
        %v642 = vld [vmem:[%s239 + $0xac8] sm:$0xff]
        %v643 = vld [vmem:[%s239 + $0xad0] sm:$0xff]
        %v644 = vld [vmem:[%s239 + $0xad8] sm:$0xff]
        %v645 = vld [vmem:[%s239 + $0xae0] sm:$0xff]
        %v646 = vld [vmem:[%s239 + $0xae8] sm:$0xff]
        %v647 = vld [vmem:[%s239 + $0xaf0] sm:$0xff]
        %v648 = vld [vmem:[%s239 + $0xaf8] sm:$0xff]
        %v649 = vld [vmem:[%s239 + $0xb00] sm:$0xff]
        %v650 = vld [vmem:[%s239 + $0xb08] sm:$0xff]
        %v651 = vld [vmem:[%s239 + $0xb10] sm:$0xff]
        %v652 = vld [vmem:[%s239 + $0xb18] sm:$0xff]
        %v653 = vld [vmem:[%s239 + $0xb20] sm:$0xff]
        %v654 = vld [vmem:[%s239 + $0xb28] sm:$0xff]
        %v655 = vld [vmem:[%s239 + $0xb30] sm:$0xff]
        %v656 = vld [vmem:[%s239 + $0xb38] sm:$0xff]
        %v657 = vld [vmem:[%s239 + $0xb40] sm:$0xff]
        %v658 = vld [vmem:[%s239 + $0xb48] sm:$0xff]
        %v659 = vld [vmem:[%s239 + $0xb50] sm:$0xff]
        %v660 = vld [vmem:[%s239 + $0xb58] sm:$0xff]
        %v661 = vld [vmem:[%s239 + $0xb60] sm:$0xff]
        %v662 = vld [vmem:[%s239 + $0xb68] sm:$0xff]
        %v663 = vld [vmem:[%s239 + $0xb70] sm:$0xff]
        %v664 = vld [vmem:[%s239 + $0xb78] sm:$0xff]
        %v665 = vld [vmem:[%s239 + $0xb80] sm:$0xff]
        %v666 = vld [vmem:[%s239 + $0xb88] sm:$0xff]
        %v667 = vld [vmem:[%s239 + $0xb90] sm:$0xff]
        %v668 = vld [vmem:[%s239 + $0xb98] sm:$0xff]
        %v669 = vld [vmem:[%s239 + $0xba0] sm:$0xff]
        %v670 = vld [vmem:[%s239 + $0xba8] sm:$0xff]
        %v671 = vld [vmem:[%s239 + $0xbb0] sm:$0xff]
        %v672 = vld [vmem:[%s239 + $0xbb8] sm:$0xff]
        %v673 = vld [vmem:[%s239 + $0xbc0] sm:$0xff]
        %v674 = vld [vmem:[%s239 + $0xbc8] sm:$0xff]
        %v675 = vld [vmem:[%s239 + $0xbd0] sm:$0xff]
        %v676 = vld [vmem:[%s239 + $0xbd8] sm:$0xff]
        %v677 = vld [vmem:[%s239 + $0xbe0] sm:$0xff]
        %v678 = vld [vmem:[%s239 + $0xbe8] sm:$0xff]
        %v679 = vld [vmem:[%s239 + $0xbf0] sm:$0xff]
        %v680 = vld [vmem:[%s239 + $0xbf8] sm:$0xff]
        %v681 = vld [vmem:[%s239 + $0xc00] sm:$0xff]
        %v682 = vld [vmem:[%s239 + $0xc08] sm:$0xff]
        %v683 = vld [vmem:[%s239 + $0xc10] sm:$0xff]
        %v684 = vld [vmem:[%s239 + $0xc18] sm:$0xff]
        %v685 = vld [vmem:[%s239 + $0xc20] sm:$0xff]
        %v686 = vld [vmem:[%s239 + $0xc28] sm:$0xff]
        %v687 = vld [vmem:[%s239 + $0xc30] sm:$0xff]
        %v688 = vld [vmem:[%s239 + $0xc38] sm:$0xff]
        %v689 = vld [vmem:[%s239 + $0xc40] sm:$0xff]
        %v690 = vld [vmem:[%s239 + $0xc48] sm:$0xff]
        %v691 = vld [vmem:[%s239 + $0xc50] sm:$0xff]
        %v692 = vld [vmem:[%s239 + $0xc58] sm:$0xff]
        %v693 = vld [vmem:[%s239 + $0xc60] sm:$0xff]
        %v694 = vld [vmem:[%s239 + $0xc68] sm:$0xff]
        %v695 = vld [vmem:[%s239 + $0xc70] sm:$0xff]
        %v696 = vld [vmem:[%s239 + $0xc78] sm:$0xff]
        %v697 = vld [vmem:[%s239 + $0xc80] sm:$0xff]
        %v698 = vld [vmem:[%s239 + $0xc88] sm:$0xff]
        %v699 = vld [vmem:[%s239 + $0xc90] sm:$0xff]
        %v700 = vld [vmem:[%s239 + $0xc98] sm:$0xff]
        %v701 = vld [vmem:[%s239 + $0xca0] sm:$0xff]
        %v702 = vld [vmem:[%s239 + $0xca8] sm:$0xff]
        %v703 = vld [vmem:[%s239 + $0xcb0] sm:$0xff]
        %v704 = vld [vmem:[%s239 + $0xcb8] sm:$0xff]
        %v705 = vld [vmem:[%s239 + $0xcc0] sm:$0xff]
        %v706 = vld [vmem:[%s239 + $0xcc8] sm:$0xff]
        %v707 = vld [vmem:[%s239 + $0xcd0] sm:$0xff]
        %v708 = vld [vmem:[%s239 + $0xcd8] sm:$0xff]
        %v709 = vld [vmem:[%s239 + $0xce0] sm:$0xff]
        %v710 = vld [vmem:[%s239 + $0xce8] sm:$0xff]
        %v711 = vld [vmem:[%s239 + $0xcf0] sm:$0xff]
        %v712 = vld [vmem:[%s239 + $0xcf8] sm:$0xff]
        %v713 = vld [vmem:[%s239 + $0xd00] sm:$0xff]
        %v714 = vld [vmem:[%s239 + $0xd08] sm:$0xff]
        %v715 = vld [vmem:[%s239 + $0xd10] sm:$0xff]
        %v716 = vld [vmem:[%s239 + $0xd18] sm:$0xff]
        %v717 = vld [vmem:[%s239 + $0xd20] sm:$0xff]
        %v718 = vld [vmem:[%s239 + $0xd28] sm:$0xff]
        %v719 = vld [vmem:[%s239 + $0xd30] sm:$0xff]
        %v720 = vld [vmem:[%s239 + $0xd38] sm:$0xff]
        %v721 = vld [vmem:[%s239 + $0xd40] sm:$0xff]
        %v722 = vld [vmem:[%s239 + $0xd48] sm:$0xff]
        %v723 = vld [vmem:[%s239 + $0xd50] sm:$0xff]
        %v724 = vld [vmem:[%s239 + $0xd58] sm:$0xff]
        %v725 = vld [vmem:[%s239 + $0xd60] sm:$0xff]
        %v726 = vld [vmem:[%s239 + $0xd68] sm:$0xff]
        %v727 = vld [vmem:[%s239 + $0xd70] sm:$0xff]
        %v728 = vld [vmem:[%s239 + $0xd78] sm:$0xff]
        %v729 = vld [vmem:[%s239 + $0xd80] sm:$0xff]
        %v730 = vld [vmem:[%s239 + $0xd88] sm:$0xff]
        %v731 = vld [vmem:[%s239 + $0xd90] sm:$0xff]
        %v732 = vld [vmem:[%s239 + $0xd98] sm:$0xff]
        %v733 = vld [vmem:[%s239 + $0xda0] sm:$0xff]
        %v734 = vld [vmem:[%s239 + $0xda8] sm:$0xff]
        %v735 = vld [vmem:[%s239 + $0xdb0] sm:$0xff]
        %v736 = vld [vmem:[%s239 + $0xdb8] sm:$0xff]
        %v737 = vld [vmem:[%s239 + $0xdc0] sm:$0xff]
        %v738 = vld [vmem:[%s239 + $0xdc8] sm:$0xff]
        %v739 = vld [vmem:[%s239 + $0xdd0] sm:$0xff]
        %v740 = vld [vmem:[%s239 + $0xdd8] sm:$0xff]
        %v741 = vld [vmem:[%s239 + $0xde0] sm:$0xff]
        %v742 = vld [vmem:[%s239 + $0xde8] sm:$0xff]
        %v743 = vld [vmem:[%s239 + $0xdf0] sm:$0xff]
        %v744 = vld [vmem:[%s239 + $0xdf8] sm:$0xff]
        %v745 = vld [vmem:[%s239 + $0xe00] sm:$0xff]
        %v746 = vld [vmem:[%s239 + $0xe08] sm:$0xff]
        %v747 = vld [vmem:[%s239 + $0xe10] sm:$0xff]
        %v748 = vld [vmem:[%s239 + $0xe18] sm:$0xff]
        %v749 = vld [vmem:[%s239 + $0xe20] sm:$0xff]
        %v750 = vld [vmem:[%s239 + $0xe28] sm:$0xff]
        %v751 = vld [vmem:[%s239 + $0xe30] sm:$0xff]
        %v752 = vld [vmem:[%s239 + $0xe38] sm:$0xff]
        %v753 = vld [vmem:[%s239 + $0xe40] sm:$0xff]
        %v754 = vld [vmem:[%s239 + $0xe48] sm:$0xff]
        %v755 = vld [vmem:[%s239 + $0xe50] sm:$0xff]
        %v756 = vld [vmem:[%s239 + $0xe58] sm:$0xff]
        %v757 = vld [vmem:[%s239 + $0xe60] sm:$0xff]
        %v758 = vld [vmem:[%s239 + $0xe68] sm:$0xff]
        %v759 = vld [vmem:[%s239 + $0xe70] sm:$0xff]
        %v760 = vld [vmem:[%s239 + $0xe78] sm:$0xff]
        %v761 = vld [vmem:[%s239 + $0xe80] sm:$0xff]
        %v762 = vld [vmem:[%s239 + $0xe88] sm:$0xff]
        %v763 = vld [vmem:[%s239 + $0xe90] sm:$0xff]
        %v764 = vld [vmem:[%s239 + $0xe98] sm:$0xff]
        %v765 = vld [vmem:[%s239 + $0xea0] sm:$0xff]
        %v766 = vld [vmem:[%s239 + $0xea8] sm:$0xff]
        %v767 = vld [vmem:[%s239 + $0xeb0] sm:$0xff]
        %v768 = vld [vmem:[%s239 + $0xeb8] sm:$0xff]
        %v769 = vld [vmem:[%s239 + $0xec0] sm:$0xff]
        %v770 = vld [vmem:[%s239 + $0xec8] sm:$0xff]
        %v771 = vld [vmem:[%s239 + $0xed0] sm:$0xff]
        %v772 = vld [vmem:[%s239 + $0xed8] sm:$0xff]
        %v773 = vld [vmem:[%s239 + $0xee0] sm:$0xff]
        %v774 = vld [vmem:[%s239 + $0xee8] sm:$0xff]
        %v775 = vld [vmem:[%s239 + $0xef0] sm:$0xff]
        %v776 = vld [vmem:[%s239 + $0xef8] sm:$0xff]
        %v777 = vld [vmem:[%s239 + $0xf00] sm:$0xff]
        %v778 = vld [vmem:[%s239 + $0xf08] sm:$0xff]
        %v779 = vld [vmem:[%s239 + $0xf10] sm:$0xff]
        %v780 = vld [vmem:[%s239 + $0xf18] sm:$0xff]
        %v781 = vld [vmem:[%s239 + $0xf20] sm:$0xff]
        %v782 = vld [vmem:[%s239 + $0xf28] sm:$0xff]
        %v783 = vld [vmem:[%s239 + $0xf30] sm:$0xff]
        %v784 = vld [vmem:[%s239 + $0xf38] sm:$0xff]
        %v785 = vld [vmem:[%s239 + $0xf40] sm:$0xff]
        %v786 = vld [vmem:[%s239 + $0xf48] sm:$0xff]
        %v787 = vld [vmem:[%s239 + $0xf50] sm:$0xff]
        %v788 = vld [vmem:[%s239 + $0xf58] sm:$0xff]
        %v789 = vld [vmem:[%s239 + $0xf60] sm:$0xff]
        %v790 = vld [vmem:[%s239 + $0xf68] sm:$0xff]
        %v791 = vld [vmem:[%s239 + $0xf70] sm:$0xff]
        %v792 = vld [vmem:[%s239 + $0xf78] sm:$0xff]
        %v793 = vld [vmem:[%s239 + $0xf80] sm:$0xff]
        %v794 = vld [vmem:[%s239 + $0xf88] sm:$0xff]
        %v795 = vld [vmem:[%s239 + $0xf90] sm:$0xff]
        %v796 = vld [vmem:[%s239 + $0xf98] sm:$0xff]
        %v797 = vld [vmem:[%s239 + $0xfa0] sm:$0xff]
        %v798 = vld [vmem:[%s239 + $0xfa8] sm:$0xff]
        %v799 = vld [vmem:[%s239 + $0xfb0] sm:$0xff]
        %v800 = vld [vmem:[%s239 + $0xfb8] sm:$0xff]
        %v801 = vld [vmem:[%s239 + $0xfc0] sm:$0xff]
        %v802 = vld [vmem:[%s239 + $0xfc8] sm:$0xff]
        %v803 = vld [vmem:[%s239 + $0xfd0] sm:$0xff]
        %v804 = vld [vmem:[%s239 + $0xfd8] sm:$0xff]
        %v805 = vld [vmem:[%s239 + $0xfe0] sm:$0xff]
        %v806 = vld [vmem:[%s239 + $0xfe8] sm:$0xff]
        %v807 = vld [vmem:[%s239 + $0xff0] sm:$0xff]
        %v808 = vld [vmem:[%s239 + $0xff8] sm:$0xff]
        %v809 = vld [vmem:[%s239 + $0x1000] sm:$0xff]
        %v810 = vld [vmem:[%s239 + $0x1008] sm:$0xff]
        %v811 = vld [vmem:[%s239 + $0x1010] sm:$0xff]
        %v812 = vld [vmem:[%s239 + $0x1018] sm:$0xff]
        %v813 = vld [vmem:[%s239 + $0x1020] sm:$0xff]
        %v814 = vld [vmem:[%s239 + $0x1028] sm:$0xff]
        %v815 = vld [vmem:[%s239 + $0x1030] sm:$0xff]
        %v816 = vld [vmem:[%s239 + $0x1038] sm:$0xff]
        %v817 = vld [vmem:[%s239 + $0x1040] sm:$0xff]
        %v818 = vld [vmem:[%s239 + $0x1048] sm:$0xff]
        %v819 = vld [vmem:[%s239 + $0x1050] sm:$0xff]
        %v820 = vld [vmem:[%s239 + $0x1058] sm:$0xff]
        %v821 = vld [vmem:[%s239 + $0x1060] sm:$0xff]
        %v822 = vld [vmem:[%s239 + $0x1068] sm:$0xff]
        %v823 = vld [vmem:[%s239 + $0x1070] sm:$0xff]
        %v824 = vld [vmem:[%s239 + $0x1078] sm:$0xff]
        %v825 = vld [vmem:[%s239 + $0x1080] sm:$0xff]
        %v826 = vld [vmem:[%s239 + $0x1088] sm:$0xff]
        %v827 = vld [vmem:[%s239 + $0x1090] sm:$0xff]
        %v828 = vld [vmem:[%s239 + $0x1098] sm:$0xff]
        %v829 = vld [vmem:[%s239 + $0x10a0] sm:$0xff]
        %v830 = vld [vmem:[%s239 + $0x10a8] sm:$0xff]
        %v831 = vld [vmem:[%s239 + $0x10b0] sm:$0xff]
        %v832 = vld [vmem:[%s239 + $0x10b8] sm:$0xff]
        %v833 = vld [vmem:[%s239 + $0x10c0] sm:$0xff]
        %v834 = vld [vmem:[%s239 + $0x10c8] sm:$0xff]
        %v835 = vld [vmem:[%s239 + $0x10d0] sm:$0xff]
        %v836 = vld [vmem:[%s239 + $0x10d8] sm:$0xff]
        %v837 = vld [vmem:[%s239 + $0x10e0] sm:$0xff]
        %v838 = vld [vmem:[%s239 + $0x10e8] sm:$0xff]
        %v839 = vld [vmem:[%s239 + $0x10f0] sm:$0xff]
        %v840 = vld [vmem:[%s239 + $0x10f8] sm:$0xff]
        %v841 = vld [vmem:[%s239 + $0x1100] sm:$0xff]
        %v842 = vld [vmem:[%s239 + $0x1108] sm:$0xff]
        %v843 = vld [vmem:[%s239 + $0x1110] sm:$0xff]
        %v844 = vld [vmem:[%s239 + $0x1118] sm:$0xff]
        %v845 = vld [vmem:[%s239 + $0x1120] sm:$0xff]
        %v846 = vld [vmem:[%s239 + $0x1128] sm:$0xff]
        %v847 = vld [vmem:[%s239 + $0x1130] sm:$0xff]
        %v848 = vld [vmem:[%s239 + $0x1138] sm:$0xff]
        %v849 = vld [vmem:[%s239 + $0x1140] sm:$0xff]
        %v850 = vld [vmem:[%s239 + $0x1148] sm:$0xff]
        %v851 = vld [vmem:[%s239 + $0x1150] sm:$0xff]
        %v852 = vld [vmem:[%s239 + $0x1158] sm:$0xff]
        %v853 = vld [vmem:[%s239 + $0x1160] sm:$0xff]
        %v854 = vld [vmem:[%s239 + $0x1168] sm:$0xff]
        %v855 = vld [vmem:[%s239 + $0x1170] sm:$0xff]
        %v856 = vld [vmem:[%s239 + $0x1178] sm:$0xff]
        %v857 = vld [vmem:[%s239 + $0x1180] sm:$0xff]
        %v858 = vld [vmem:[%s239 + $0x1188] sm:$0xff]
        %v859 = vld [vmem:[%s239 + $0x1190] sm:$0xff]
        %v860 = vld [vmem:[%s239 + $0x1198] sm:$0xff]
        %v861 = vld [vmem:[%s239 + $0x11a0] sm:$0xff]
        %v862 = vld [vmem:[%s239 + $0x11a8] sm:$0xff]
        %v863 = vld [vmem:[%s239 + $0x11b0] sm:$0xff]
        %v864 = vld [vmem:[%s239 + $0x11b8] sm:$0xff]
        %v865 = vld [vmem:[%s239 + $0x11c0] sm:$0xff]
        %v866 = vld [vmem:[%s239 + $0x11c8] sm:$0xff]
        %v867 = vld [vmem:[%s239 + $0x11d0] sm:$0xff]
        %v868 = vld [vmem:[%s239 + $0x11d8] sm:$0xff]
        %v869 = vld [vmem:[%s239 + $0x11e0] sm:$0xff]
        %v870 = vld [vmem:[%s239 + $0x11e8] sm:$0xff]
        %v871 = vld [vmem:[%s239 + $0x11f0] sm:$0xff]
        %v872 = vld [vmem:[%s239 + $0x11f8] sm:$0xff]
        %v873 = vld [vmem:[%s239 + $0x1200] sm:$0xff]
        %v874 = vld [vmem:[%s239 + $0x1208] sm:$0xff]
        %v875 = vld [vmem:[%s239 + $0x1210] sm:$0xff]
        %v876 = vld [vmem:[%s239 + $0x1218] sm:$0xff]
        %v877 = vld [vmem:[%s239 + $0x1220] sm:$0xff]
        %v878 = vld [vmem:[%s239 + $0x1228] sm:$0xff]
        %v879 = vld [vmem:[%s239 + $0x1230] sm:$0xff]
        %v880 = vld [vmem:[%s239 + $0x1238] sm:$0xff]
        %v881 = vld [vmem:[%s239 + $0x1240] sm:$0xff]
        %v882 = vld [vmem:[%s239 + $0x1248] sm:$0xff]
        %v883 = vld [vmem:[%s239 + $0x1250] sm:$0xff]
        %v884 = vld [vmem:[%s239 + $0x1258] sm:$0xff]
        %v885 = vld [vmem:[%s239 + $0x1260] sm:$0xff]
        %v886 = vld [vmem:[%s239 + $0x1268] sm:$0xff]
        %v887 = vld [vmem:[%s239 + $0x1270] sm:$0xff]
        %v888 = vld [vmem:[%s239 + $0x1278] sm:$0xff]
        %v889 = vld [vmem:[%s239 + $0x1280] sm:$0xff]
        %v890 = vld [vmem:[%s239 + $0x1288] sm:$0xff]
        %v891 = vld [vmem:[%s239 + $0x1290] sm:$0xff]
        %v892 = vld [vmem:[%s239 + $0x1298] sm:$0xff]
        %v893 = vld [vmem:[%s239 + $0x12a0] sm:$0xff]
        %v894 = vld [vmem:[%s239 + $0x12a8] sm:$0xff]
        %v895 = vld [vmem:[%s239 + $0x12b0] sm:$0xff]
        %v896 = vld [vmem:[%s239 + $0x12b8] sm:$0xff]
        %v897 = vld [vmem:[%s239 + $0x12c0] sm:$0xff]
        %v898 = vld [vmem:[%s239 + $0x12c8] sm:$0xff]
        %v899 = vld [vmem:[%s239 + $0x12d0] sm:$0xff]
        %v900 = vld [vmem:[%s239 + $0x12d8] sm:$0xff]
        %v901 = vld [vmem:[%s239 + $0x12e0] sm:$0xff]
        %v902 = vld [vmem:[%s239 + $0x12e8] sm:$0xff]
        %v903 = vld [vmem:[%s239 + $0x12f0] sm:$0xff]
        %v904 = vld [vmem:[%s239 + $0x12f8] sm:$0xff]
        %v905 = vld [vmem:[%s239 + $0x1300] sm:$0xff]
        %v906 = vld [vmem:[%s239 + $0x1308] sm:$0xff]
        %v907 = vld [vmem:[%s239 + $0x1310] sm:$0xff]
        %v908 = vld [vmem:[%s239 + $0x1318] sm:$0xff]
        %v909 = vld [vmem:[%s239 + $0x1320] sm:$0xff]
        %v910 = vld [vmem:[%s239 + $0x1328] sm:$0xff]
        %v911 = vld [vmem:[%s239 + $0x1330] sm:$0xff]
        %v912 = vld [vmem:[%s239 + $0x1338] sm:$0xff]
        %v913 = vld [vmem:[%s239 + $0x1340] sm:$0xff]
        %v914 = vld [vmem:[%s239 + $0x1348] sm:$0xff]
        %v915 = vld [vmem:[%s239 + $0x1350] sm:$0xff]
        %v916 = vld [vmem:[%s239 + $0x1358] sm:$0xff]
        %v917 = vld [vmem:[%s239 + $0x1360] sm:$0xff]
        %v918 = vld [vmem:[%s239 + $0x1368] sm:$0xff]
        %v919 = vld [vmem:[%s239 + $0x1370] sm:$0xff]
        %v920 = vld [vmem:[%s239 + $0x1378] sm:$0xff]
        %v921 = vld [vmem:[%s239 + $0x1380] sm:$0xff]
        %v922 = vld [vmem:[%s239 + $0x1388] sm:$0xff]
        %v923 = vld [vmem:[%s239 + $0x1390] sm:$0xff]
        %v924 = vld [vmem:[%s239 + $0x1398] sm:$0xff]
        %v925 = vld [vmem:[%s239 + $0x13a0] sm:$0xff]
        %v926 = vld [vmem:[%s239 + $0x13a8] sm:$0xff]
        %v927 = vld [vmem:[%s239 + $0x13b0] sm:$0xff]
        %v928 = vld [vmem:[%s239 + $0x13b8] sm:$0xff]
        %v929 = vld [vmem:[%s239 + $0x13c0] sm:$0xff]
        %v930 = vld [vmem:[%s239 + $0x13c8] sm:$0xff]
        %v931 = vld [vmem:[%s239 + $0x13d0] sm:$0xff]
        %v932 = vld [vmem:[%s239 + $0x13d8] sm:$0xff]
        %v933 = vld [vmem:[%s239 + $0x13e0] sm:$0xff]
        %v934 = vld [vmem:[%s239 + $0x13e8] sm:$0xff]
        %v935 = vld [vmem:[%s239 + $0x13f0] sm:$0xff]
        %v936 = vld [vmem:[%s239 + $0x13f8] sm:$0xff]
        %v937 = vld [vmem:[%s239 + $0x1400] sm:$0xff]
        %v938 = vld [vmem:[%s239 + $0x1408] sm:$0xff]
        %v939 = vld [vmem:[%s239 + $0x1410] sm:$0xff]
        %v940 = vld [vmem:[%s239 + $0x1418] sm:$0xff]
        %v941 = vld [vmem:[%s239 + $0x1420] sm:$0xff]
        %v942 = vld [vmem:[%s239 + $0x1428] sm:$0xff]
        %v943 = vld [vmem:[%s239 + $0x1430] sm:$0xff]
        %v944 = vld [vmem:[%s239 + $0x1438] sm:$0xff]
        %v945 = vld [vmem:[%s239 + $0x1440] sm:$0xff]
        %v946 = vld [vmem:[%s239 + $0x1448] sm:$0xff]
        %v947 = vld [vmem:[%s239 + $0x1450] sm:$0xff]
        %v948 = vld [vmem:[%s239 + $0x1458] sm:$0xff]
        %v949 = vld [vmem:[%s239 + $0x1460] sm:$0xff]
        %v950 = vld [vmem:[%s239 + $0x1468] sm:$0xff]
        %v951 = vld [vmem:[%s239 + $0x1470] sm:$0xff]
        %v952 = vld [vmem:[%s239 + $0x1478] sm:$0xff]
        %v953 = vld [vmem:[%s239 + $0x1480] sm:$0xff]
        %v954 = vld [vmem:[%s239 + $0x1488] sm:$0xff]
        %v955 = vld [vmem:[%s239 + $0x1490] sm:$0xff]
        %v956 = vld [vmem:[%s239 + $0x1498] sm:$0xff]
        %v957 = vld [vmem:[%s239 + $0x14a0] sm:$0xff]
        %v958 = vld [vmem:[%s239 + $0x14a8] sm:$0xff]
        %v959 = vld [vmem:[%s239 + $0x14b0] sm:$0xff]
        %v960 = vld [vmem:[%s239 + $0x14b8] sm:$0xff]
        %v961 = vld [vmem:[%s239 + $0x14c0] sm:$0xff]
        %v962 = vld [vmem:[%s239 + $0x14c8] sm:$0xff]
        %v963 = vld [vmem:[%s239 + $0x14d0] sm:$0xff]
        %v964 = vld [vmem:[%s239 + $0x14d8] sm:$0xff]
        %v965 = vld [vmem:[%s239 + $0x14e0] sm:$0xff]
        %v966 = vld [vmem:[%s239 + $0x14e8] sm:$0xff]
        %v967 = vld [vmem:[%s239 + $0x14f0] sm:$0xff]
        %v968 = vld [vmem:[%s239 + $0x14f8] sm:$0xff]
        %v969 = vld [vmem:[%s239 + $0x1500] sm:$0xff]
        %v970 = vld [vmem:[%s239 + $0x1508] sm:$0xff]
        %v971 = vld [vmem:[%s239 + $0x1510] sm:$0xff]
        %v972 = vld [vmem:[%s239 + $0x1518] sm:$0xff]
        %v973 = vld [vmem:[%s239 + $0x1520] sm:$0xff]
        %v974 = vld [vmem:[%s239 + $0x1528] sm:$0xff]
        %v975 = vld [vmem:[%s239 + $0x1530] sm:$0xff]
        %v976 = vld [vmem:[%s239 + $0x1538] sm:$0xff]
        %v977 = vld [vmem:[%s239 + $0x1540] sm:$0xff]
        %v978 = vld [vmem:[%s239 + $0x1548] sm:$0xff]
        %v979 = vld [vmem:[%s239 + $0x1550] sm:$0xff]
        %v980 = vld [vmem:[%s239 + $0x1558] sm:$0xff]
        %v981 = vld [vmem:[%s239 + $0x1560] sm:$0xff]
        %v982 = vld [vmem:[%s239 + $0x1568] sm:$0xff]
        %v983 = vld [vmem:[%s239 + $0x1570] sm:$0xff]
        %v984 = vld [vmem:[%s239 + $0x1578] sm:$0xff]
        %v985 = vld [vmem:[%s239 + $0x1580] sm:$0xff]
        %v986 = vld [vmem:[%s239 + $0x1588] sm:$0xff]
        %v987 = vld [vmem:[%s239 + $0x1590] sm:$0xff]
        %v988 = vld [vmem:[%s239 + $0x1598] sm:$0xff]
        %v989 = vld [vmem:[%s239 + $0x15a0] sm:$0xff]
        %v990 = vld [vmem:[%s239 + $0x15a8] sm:$0xff]
        %v991 = vld [vmem:[%s239 + $0x15b0] sm:$0xff]
        %v992 = vld [vmem:[%s239 + $0x15b8] sm:$0xff]
        %v993 = vld [vmem:[%s239 + $0x15c0] sm:$0xff]
        %v994 = vld [vmem:[%s239 + $0x15c8] sm:$0xff]
        %v995 = vld [vmem:[%s239 + $0x15d0] sm:$0xff]
        %v996 = vld [vmem:[%s239 + $0x15d8] sm:$0xff]
        %v997 = vld [vmem:[%s239 + $0x15e0] sm:$0xff]
        %v998 = vld [vmem:[%s239 + $0x15e8] sm:$0xff]
        %v999 = vld [vmem:[%s239 + $0x15f0] sm:$0xff]
        %v1000 = vld [vmem:[%s239 + $0x15f8] sm:$0xff]
        %v1001 = vld [vmem:[%s239 + $0x1600] sm:$0xff]
        %v1002 = vld [vmem:[%s239 + $0x1608] sm:$0xff]
        %v1003 = vld [vmem:[%s239 + $0x1610] sm:$0xff]
        %v1004 = vld [vmem:[%s239 + $0x1618] sm:$0xff]
        %v1005 = vld [vmem:[%s239 + $0x1620] sm:$0xff]
        %v1006 = vld [vmem:[%s239 + $0x1628] sm:$0xff]
        %v1007 = vld [vmem:[%s239 + $0x1630] sm:$0xff]
        %v1008 = vld [vmem:[%s239 + $0x1638] sm:$0xff]
        %v1009 = vld [vmem:[%s239 + $0x1640] sm:$0xff]
        %v1010 = vld [vmem:[%s239 + $0x1648] sm:$0xff]
        %v1011 = vld [vmem:[%s239 + $0x1650] sm:$0xff]
        %v1012 = vld [vmem:[%s239 + $0x1658] sm:$0xff]
        %v1013 = vld [vmem:[%s239 + $0x1660] sm:$0xff]
        %v1014 = vld [vmem:[%s239 + $0x1668] sm:$0xff]
        %v1015 = vld [vmem:[%s239 + $0x1670] sm:$0xff]
        %v1016 = vld [vmem:[%s239 + $0x1678] sm:$0xff]
        %v1017 = vld [vmem:[%s239 + $0x1680] sm:$0xff]
        %v1018 = vld [vmem:[%s239 + $0x1688] sm:$0xff]
        %v1019 = vld [vmem:[%s239 + $0x1690] sm:$0xff]
        %v1020 = vld [vmem:[%s239 + $0x1698] sm:$0xff]
        %v1021 = vld [vmem:[%s239 + $0x16a0] sm:$0xff]
        %v1022 = vld [vmem:[%s239 + $0x16a8] sm:$0xff]
        %v1023 = vld [vmem:[%s239 + $0x16b0] sm:$0xff]
        %v1024 = vld [vmem:[%s239 + $0x16b8] sm:$0xff]
        %v1025 = vld [vmem:[%s239 + $0x16c0] sm:$0xff]
        %v1026 = vld [vmem:[%s239 + $0x16c8] sm:$0xff]
        %v1027 = vld [vmem:[%s239 + $0x16d0] sm:$0xff]
        %v1028 = vld [vmem:[%s239 + $0x16d8] sm:$0xff]
        %v1029 = vld [vmem:[%s239 + $0x16e0] sm:$0xff]
        %v1030 = vld [vmem:[%s239 + $0x16e8] sm:$0xff]
        %v1031 = vld [vmem:[%s239 + $0x16f0] sm:$0xff]
        %v1032 = vld [vmem:[%s239 + $0x16f8] sm:$0xff]
        %v1033 = vld [vmem:[%s239 + $0x1700] sm:$0xff]
        %v1034 = vld [vmem:[%s239 + $0x1708] sm:$0xff]
        %v1035 = vld [vmem:[%s239 + $0x1710] sm:$0xff]
        %v1036 = vld [vmem:[%s239 + $0x1718] sm:$0xff]
        %v1037 = vld [vmem:[%s239 + $0x1720] sm:$0xff]
        %v1038 = vld [vmem:[%s239 + $0x1728] sm:$0xff]
        %v1039 = vld [vmem:[%s239 + $0x1730] sm:$0xff]
        %v1040 = vld [vmem:[%s239 + $0x1738] sm:$0xff]
        %v1041 = vld [vmem:[%s239 + $0x1740] sm:$0xff]
        %v1042 = vld [vmem:[%s239 + $0x1748] sm:$0xff]
        %v1043 = vld [vmem:[%s239 + $0x1750] sm:$0xff]
        %v1044 = vld [vmem:[%s239 + $0x1758] sm:$0xff]
        %v1045 = vld [vmem:[%s239 + $0x1760] sm:$0xff]
        %v1046 = vld [vmem:[%s239 + $0x1768] sm:$0xff]
        %v1047 = vld [vmem:[%s239 + $0x1770] sm:$0xff]
        %v1048 = vld [vmem:[%s239 + $0x1778] sm:$0xff]
        %v1049 = vld [vmem:[%s239 + $0x1780] sm:$0xff]
        %v1050 = vld [vmem:[%s239 + $0x1788] sm:$0xff]
        %v1051 = vld [vmem:[%s239 + $0x1790] sm:$0xff]
        %v1052 = vld [vmem:[%s239 + $0x1798] sm:$0xff]
        %v1053 = vld [vmem:[%s239 + $0x17a0] sm:$0xff]
        %v1054 = vld [vmem:[%s239 + $0x17a8] sm:$0xff]
        %v1055 = vld [vmem:[%s239 + $0x17b0] sm:$0xff]
        %v1056 = vld [vmem:[%s239 + $0x17b8] sm:$0xff]
        %v1057 = vld [vmem:[%s239 + $0x17c0] sm:$0xff]
        %v1058 = vld [vmem:[%s239 + $0x17c8] sm:$0xff]
        %v1059 = vld [vmem:[%s239 + $0x17d0] sm:$0xff]
        %v1060 = vld [vmem:[%s239 + $0x17d8] sm:$0xff]
        %v1061 = vld [vmem:[%s239 + $0x17e0] sm:$0xff]
        %v1062 = vld [vmem:[%s239 + $0x17e8] sm:$0xff]
        %v1063 = vld [vmem:[%s239 + $0x17f0] sm:$0xff]
        %v1064 = vld [vmem:[%s239 + $0x17f8] sm:$0xff]
        %v1065 = vld [vmem:[%s239 + $0x1800] sm:$0xff]
        %v1066 = vld [vmem:[%s239 + $0x1808] sm:$0xff]
        %v1067 = vld [vmem:[%s239 + $0x1810] sm:$0xff]
        %v1068 = vld [vmem:[%s239 + $0x1818] sm:$0xff]
        %v1069 = vld [vmem:[%s239 + $0x1820] sm:$0xff]
        %v1070 = vld [vmem:[%s239 + $0x1828] sm:$0xff]
        %v1071 = vld [vmem:[%s239 + $0x1830] sm:$0xff]
        %v1072 = vld [vmem:[%s239 + $0x1838] sm:$0xff]
        %v1073 = vld [vmem:[%s239 + $0x1840] sm:$0xff]
        %v1074 = vld [vmem:[%s239 + $0x1848] sm:$0xff]
        %v1075 = vld [vmem:[%s239 + $0x1850] sm:$0xff]
        %v1076 = vld [vmem:[%s239 + $0x1858] sm:$0xff]
        %v1077 = vld [vmem:[%s239 + $0x1860] sm:$0xff]
        %v1078 = vld [vmem:[%s239 + $0x1868] sm:$0xff]
        %v1079 = vld [vmem:[%s239 + $0x1870] sm:$0xff]
        %v1080 = vld [vmem:[%s239 + $0x1878] sm:$0xff]
        %v1081 = vld [vmem:[%s239 + $0x1880] sm:$0xff]
        %v1082 = vld [vmem:[%s239 + $0x1888] sm:$0xff]
        %v1083 = vld [vmem:[%s239 + $0x1890] sm:$0xff]
        %v1084 = vld [vmem:[%s239 + $0x1898] sm:$0xff]
        %v1085 = vld [vmem:[%s239 + $0x18a0] sm:$0xff]
        %v1086 = vld [vmem:[%s239 + $0x18a8] sm:$0xff]
        %v1087 = vld [vmem:[%s239 + $0x18b0] sm:$0xff]
        %v1088 = vld [vmem:[%s239 + $0x18b8] sm:$0xff]
        %v1089 = vld [vmem:[%s239 + $0x18c0] sm:$0xff]
        %v1090 = vld [vmem:[%s239 + $0x18c8] sm:$0xff]
        %v1091 = vld [vmem:[%s239 + $0x18d0] sm:$0xff]
        %v1092 = vld [vmem:[%s239 + $0x18d8] sm:$0xff]
        %v1093 = vld [vmem:[%s239 + $0x18e0] sm:$0xff]
        %v1094 = vld [vmem:[%s239 + $0x18e8] sm:$0xff]
        %v1095 = vld [vmem:[%s239 + $0x18f0] sm:$0xff]
        %v1096 = vld [vmem:[%s239 + $0x18f8] sm:$0xff]
        %v1097 = vld [vmem:[%s239 + $0x1900] sm:$0xff]
        %v1098 = vld [vmem:[%s239 + $0x1908] sm:$0xff]
        %v1099 = vld [vmem:[%s239 + $0x1910] sm:$0xff]
        %v1100 = vld [vmem:[%s239 + $0x1918] sm:$0xff]
        %v1101 = vld [vmem:[%s239 + $0x1920] sm:$0xff]
        %v1102 = vld [vmem:[%s239 + $0x1928] sm:$0xff]
        %v1103 = vld [vmem:[%s239 + $0x1930] sm:$0xff]
        %v1104 = vld [vmem:[%s239 + $0x1938] sm:$0xff]
        %v1105 = vld [vmem:[%s239 + $0x1940] sm:$0xff]
        %v1106 = vld [vmem:[%s239 + $0x1948] sm:$0xff]
        %v1107 = vld [vmem:[%s239 + $0x1950] sm:$0xff]
        %v1108 = vld [vmem:[%s239 + $0x1958] sm:$0xff]
        %v1109 = vld [vmem:[%s239 + $0x1960] sm:$0xff]
        %v1110 = vld [vmem:[%s239 + $0x1968] sm:$0xff]
        %v1111 = vld [vmem:[%s239 + $0x1970] sm:$0xff]
        %v1112 = vld [vmem:[%s239 + $0x1978] sm:$0xff]
        %v1113 = vld [vmem:[%s239 + $0x1980] sm:$0xff]
        %v1114 = vld [vmem:[%s239 + $0x1988] sm:$0xff]
        %v1115 = vld [vmem:[%s239 + $0x1990] sm:$0xff]
        %v1116 = vld [vmem:[%s239 + $0x1998] sm:$0xff]
        %v1117 = vld [vmem:[%s239 + $0x19a0] sm:$0xff]
        %v1118 = vld [vmem:[%s239 + $0x19a8] sm:$0xff]
        %v1119 = vld [vmem:[%s239 + $0x19b0] sm:$0xff]
        %v1120 = vld [vmem:[%s239 + $0x19b8] sm:$0xff]
        %v1121 = vld [vmem:[%s239 + $0x19c0] sm:$0xff]
        %v1122 = vld [vmem:[%s239 + $0x19c8] sm:$0xff]
        %v1123 = vld [vmem:[%s239 + $0x19d0] sm:$0xff]
        %v1124 = vld [vmem:[%s239 + $0x19d8] sm:$0xff]
        %v1125 = vld [vmem:[%s239 + $0x19e0] sm:$0xff]
        %v1126 = vld [vmem:[%s239 + $0x19e8] sm:$0xff]
        %v1127 = vld [vmem:[%s239 + $0x19f0] sm:$0xff]
        %v1128 = vld [vmem:[%s239 + $0x19f8] sm:$0xff]
        %v1129 = vld [vmem:[%s239 + $0x1a00] sm:$0xff]
        %v1130 = vld [vmem:[%s239 + $0x1a08] sm:$0xff]
        %v1131 = vld [vmem:[%s239 + $0x1a10] sm:$0xff]
        %v1132 = vld [vmem:[%s239 + $0x1a18] sm:$0xff]
        %v1133 = vld [vmem:[%s239 + $0x1a20] sm:$0xff]
        %v1134 = vld [vmem:[%s239 + $0x1a28] sm:$0xff]
        %v1135 = vld [vmem:[%s239 + $0x1a30] sm:$0xff]
        %v1136 = vld [vmem:[%s239 + $0x1a38] sm:$0xff]
        %v1137 = vld [vmem:[%s239 + $0x1a40] sm:$0xff]
        %v1138 = vld [vmem:[%s239 + $0x1a48] sm:$0xff]
        %v1139 = vld [vmem:[%s239 + $0x1a50] sm:$0xff]
        %v1140 = vld [vmem:[%s239 + $0x1a58] sm:$0xff]
        %v1141 = vld [vmem:[%s239 + $0x1a60] sm:$0xff]
        %v1142 = vld [vmem:[%s239 + $0x1a68] sm:$0xff]
        %v1143 = vld [vmem:[%s239 + $0x1a70] sm:$0xff]
        %v1144 = vld [vmem:[%s239 + $0x1a78] sm:$0xff]
        %v1145 = vld [vmem:[%s239 + $0x1a80] sm:$0xff]
        %v1146 = vld [vmem:[%s239 + $0x1a88] sm:$0xff]
        %v1147 = vld [vmem:[%s239 + $0x1a90] sm:$0xff]
        %v1148 = vld [vmem:[%s239 + $0x1a98] sm:$0xff]
        %v1149 = vld [vmem:[%s239 + $0x1aa0] sm:$0xff]
        %v1150 = vld [vmem:[%s239 + $0x1aa8] sm:$0xff]
        %v1151 = vld [vmem:[%s239 + $0x1ab0] sm:$0xff]
        %v1152 = vld [vmem:[%s239 + $0x1ab8] sm:$0xff]
        %v1153 = vld [vmem:[%s239 + $0x1ac0] sm:$0xff]
        %v1154 = vld [vmem:[%s239 + $0x1ac8] sm:$0xff]
        %v1155 = vld [vmem:[%s239 + $0x1ad0] sm:$0xff]
        %v1156 = vld [vmem:[%s239 + $0x1ad8] sm:$0xff]
        %v1157 = vld [vmem:[%s239 + $0x1ae0] sm:$0xff]
        %v1158 = vld [vmem:[%s239 + $0x1ae8] sm:$0xff]
        %v1159 = vld [vmem:[%s239 + $0x1af0] sm:$0xff]
        %v1160 = vld [vmem:[%s239 + $0x1af8] sm:$0xff]
        %v1161 = vld [vmem:[%s239 + $0x1b00] sm:$0xff]
        %v1162 = vld [vmem:[%s239 + $0x1b08] sm:$0xff]
        %v1163 = vld [vmem:[%s239 + $0x1b10] sm:$0xff]
        %v1164 = vld [vmem:[%s239 + $0x1b18] sm:$0xff]
        %v1165 = vld [vmem:[%s239 + $0x1b20] sm:$0xff]
        %v1166 = vld [vmem:[%s239 + $0x1b28] sm:$0xff]
        %v1167 = vld [vmem:[%s239 + $0x1b30] sm:$0xff]
        %v1168 = vld [vmem:[%s239 + $0x1b38] sm:$0xff]
        %v1169 = vld [vmem:[%s239 + $0x1b40] sm:$0xff]
        %v1170 = vld [vmem:[%s239 + $0x1b48] sm:$0xff]
        %v1171 = vld [vmem:[%s239 + $0x1b50] sm:$0xff]
        %v1172 = vld [vmem:[%s239 + $0x1b58] sm:$0xff]
        %v1173 = vld [vmem:[%s239 + $0x1b60] sm:$0xff]
        %v1174 = vld [vmem:[%s239 + $0x1b68] sm:$0xff]
        %v1175 = vld [vmem:[%s239 + $0x1b70] sm:$0xff]
        %v1176 = vld [vmem:[%s239 + $0x1b78] sm:$0xff]
        %v1177 = vld [vmem:[%s239 + $0x1b80] sm:$0xff]
        %v1178 = vld [vmem:[%s239 + $0x1b88] sm:$0xff]
        %v1179 = vld [vmem:[%s239 + $0x1b90] sm:$0xff]
        %v1180 = vld [vmem:[%s239 + $0x1b98] sm:$0xff]
        %v1181 = vld [vmem:[%s239 + $0x1ba0] sm:$0xff]
        %v1182 = vld [vmem:[%s239 + $0x1ba8] sm:$0xff]
        %v1183 = vld [vmem:[%s239 + $0x1bb0] sm:$0xff]
        %v1184 = vld [vmem:[%s239 + $0x1bb8] sm:$0xff]
        %v1185 = vld [vmem:[%s239 + $0x1bc0] sm:$0xff]
        %v1186 = vld [vmem:[%s239 + $0x1bc8] sm:$0xff]
        %v1187 = vld [vmem:[%s239 + $0x1bd0] sm:$0xff]
        %v1188 = vld [vmem:[%s239 + $0x1bd8] sm:$0xff]
        %v1189 = vld [vmem:[%s239 + $0x1be0] sm:$0xff]
        %v1190 = vld [vmem:[%s239 + $0x1be8] sm:$0xff]
        %v1191 = vld [vmem:[%s239 + $0x1bf0] sm:$0xff]
        %v1192 = vld [vmem:[%s239 + $0x1bf8] sm:$0xff]
        %v1193 = vld [vmem:[%s239 + $0x1c00] sm:$0xff]
        %v1194 = vld [vmem:[%s239 + $0x1c08] sm:$0xff]
        %v1195 = vld [vmem:[%s239 + $0x1c10] sm:$0xff]
        %v1196 = vld [vmem:[%s239 + $0x1c18] sm:$0xff]
        %v1197 = vld [vmem:[%s239 + $0x1c20] sm:$0xff]
        %v1198 = vld [vmem:[%s239 + $0x1c28] sm:$0xff]
        %v1199 = vld [vmem:[%s239 + $0x1c30] sm:$0xff]
        %v1200 = vld [vmem:[%s239 + $0x1c38] sm:$0xff]
        %v1201 = vld [vmem:[%s239 + $0x1c40] sm:$0xff]
        %v1202 = vld [vmem:[%s239 + $0x1c48] sm:$0xff]
        %v1203 = vld [vmem:[%s239 + $0x1c50] sm:$0xff]
        %v1204 = vld [vmem:[%s239 + $0x1c58] sm:$0xff]
        %v1205 = vld [vmem:[%s239 + $0x1c60] sm:$0xff]
        %v1206 = vld [vmem:[%s239 + $0x1c68] sm:$0xff]
        %v1207 = vld [vmem:[%s239 + $0x1c70] sm:$0xff]
        %v1208 = vld [vmem:[%s239 + $0x1c78] sm:$0xff]
        %v1209 = vld [vmem:[%s239 + $0x1c80] sm:$0xff]
        %v1210 = vld [vmem:[%s239 + $0x1c88] sm:$0xff]
        %v1211 = vld [vmem:[%s239 + $0x1c90] sm:$0xff]
        %v1212 = vld [vmem:[%s239 + $0x1c98] sm:$0xff]
        %v1213 = vld [vmem:[%s239 + $0x1ca0] sm:$0xff]
        %v1214 = vld [vmem:[%s239 + $0x1ca8] sm:$0xff]
        %v1215 = vld [vmem:[%s239 + $0x1cb0] sm:$0xff]
        %v1216 = vld [vmem:[%s239 + $0x1cb8] sm:$0xff]
        %v1217 = vld [vmem:[%s239 + $0x1cc0] sm:$0xff]
        %v1218 = vld [vmem:[%s239 + $0x1cc8] sm:$0xff]
        %v1219 = vld [vmem:[%s239 + $0x1cd0] sm:$0xff]
        %v1220 = vld [vmem:[%s239 + $0x1cd8] sm:$0xff]
        %v1221 = vld [vmem:[%s239 + $0x1ce0] sm:$0xff]
        %v1222 = vld [vmem:[%s239 + $0x1ce8] sm:$0xff]
        %v1223 = vld [vmem:[%s239 + $0x1cf0] sm:$0xff]
        %v1224 = vld [vmem:[%s239 + $0x1cf8] sm:$0xff]
        %v1225 = vld [vmem:[%s239 + $0x1d00] sm:$0xff]
        %v1226 = vld [vmem:[%s239 + $0x1d08] sm:$0xff]
        %v1227 = vld [vmem:[%s239 + $0x1d10] sm:$0xff]
        %v1228 = vld [vmem:[%s239 + $0x1d18] sm:$0xff]
        %v1229 = vld [vmem:[%s239 + $0x1d20] sm:$0xff]
        %v1230 = vld [vmem:[%s239 + $0x1d28] sm:$0xff]
        %v1231 = vld [vmem:[%s239 + $0x1d30] sm:$0xff]
        %v1232 = vld [vmem:[%s239 + $0x1d38] sm:$0xff]
        %v1233 = vld [vmem:[%s239 + $0x1d40] sm:$0xff]
        %v1234 = vld [vmem:[%s239 + $0x1d48] sm:$0xff]
        %v1235 = vld [vmem:[%s239 + $0x1d50] sm:$0xff]
        %v1236 = vld [vmem:[%s239 + $0x1d58] sm:$0xff]
        %v1237 = vld [vmem:[%s239 + $0x1d60] sm:$0xff]
        %v1238 = vld [vmem:[%s239 + $0x1d68] sm:$0xff]
        %v1239 = vld [vmem:[%s239 + $0x1d70] sm:$0xff]
        %v1240 = vld [vmem:[%s239 + $0x1d78] sm:$0xff]
        %v1241 = vld [vmem:[%s239 + $0x1d80] sm:$0xff]
        %v1242 = vld [vmem:[%s239 + $0x1d88] sm:$0xff]
        %v1243 = vld [vmem:[%s239 + $0x1d90] sm:$0xff]
        %v1244 = vld [vmem:[%s239 + $0x1d98] sm:$0xff]
        %v1245 = vld [vmem:[%s239 + $0x1da0] sm:$0xff]
        %v1246 = vld [vmem:[%s239 + $0x1da8] sm:$0xff]
        %v1247 = vld [vmem:[%s239 + $0x1db0] sm:$0xff]
        %v1248 = vld [vmem:[%s239 + $0x1db8] sm:$0xff]
        %v1249 = vld [vmem:[%s239 + $0x1dc0] sm:$0xff]
        %v1250 = vld [vmem:[%s239 + $0x1dc8] sm:$0xff]
        %v1251 = vld [vmem:[%s239 + $0x1dd0] sm:$0xff]
        %v1252 = vld [vmem:[%s239 + $0x1dd8] sm:$0xff]
        %v1253 = vld [vmem:[%s239 + $0x1de0] sm:$0xff]
        %v1254 = vld [vmem:[%s239 + $0x1de8] sm:$0xff]
        %v1255 = vld [vmem:[%s239 + $0x1df0] sm:$0xff]
        %v1256 = vld [vmem:[%s239 + $0x1df8] sm:$0xff]
        %v1257 = vld [vmem:[%s239 + $0x1e00] sm:$0xff]
        %v1258 = vld [vmem:[%s239 + $0x1e08] sm:$0xff]
        %v1259 = vld [vmem:[%s239 + $0x1e10] sm:$0xff]
        %v1260 = vld [vmem:[%s239 + $0x1e18] sm:$0xff]
        %v1261 = vld [vmem:[%s239 + $0x1e20] sm:$0xff]
        %v1262 = vld [vmem:[%s239 + $0x1e28] sm:$0xff]
        %v1263 = vld [vmem:[%s239 + $0x1e30] sm:$0xff]
        %v1264 = vld [vmem:[%s239 + $0x1e38] sm:$0xff]
        %v1265 = vld [vmem:[%s239 + $0x1e40] sm:$0xff]
        %v1266 = vld [vmem:[%s239 + $0x1e48] sm:$0xff]
        %v1267 = vld [vmem:[%s239 + $0x1e50] sm:$0xff]
        %v1268 = vld [vmem:[%s239 + $0x1e58] sm:$0xff]
        %v1269 = vld [vmem:[%s239 + $0x1e60] sm:$0xff]
        %v1270 = vld [vmem:[%s239 + $0x1e68] sm:$0xff]
        %v1271 = vld [vmem:[%s239 + $0x1e70] sm:$0xff]
        %v1272 = vld [vmem:[%s239 + $0x1e78] sm:$0xff]
        %v1273 = vld [vmem:[%s239 + $0x1e80] sm:$0xff]
        %v1274 = vld [vmem:[%s239 + $0x1e88] sm:$0xff]
        %v1275 = vld [vmem:[%s239 + $0x1e90] sm:$0xff]
        %v1276 = vld [vmem:[%s239 + $0x1e98] sm:$0xff]
        %v1277 = vld [vmem:[%s239 + $0x1ea0] sm:$0xff]
        %v1278 = vld [vmem:[%s239 + $0x1ea8] sm:$0xff]
        %v1279 = vld [vmem:[%s239 + $0x1eb0] sm:$0xff]
        %v1280 = vld [vmem:[%s239 + $0x1eb8] sm:$0xff]
        %v1281 = vld [vmem:[%s239 + $0x1ec0] sm:$0xff]
        %v1282 = vld [vmem:[%s239 + $0x1ec8] sm:$0xff]
        %v1283 = vld [vmem:[%s239 + $0x1ed0] sm:$0xff]
        %v1284 = vld [vmem:[%s239 + $0x1ed8] sm:$0xff]
        %v1285 = vld [vmem:[%s239 + $0x1ee0] sm:$0xff]
        %v1286 = vld [vmem:[%s239 + $0x1ee8] sm:$0xff]
        %v1287 = vld [vmem:[%s239 + $0x1ef0] sm:$0xff]
        %v1288 = vld [vmem:[%s239 + $0x1ef8] sm:$0xff]
        %v1289 = vld [vmem:[%s239 + $0x1f00] sm:$0xff]
        %v1290 = vld [vmem:[%s239 + $0x1f08] sm:$0xff]
        %v1291 = vld [vmem:[%s239 + $0x1f10] sm:$0xff]
        %v1292 = vld [vmem:[%s239 + $0x1f18] sm:$0xff]
        %v1293 = vld [vmem:[%s239 + $0x1f20] sm:$0xff]
        %v1294 = vld [vmem:[%s239 + $0x1f28] sm:$0xff]
        %v1295 = vld [vmem:[%s239 + $0x1f30] sm:$0xff]
        %v1296 = vld [vmem:[%s239 + $0x1f38] sm:$0xff]
        %v1297 = vld [vmem:[%s239 + $0x1f40] sm:$0xff]
        %v1298 = vld [vmem:[%s239 + $0x1f48] sm:$0xff]
        %v1299 = vld [vmem:[%s239 + $0x1f50] sm:$0xff]
        %v1300 = vld [vmem:[%s239 + $0x1f58] sm:$0xff]
        %v1301 = vld [vmem:[%s239 + $0x1f60] sm:$0xff]
        %v1302 = vld [vmem:[%s239 + $0x1f68] sm:$0xff]
        %v1303 = vld [vmem:[%s239 + $0x1f70] sm:$0xff]
        %v1304 = vld [vmem:[%s239 + $0x1f78] sm:$0xff]
        %v1305 = vld [vmem:[%s239 + $0x1f80] sm:$0xff]
        %v1306 = vld [vmem:[%s239 + $0x1f88] sm:$0xff]
        %v1307 = vld [vmem:[%s239 + $0x1f90] sm:$0xff]
        %v1308 = vld [vmem:[%s239 + $0x1f98] sm:$0xff]
        %v1309 = vld [vmem:[%s239 + $0x1fa0] sm:$0xff]
        %v1310 = vld [vmem:[%s239 + $0x1fa8] sm:$0xff]
        %v1311 = vld [vmem:[%s239 + $0x1fb0] sm:$0xff]
        %v1312 = vld [vmem:[%s239 + $0x1fb8] sm:$0xff]
        %v1313 = vld [vmem:[%s239 + $0x1fc0] sm:$0xff]
        %v1314 = vld [vmem:[%s239 + $0x1fc8] sm:$0xff]
        %v1315 = vld [vmem:[%s239 + $0x1fd0] sm:$0xff]
        %v1316 = vld [vmem:[%s239 + $0x1fd8] sm:$0xff]
        %v1317 = vld [vmem:[%s239 + $0x1fe0] sm:$0xff]
        %v1318 = vld [vmem:[%s239 + $0x1fe8] sm:$0xff]
        %v1319 = vld [vmem:[%s239 + $0x1ff0] sm:$0xff]
        %v1320 = vld [vmem:[%s239 + $0x1ff8] sm:$0xff]
        %v1321 = vld [vmem:[%s239 + $0x2000] sm:$0xff]
        %v1322 = vld [vmem:[%s239 + $0x2008] sm:$0xff]
        %v1323 = vld [vmem:[%s239 + $0x2010] sm:$0xff]
        %v1324 = vld [vmem:[%s239 + $0x2018] sm:$0xff]
        %v1325 = vld [vmem:[%s239 + $0x2020] sm:$0xff]
        %v1326 = vld [vmem:[%s239 + $0x2028] sm:$0xff]
        %v1327 = vld [vmem:[%s239 + $0x2030] sm:$0xff]
        %v1328 = vld [vmem:[%s239 + $0x2038] sm:$0xff]
        %v1329 = vld [vmem:[%s239 + $0x2040] sm:$0xff]
        %v1330 = vld [vmem:[%s239 + $0x2048] sm:$0xff]
        %v1331 = vld [vmem:[%s239 + $0x2050] sm:$0xff]
        %v1332 = vld [vmem:[%s239 + $0x2058] sm:$0xff]
        %v1333 = vld [vmem:[%s239 + $0x2060] sm:$0xff]
        %v1334 = vld [vmem:[%s239 + $0x2068] sm:$0xff]
        %v1335 = vld [vmem:[%s239 + $0x2070] sm:$0xff]
        %v1336 = vld [vmem:[%s239 + $0x2078] sm:$0xff]
        %v1337 = vld [vmem:[%s239 + $0x2080] sm:$0xff]
        %v1338 = vld [vmem:[%s239 + $0x2088] sm:$0xff]
        %v1339 = vld [vmem:[%s239 + $0x2090] sm:$0xff]
        %v1340 = vld [vmem:[%s239 + $0x2098] sm:$0xff]
        %v1341 = vld [vmem:[%s239 + $0x20a0] sm:$0xff]
        %v1342 = vld [vmem:[%s239 + $0x20a8] sm:$0xff]
        %v1343 = vld [vmem:[%s239 + $0x20b0] sm:$0xff]
        %v1344 = vld [vmem:[%s239 + $0x20b8] sm:$0xff]
        %v1345 = vld [vmem:[%s239 + $0x20c0] sm:$0xff]
        %v1346 = vld [vmem:[%s239 + $0x20c8] sm:$0xff]
        %v1347 = vld [vmem:[%s239 + $0x20d0] sm:$0xff]
        %v1348 = vld [vmem:[%s239 + $0x20d8] sm:$0xff]
        %v1349 = vld [vmem:[%s239 + $0x20e0] sm:$0xff]
        %v1350 = vld [vmem:[%s239 + $0x20e8] sm:$0xff]
        %v1351 = vld [vmem:[%s239 + $0x20f0] sm:$0xff]
        %v1352 = vld [vmem:[%s239 + $0x20f8] sm:$0xff]
        %v1353 = vld [vmem:[%s239 + $0x2100] sm:$0xff]
        %v1354 = vld [vmem:[%s239 + $0x2108] sm:$0xff]
        %v1355 = vld [vmem:[%s239 + $0x2110] sm:$0xff]
        %v1356 = vld [vmem:[%s239 + $0x2118] sm:$0xff]
        %v1357 = vld [vmem:[%s239 + $0x2120] sm:$0xff]
        %v1358 = vld [vmem:[%s239 + $0x2128] sm:$0xff]
        %v1359 = vld [vmem:[%s239 + $0x2130] sm:$0xff]
        %v1360 = vld [vmem:[%s239 + $0x2138] sm:$0xff]
        %v1361 = vld [vmem:[%s239 + $0x2140] sm:$0xff]
        %v1362 = vld [vmem:[%s239 + $0x2148] sm:$0xff]
        %v1363 = vld [vmem:[%s239 + $0x2150] sm:$0xff]
        %v1364 = vld [vmem:[%s239 + $0x2158] sm:$0xff]
        %v1365 = vld [vmem:[%s239 + $0x2160] sm:$0xff]
        %v1366 = vld [vmem:[%s239 + $0x2168] sm:$0xff]
        %v1367 = vld [vmem:[%s239 + $0x2170] sm:$0xff]
        %v1368 = vld [vmem:[%s239 + $0x2178] sm:$0xff]
        %v1369 = vld [vmem:[%s239 + $0x2180] sm:$0xff]
        %v1370 = vld [vmem:[%s239 + $0x2188] sm:$0xff]
        %v1371 = vld [vmem:[%s239 + $0x2190] sm:$0xff]
        %v1372 = vld [vmem:[%s239 + $0x2198] sm:$0xff]
        %v1373 = vld [vmem:[%s239 + $0x21a0] sm:$0xff]
        %v1374 = vld [vmem:[%s239 + $0x21a8] sm:$0xff]
        %v1375 = vld [vmem:[%s239 + $0x21b0] sm:$0xff]
        %v1376 = vld [vmem:[%s239 + $0x21b8] sm:$0xff]
        %v1377 = vld [vmem:[%s239 + $0x21c0] sm:$0xff]
        %v1378 = vld [vmem:[%s239 + $0x21c8] sm:$0xff]
        %v1379 = vld [vmem:[%s239 + $0x21d0] sm:$0xff]
        %v1380 = vld [vmem:[%s239 + $0x21d8] sm:$0xff]
        %v1381 = vld [vmem:[%s239 + $0x21e0] sm:$0xff]
        %v1382 = vld [vmem:[%s239 + $0x21e8] sm:$0xff]
        %v1383 = vld [vmem:[%s239 + $0x21f0] sm:$0xff]
        %v1384 = vld [vmem:[%s239 + $0x21f8] sm:$0xff]
        %v1385 = vld [vmem:[%s239 + $0x2200] sm:$0xff]
        %v1386 = vld [vmem:[%s239 + $0x2208] sm:$0xff]
        %v1387 = vld [vmem:[%s239 + $0x2210] sm:$0xff]
        %v1388 = vld [vmem:[%s239 + $0x2218] sm:$0xff]
        %v1389 = vld [vmem:[%s239 + $0x2220] sm:$0xff]
        %v1390 = vld [vmem:[%s239 + $0x2228] sm:$0xff]
        %v1391 = vld [vmem:[%s239 + $0x2230] sm:$0xff]
        %v1392 = vld [vmem:[%s239 + $0x2238] sm:$0xff]
        %v1393 = vld [vmem:[%s239 + $0x2240] sm:$0xff]
        %v1394 = vld [vmem:[%s239 + $0x2248] sm:$0xff]
        %v1395 = vld [vmem:[%s239 + $0x2250] sm:$0xff]
        %v1396 = vld [vmem:[%s239 + $0x2258] sm:$0xff]
        %v1397 = vld [vmem:[%s239 + $0x2260] sm:$0xff]
        %v1398 = vld [vmem:[%s239 + $0x2268] sm:$0xff]
        %v1399 = vld [vmem:[%s239 + $0x2270] sm:$0xff]
        %v1400 = vld [vmem:[%s239 + $0x2278] sm:$0xff]
        %v1401 = vld [vmem:[%s239 + $0x2280] sm:$0xff]
        %v1402 = vld [vmem:[%s239 + $0x2288] sm:$0xff]
        %v1403 = vld [vmem:[%s239 + $0x2290] sm:$0xff]
        %v1404 = vld [vmem:[%s239 + $0x2298] sm:$0xff]
        %v1405 = vld [vmem:[%s239 + $0x22a0] sm:$0xff]
        %v1406 = vld [vmem:[%s239 + $0x22a8] sm:$0xff]
        %v1407 = vld [vmem:[%s239 + $0x22b0] sm:$0xff]
        %v1408 = vld [vmem:[%s239 + $0x22b8] sm:$0xff]
        %v1409 = vld [vmem:[%s239 + $0x22c0] sm:$0xff]
        %v1410 = vld [vmem:[%s239 + $0x22c8] sm:$0xff]
        %v1411 = vld [vmem:[%s239 + $0x22d0] sm:$0xff]
        %v1412 = vld [vmem:[%s239 + $0x22d8] sm:$0xff]
        %v1413 = vld [vmem:[%s239 + $0x22e0] sm:$0xff]
        %v1414 = vld [vmem:[%s239 + $0x22e8] sm:$0xff]
        %v1415 = vld [vmem:[%s239 + $0x22f0] sm:$0xff]
        %v1416 = vld [vmem:[%s239 + $0x22f8] sm:$0xff]
        %v1417 = vld [vmem:[%s239 + $0x2300] sm:$0xff]
        %v1418 = vld [vmem:[%s239 + $0x2308] sm:$0xff]
        %v1419 = vld [vmem:[%s239 + $0x2310] sm:$0xff]
        %v1420 = vld [vmem:[%s239 + $0x2318] sm:$0xff]
        %v1421 = vld [vmem:[%s239 + $0x2320] sm:$0xff]
        %v1422 = vld [vmem:[%s239 + $0x2328] sm:$0xff]
        %v1423 = vld [vmem:[%s239 + $0x2330] sm:$0xff]
        %v1424 = vld [vmem:[%s239 + $0x2338] sm:$0xff]
        %v1425 = vld [vmem:[%s239 + $0x2340] sm:$0xff]
        %v1426 = vld [vmem:[%s239 + $0x2348] sm:$0xff]
        %v1427 = vld [vmem:[%s239 + $0x2350] sm:$0xff]
        %v1428 = vld [vmem:[%s239 + $0x2358] sm:$0xff]
        %v1429 = vld [vmem:[%s239 + $0x2360] sm:$0xff]
        %v1430 = vld [vmem:[%s239 + $0x2368] sm:$0xff]
        %v1431 = vld [vmem:[%s239 + $0x2370] sm:$0xff]
        %v1432 = vld [vmem:[%s239 + $0x2378] sm:$0xff]
        %v1433 = vld [vmem:[%s239 + $0x2380] sm:$0xff]
        %v1434 = vld [vmem:[%s239 + $0x2388] sm:$0xff]
        %v1435 = vld [vmem:[%s239 + $0x2390] sm:$0xff]
        %v1436 = vld [vmem:[%s239 + $0x2398] sm:$0xff]
        %v1437 = vld [vmem:[%s239 + $0x23a0] sm:$0xff]
        %v1438 = vld [vmem:[%s239 + $0x23a8] sm:$0xff]
        %v1439 = vld [vmem:[%s239 + $0x23b0] sm:$0xff]
        %v1440 = vld [vmem:[%s239 + $0x23b8] sm:$0xff]
        %v1441 = vld [vmem:[%s239 + $0x23c0] sm:$0xff]
        %v1442 = vld [vmem:[%s239 + $0x23c8] sm:$0xff]
        %v1443 = vld [vmem:[%s239 + $0x23d0] sm:$0xff]
        %v1444 = vld [vmem:[%s239 + $0x23d8] sm:$0xff]
        %v1445 = vld [vmem:[%s239 + $0x23e0] sm:$0xff]
        %v1446 = vld [vmem:[%s239 + $0x23e8] sm:$0xff]
        %v1447 = vld [vmem:[%s239 + $0x23f0] sm:$0xff]
        %v1448 = vld [vmem:[%s239 + $0x23f8] sm:$0xff]
        %v1449 = vld [vmem:[%s239 + $0x2400] sm:$0xff]
        %v1450 = vld [vmem:[%s239 + $0x2408] sm:$0xff]
        %v1451 = vld [vmem:[%s239 + $0x2410] sm:$0xff]
        %v1452 = vld [vmem:[%s239 + $0x2418] sm:$0xff]
        %v1453 = vld [vmem:[%s239 + $0x2420] sm:$0xff]
        %v1454 = vld [vmem:[%s239 + $0x2428] sm:$0xff]
        %v1455 = vld [vmem:[%s239 + $0x2430] sm:$0xff]
        %v1456 = vld [vmem:[%s239 + $0x2438] sm:$0xff]
        %v1457 = vld [vmem:[%s239 + $0x2440] sm:$0xff]
        %v1458 = vld [vmem:[%s239 + $0x2448] sm:$0xff]
        %v1459 = vld [vmem:[%s239 + $0x2450] sm:$0xff]
        %v1460 = vld [vmem:[%s239 + $0x2458] sm:$0xff]
        %v1461 = vld [vmem:[%s239 + $0x2460] sm:$0xff]
        %v1462 = vld [vmem:[%s239 + $0x2468] sm:$0xff]
        %v1463 = vld [vmem:[%s239 + $0x2470] sm:$0xff]
        %v1464 = vld [vmem:[%s239 + $0x2478] sm:$0xff]
        %v1465 = vld [vmem:[%s239 + $0x2480] sm:$0xff]
        %v1466 = vld [vmem:[%s239 + $0x2488] sm:$0xff]
        %v1467 = vld [vmem:[%s239 + $0x2490] sm:$0xff]
        %v1468 = vld [vmem:[%s239 + $0x2498] sm:$0xff]
        %v1469 = vld [vmem:[%s239 + $0x24a0] sm:$0xff]
        %v1470 = vld [vmem:[%s239 + $0x24a8] sm:$0xff]
        %v1471 = vld [vmem:[%s239 + $0x24b0] sm:$0xff]
        %v1472 = vld [vmem:[%s239 + $0x24b8] sm:$0xff]
        %v1473 = vld [vmem:[%s239 + $0x24c0] sm:$0xff]
        %v1474 = vld [vmem:[%s239 + $0x24c8] sm:$0xff]
        %v1475 = vld [vmem:[%s239 + $0x24d0] sm:$0xff]
        %v1476 = vld [vmem:[%s239 + $0x24d8] sm:$0xff]
        %v1477 = vld [vmem:[%s239 + $0x24e0] sm:$0xff]
        %v1478 = vld [vmem:[%s239 + $0x24e8] sm:$0xff]
        %v1479 = vld [vmem:[%s239 + $0x24f0] sm:$0xff]
        %v1480 = vld [vmem:[%s239 + $0x24f8] sm:$0xff]
        %v1481 = vld [vmem:[%s239 + $0x2500] sm:$0xff]
        %v1482 = vld [vmem:[%s239 + $0x2508] sm:$0xff]
        %v1483 = vld [vmem:[%s239 + $0x2510] sm:$0xff]
        %v1484 = vld [vmem:[%s239 + $0x2518] sm:$0xff]
        %v1485 = vld [vmem:[%s239 + $0x2520] sm:$0xff]
        %v1486 = vld [vmem:[%s239 + $0x2528] sm:$0xff]
        %v1487 = vld [vmem:[%s239 + $0x2530] sm:$0xff]
        %v1488 = vld [vmem:[%s239 + $0x2538] sm:$0xff]
        %v1489 = vld [vmem:[%s239 + $0x2540] sm:$0xff]
        %v1490 = vld [vmem:[%s239 + $0x2548] sm:$0xff]
        %v1491 = vld [vmem:[%s239 + $0x2550] sm:$0xff]
        %v1492 = vld [vmem:[%s239 + $0x2558] sm:$0xff]
        %v1493 = vld [vmem:[%s239 + $0x2560] sm:$0xff]
        %v1494 = vld [vmem:[%s239 + $0x2568] sm:$0xff]
        %v1495 = vld [vmem:[%s239 + $0x2570] sm:$0xff]
        %v1496 = vld [vmem:[%s239 + $0x2578] sm:$0xff]
        %v1497 = vld [vmem:[%s239 + $0x2580] sm:$0xff]
        %v1498 = vld [vmem:[%s239 + $0x2588] sm:$0xff]
        %v1499 = vld [vmem:[%s239 + $0x2590] sm:$0xff]
        %v1500 = vld [vmem:[%s239 + $0x2598] sm:$0xff]
        %v1501 = vld [vmem:[%s239 + $0x25a0] sm:$0xff]
        %v1502 = vld [vmem:[%s239 + $0x25a8] sm:$0xff]
        %v1503 = vld [vmem:[%s239 + $0x25b0] sm:$0xff]
        %v1504 = vld [vmem:[%s239 + $0x25b8] sm:$0xff]
        %v1505 = vld [vmem:[%s239 + $0x25c0] sm:$0xff]
        %v1506 = vld [vmem:[%s239 + $0x25c8] sm:$0xff]
        %v1507 = vld [vmem:[%s239 + $0x25d0] sm:$0xff]
        %v1508 = vld [vmem:[%s239 + $0x25d8] sm:$0xff]
        %v1509 = vld [vmem:[%s239 + $0x25e0] sm:$0xff]
        %v1510 = vld [vmem:[%s239 + $0x25e8] sm:$0xff]
        %v1511 = vld [vmem:[%s239 + $0x25f0] sm:$0xff]
        %v1512 = vld [vmem:[%s239 + $0x25f8] sm:$0xff]
        %v1513 = vld [vmem:[%s239 + $0x2600] sm:$0xff]
        %v1514 = vld [vmem:[%s239 + $0x2608] sm:$0xff]
        %v1515 = vld [vmem:[%s239 + $0x2610] sm:$0xff]
        %v1516 = vld [vmem:[%s239 + $0x2618] sm:$0xff]
        %v1517 = vld [vmem:[%s239 + $0x2620] sm:$0xff]
        %v1518 = vld [vmem:[%s239 + $0x2628] sm:$0xff]
        %v1519 = vld [vmem:[%s239 + $0x2630] sm:$0xff]
        %v1520 = vld [vmem:[%s239 + $0x2638] sm:$0xff]
        %v1521 = vld [vmem:[%s239 + $0x2640] sm:$0xff]
        %v1522 = vld [vmem:[%s239 + $0x2648] sm:$0xff]
        %v1523 = vld [vmem:[%s239 + $0x2650] sm:$0xff]
        %v1524 = vld [vmem:[%s239 + $0x2658] sm:$0xff]
        %v1525 = vld [vmem:[%s239 + $0x2660] sm:$0xff]
        %v1526 = vld [vmem:[%s239 + $0x2668] sm:$0xff]
        %v1527 = vld [vmem:[%s239 + $0x2670] sm:$0xff]
        %v1528 = vld [vmem:[%s239 + $0x2678] sm:$0xff]
        %v1529 = vld [vmem:[%s239 + $0x2680] sm:$0xff]
        %v1530 = vld [vmem:[%s239 + $0x2688] sm:$0xff]
        %v1531 = vld [vmem:[%s239 + $0x2690] sm:$0xff]
        %v1532 = vld [vmem:[%s239 + $0x2698] sm:$0xff]
        %v1533 = vld [vmem:[%s239 + $0x26a0] sm:$0xff]
        %v1534 = vld [vmem:[%s239 + $0x26a8] sm:$0xff]
        %v1535 = vld [vmem:[%s239 + $0x26b0] sm:$0xff]
        %v1536 = vld [vmem:[%s239 + $0x26b8] sm:$0xff]
        %v1537 = vld [vmem:[%s239 + $0x26c0] sm:$0xff]
        %v1538 = vld [vmem:[%s239 + $0x26c8] sm:$0xff]
        %v1539 = vld [vmem:[%s239 + $0x26d0] sm:$0xff]
        %v1540 = vld [vmem:[%s239 + $0x26d8] sm:$0xff]
        %v1541 = vld [vmem:[%s239 + $0x26e0] sm:$0xff]
        %v1542 = vld [vmem:[%s239 + $0x26e8] sm:$0xff]
        %v1543 = vld [vmem:[%s239 + $0x26f0] sm:$0xff]
        %v1544 = vld [vmem:[%s239 + $0x26f8] sm:$0xff]
        %v1545 = vld [vmem:[%s239 + $0x2700] sm:$0xff]
        %v1546 = vld [vmem:[%s239 + $0x2708] sm:$0xff]
        %v1547 = vld [vmem:[%s239 + $0x2710] sm:$0xff]
        %v1548 = vld [vmem:[%s239 + $0x2718] sm:$0xff]
        %v1549 = vld [vmem:[%s239 + $0x2720] sm:$0xff]
        %v1550 = vld [vmem:[%s239 + $0x2728] sm:$0xff]
        %v1551 = vld [vmem:[%s239 + $0x2730] sm:$0xff]
        %v1552 = vld [vmem:[%s239 + $0x2738] sm:$0xff]
        %v1553 = vld [vmem:[%s239 + $0x2740] sm:$0xff]
        %v1554 = vld [vmem:[%s239 + $0x2748] sm:$0xff]
        %v1555 = vld [vmem:[%s239 + $0x2750] sm:$0xff]
        %v1556 = vld [vmem:[%s239 + $0x2758] sm:$0xff]
        %v1557 = vld [vmem:[%s239 + $0x2760] sm:$0xff]
        %v1558 = vld [vmem:[%s239 + $0x2768] sm:$0xff]
        %v1559 = vld [vmem:[%s239 + $0x2770] sm:$0xff]
        %v1560 = vld [vmem:[%s239 + $0x2778] sm:$0xff]
        %v1561 = vld [vmem:[%s239 + $0x2780] sm:$0xff]
        %v1562 = vld [vmem:[%s239 + $0x2788] sm:$0xff]
        %v1563 = vld [vmem:[%s239 + $0x2790] sm:$0xff]
        %v1564 = vld [vmem:[%s239 + $0x2798] sm:$0xff]
        %v1565 = vld [vmem:[%s239 + $0x27a0] sm:$0xff]
        %v1566 = vld [vmem:[%s239 + $0x27a8] sm:$0xff]
        %v1567 = vld [vmem:[%s239 + $0x27b0] sm:$0xff]
        %v1568 = vld [vmem:[%s239 + $0x27b8] sm:$0xff]
        %v1569 = vld [vmem:[%s239 + $0x27c0] sm:$0xff]
        %v1570 = vld [vmem:[%s239 + $0x27c8] sm:$0xff]
        %v1571 = vld [vmem:[%s239 + $0x27d0] sm:$0xff]
        %v1572 = vld [vmem:[%s239 + $0x27d8] sm:$0xff]
        %v1573 = vld [vmem:[%s239 + $0x27e0] sm:$0xff]
        %v1574 = vld [vmem:[%s239 + $0x27e8] sm:$0xff]
        %v1575 = vld [vmem:[%s239 + $0x27f0] sm:$0xff]
        %v1576 = vld [vmem:[%s239 + $0x27f8] sm:$0xff]
        %v1587 = vcombine.high %v287, %v287
        %v1589 = vunpack.c.l.s4 1983009808
        %v1590 = vunpack.c.0.s8 %v1589
        %v1591 = vlaneseq
        %v1592 = vshrl.u32 %v1591, 7
        %v1593 = vsub.s32 %v1590, %v1592
        %v1594 = vrot.slane %v287, %v1593
        %v1596 = vunpack.c.l.s4 1983009808
        %v1597 = vunpack.c.0.s8 %v1596
        %v1598 = vlaneseq
        %v1599 = vshrl.u32 %v1598, 7
        %v1600 = vsub.s32 %v1597, %v1599
        %v1601 = vrot.slane %v1587, %v1600
        %v1602 = vcombine.high %v1594, %v1594
        %v1603 = vcombine.high %v1601, %v1601
        %v1604 = vcombine.high %v288, %v288
        %v1606 = vunpack.c.l.s4 1983009808
        %v1607 = vunpack.c.0.s8 %v1606
        %v1608 = vlaneseq
        %v1609 = vshrl.u32 %v1608, 7
        %v1610 = vsub.s32 %v1607, %v1609
        %v1611 = vrot.slane %v288, %v1610
        %v1613 = vunpack.c.l.s4 1983009808
        %v1614 = vunpack.c.0.s8 %v1613
        %v1615 = vlaneseq
        %v1616 = vshrl.u32 %v1615, 7
        %v1617 = vsub.s32 %v1614, %v1616
        %v1618 = vrot.slane %v1604, %v1617
        %v1619 = vcombine.high %v1611, %v1611
        %v1620 = vcombine.high %v1618, %v1618
        %v1621 = vcombine.high %v289, %v289
        %v1623 = vunpack.c.l.s4 1983009808
        %v1624 = vunpack.c.0.s8 %v1623
        %v1625 = vlaneseq
        %v1626 = vshrl.u32 %v1625, 7
        %v1627 = vsub.s32 %v1624, %v1626
        %v1628 = vrot.slane %v289, %v1627
        %v1630 = vunpack.c.l.s4 1983009808
        %v1631 = vunpack.c.0.s8 %v1630
        %v1632 = vlaneseq
        %v1633 = vshrl.u32 %v1632, 7
        %v1634 = vsub.s32 %v1631, %v1633
        %v1635 = vrot.slane %v1621, %v1634
        %v1636 = vcombine.high %v1628, %v1628
        %v1637 = vcombine.high %v1635, %v1635
        %v1638 = vcombine.high %v290, %v290
        %v1640 = vunpack.c.l.s4 1983009808
        %v1641 = vunpack.c.0.s8 %v1640
        %v1642 = vlaneseq
        %v1643 = vshrl.u32 %v1642, 7
        %v1644 = vsub.s32 %v1641, %v1643
        %v1645 = vrot.slane %v290, %v1644
        %v1647 = vunpack.c.l.s4 1983009808
        %v1648 = vunpack.c.0.s8 %v1647
        %v1649 = vlaneseq
        %v1650 = vshrl.u32 %v1649, 7
        %v1651 = vsub.s32 %v1648, %v1650
        %v1652 = vrot.slane %v1638, %v1651
        %v1653 = vcombine.high %v1645, %v1645
        %v1654 = vcombine.high %v1652, %v1652
        %v1655 = vcombine.high %v291, %v291
        %v1657 = vunpack.c.l.s4 1983009808
        %v1658 = vunpack.c.0.s8 %v1657
        %v1659 = vlaneseq
        %v1660 = vshrl.u32 %v1659, 7
        %v1661 = vsub.s32 %v1658, %v1660
        %v1662 = vrot.slane %v291, %v1661
        %v1664 = vunpack.c.l.s4 1983009808
        %v1665 = vunpack.c.0.s8 %v1664
        %v1666 = vlaneseq
        %v1667 = vshrl.u32 %v1666, 7
        %v1668 = vsub.s32 %v1665, %v1667
        %v1669 = vrot.slane %v1655, %v1668
        %v1670 = vcombine.high %v1662, %v1662
        %v1671 = vcombine.high %v1669, %v1669
        %v1672 = vcombine.high %v292, %v292
        %v1674 = vunpack.c.l.s4 1983009808
        %v1675 = vunpack.c.0.s8 %v1674
        %v1676 = vlaneseq
        %v1677 = vshrl.u32 %v1676, 7
        %v1678 = vsub.s32 %v1675, %v1677
        %v1679 = vrot.slane %v292, %v1678
        %v1681 = vunpack.c.l.s4 1983009808
        %v1682 = vunpack.c.0.s8 %v1681
        %v1683 = vlaneseq
        %v1684 = vshrl.u32 %v1683, 7
        %v1685 = vsub.s32 %v1682, %v1684
        %v1686 = vrot.slane %v1672, %v1685
        %v1687 = vcombine.high %v1679, %v1679
        %v1688 = vcombine.high %v1686, %v1686
        %v1689 = vcombine.high %v293, %v293
        %v1691 = vunpack.c.l.s4 1983009808
        %v1692 = vunpack.c.0.s8 %v1691
        %v1693 = vlaneseq
        %v1694 = vshrl.u32 %v1693, 7
        %v1695 = vsub.s32 %v1692, %v1694
        %v1696 = vrot.slane %v293, %v1695
        %v1698 = vunpack.c.l.s4 1983009808
        %v1699 = vunpack.c.0.s8 %v1698
        %v1700 = vlaneseq
        %v1701 = vshrl.u32 %v1700, 7
        %v1702 = vsub.s32 %v1699, %v1701
        %v1703 = vrot.slane %v1689, %v1702
        %v1704 = vcombine.high %v1696, %v1696
        %v1705 = vcombine.high %v1703, %v1703
        %v1706 = vcombine.high %v294, %v294
        %v1708 = vunpack.c.l.s4 1983009808
        %v1709 = vunpack.c.0.s8 %v1708
        %v1710 = vlaneseq
        %v1711 = vshrl.u32 %v1710, 7
        %v1712 = vsub.s32 %v1709, %v1711
        %v1713 = vrot.slane %v294, %v1712
        %v1715 = vunpack.c.l.s4 1983009808
        %v1716 = vunpack.c.0.s8 %v1715
        %v1717 = vlaneseq
        %v1718 = vshrl.u32 %v1717, 7
        %v1719 = vsub.s32 %v1716, %v1718
        %v1720 = vrot.slane %v1706, %v1719
        %v1721 = vcombine.high %v1713, %v1713
        %v1722 = vcombine.high %v1720, %v1720
        %v1723 = vcombine.high %v295, %v295
        %v1725 = vunpack.c.l.s4 1983009808
        %v1726 = vunpack.c.0.s8 %v1725
        %v1727 = vlaneseq
        %v1728 = vshrl.u32 %v1727, 7
        %v1729 = vsub.s32 %v1726, %v1728
        %v1730 = vrot.slane %v295, %v1729
        %v1732 = vunpack.c.l.s4 1983009808
        %v1733 = vunpack.c.0.s8 %v1732
        %v1734 = vlaneseq
        %v1735 = vshrl.u32 %v1734, 7
        %v1736 = vsub.s32 %v1733, %v1735
        %v1737 = vrot.slane %v1723, %v1736
        %v1738 = vcombine.high %v1730, %v1730
        %v1739 = vcombine.high %v1737, %v1737
        %v1740 = vcombine.high %v296, %v296
        %v1742 = vunpack.c.l.s4 1983009808
        %v1743 = vunpack.c.0.s8 %v1742
        %v1744 = vlaneseq
        %v1745 = vshrl.u32 %v1744, 7
        %v1746 = vsub.s32 %v1743, %v1745
        %v1747 = vrot.slane %v296, %v1746
        %v1749 = vunpack.c.l.s4 1983009808
        %v1750 = vunpack.c.0.s8 %v1749
        %v1751 = vlaneseq
        %v1752 = vshrl.u32 %v1751, 7
        %v1753 = vsub.s32 %v1750, %v1752
        %v1754 = vrot.slane %v1740, %v1753
        %v1755 = vcombine.high %v1747, %v1747
        %v1756 = vcombine.high %v1754, %v1754
        %1797 = vmatprep.subr.mxu0 %v328
        %1798 = vmatpush1.msra.mxu0 %v327
        %1799 = vmatprep.subr.mxu0 %v326
        %1800 = vmatpush1.msra.mxu0 %v325
        %1801 = vmatprep.subr.mxu0 %v324
        %1802 = vmatpush1.msra.mxu0 %v323
        %1803 = vmatprep.subr.mxu0 %v322
        %1804 = vmatpush1.msra.mxu0 %v321
        %1805 = vmatprep.subr.mxu0 %v320
        %1806 = vmatpush1.msra.mxu0 %v319
        %1807 = vmatprep.subr.mxu0 %v318
        %1808 = vmatpush1.msra.mxu0 %v317
        %1809 = vmatprep.subr.mxu0 %v316
        %1810 = vmatpush1.msra.mxu0 %v315
        %1811 = vmatprep.subr.mxu0 %v314
        %1812 = vmatpush1.msra.mxu0 %v313
        %1813 = vmatprep.subr.mxu0 %v312
        %1814 = vmatpush1.msra.mxu0 %v311
        %1815 = vmatprep.subr.mxu0 %v310
        %1816 = vmatpush1.msra.mxu0 %v309
        %1817 = vmatprep.subr.mxu0 %v308
        %1818 = vmatpush1.msra.mxu0 %v307
        %1819 = vmatprep.subr.mxu0 %v306
        %1820 = vmatpush1.msra.mxu0 %v305
        %1821 = vmatprep.subr.mxu0 %v304
        %1822 = vmatpush1.msra.mxu0 %v303
        %1823 = vmatprep.subr.mxu0 %v302
        %1824 = vmatpush1.msra.mxu0 %v301
        %1825 = vmatprep.subr.mxu0 %v300
        %1826 = vmatpush1.msra.mxu0 %v299
        %1827 = vmatprep.subr.mxu0 %v298
        %1828 = vmatpush1.msra.mxu0 %v297
        %1829 = vmatprep.subr.mxu0 %v360
        %1830 = vmatpush2.msra.mxu0 %v359
        %1831 = vmatprep.subr.mxu0 %v358
        %1832 = vmatpush2.msra.mxu0 %v357
        %1833 = vmatprep.subr.mxu0 %v356
        %1834 = vmatpush2.msra.mxu0 %v355
        %1835 = vmatprep.subr.mxu0 %v354
        %1836 = vmatpush2.msra.mxu0 %v353
        %1837 = vmatprep.subr.mxu0 %v352
        %1838 = vmatpush2.msra.mxu0 %v351
        %1839 = vmatprep.subr.mxu0 %v350
        %1840 = vmatpush2.msra.mxu0 %v349
        %1841 = vmatprep.subr.mxu0 %v348
        %1842 = vmatpush2.msra.mxu0 %v347
        %1843 = vmatprep.subr.mxu0 %v346
        %1844 = vmatpush2.msra.mxu0 %v345
        %1845 = vmatprep.subr.mxu0 %v344
        %1846 = vmatpush2.msra.mxu0 %v343
        %1847 = vmatprep.subr.mxu0 %v342
        %1848 = vmatpush2.msra.mxu0 %v341
        %1849 = vmatprep.subr.mxu0 %v340
        %1850 = vmatpush2.msra.mxu0 %v339
        %1851 = vmatprep.subr.mxu0 %v338
        %1852 = vmatpush2.msra.mxu0 %v337
        %1853 = vmatprep.subr.mxu0 %v336
        %1854 = vmatpush2.msra.mxu0 %v335
        %1855 = vmatprep.subr.mxu0 %v334
        %1856 = vmatpush2.msra.mxu0 %v333
        %1857 = vmatprep.subr.mxu0 %v332
        %1858 = vmatpush2.msra.mxu0 %v331
        %1859 = vmatprep.subr.mxu0 %v330
        %1860 = vmatpush2.msra.mxu0 %v329
        %1861 = vmatprep.mubr.f32.mxu0 %v1602
        %1862 = vmatmul.mubr.f32.gmra.mxu0 %v1594
        %v1863 = vpop.f32.mrf.mxu0
        %v1864 = vadd.f32 0.0, %v1863
        %v1865 = vpop.f32.mrf.mxu0
        %v1866 = vadd.f32 0.0, %v1865
        %1867 = vdwg.mxu0
        %1868 = vmatprep.subr.mxu0 %v392
        %1869 = vmatpush1.msra.mxu0 %v391
        %1870 = vmatprep.subr.mxu0 %v390
        %1871 = vmatpush1.msra.mxu0 %v389
        %1872 = vmatprep.subr.mxu0 %v388
        %1873 = vmatpush1.msra.mxu0 %v387
        %1874 = vmatprep.subr.mxu0 %v386
        %1875 = vmatpush1.msra.mxu0 %v385
        %1876 = vmatprep.subr.mxu0 %v384
        %1877 = vmatpush1.msra.mxu0 %v383
        %1878 = vmatprep.subr.mxu0 %v382
        %1879 = vmatpush1.msra.mxu0 %v381
        %1880 = vmatprep.subr.mxu0 %v380
        %1881 = vmatpush1.msra.mxu0 %v379
        %1882 = vmatprep.subr.mxu0 %v378
        %1883 = vmatpush1.msra.mxu0 %v377
        %1884 = vmatprep.subr.mxu0 %v376
        %1885 = vmatpush1.msra.mxu0 %v375
        %1886 = vmatprep.subr.mxu0 %v374
        %1887 = vmatpush1.msra.mxu0 %v373
        %1888 = vmatprep.subr.mxu0 %v372
        %1889 = vmatpush1.msra.mxu0 %v371
        %1890 = vmatprep.subr.mxu0 %v370
        %1891 = vmatpush1.msra.mxu0 %v369
        %1892 = vmatprep.subr.mxu0 %v368
        %1893 = vmatpush1.msra.mxu0 %v367
        %1894 = vmatprep.subr.mxu0 %v366
        %1895 = vmatpush1.msra.mxu0 %v365
        %1896 = vmatprep.subr.mxu0 %v364
        %1897 = vmatpush1.msra.mxu0 %v363
        %1898 = vmatprep.subr.mxu0 %v362
        %1899 = vmatpush1.msra.mxu0 %v361
        %1900 = vmatprep.subr.mxu0 %v424
        %1901 = vmatpush2.msra.mxu0 %v423
        %1902 = vmatprep.subr.mxu0 %v422
        %1903 = vmatpush2.msra.mxu0 %v421
        %1904 = vmatprep.subr.mxu0 %v420
        %1905 = vmatpush2.msra.mxu0 %v419
        %1906 = vmatprep.subr.mxu0 %v418
        %1907 = vmatpush2.msra.mxu0 %v417
        %1908 = vmatprep.subr.mxu0 %v416
        %1909 = vmatpush2.msra.mxu0 %v415
        %1910 = vmatprep.subr.mxu0 %v414
        %1911 = vmatpush2.msra.mxu0 %v413
        %1912 = vmatprep.subr.mxu0 %v412
        %1913 = vmatpush2.msra.mxu0 %v411
        %1914 = vmatprep.subr.mxu0 %v410
        %1915 = vmatpush2.msra.mxu0 %v409
        %1916 = vmatprep.subr.mxu0 %v408
        %1917 = vmatpush2.msra.mxu0 %v407
        %1918 = vmatprep.subr.mxu0 %v406
        %1919 = vmatpush2.msra.mxu0 %v405
        %1920 = vmatprep.subr.mxu0 %v404
        %1921 = vmatpush2.msra.mxu0 %v403
        %1922 = vmatprep.subr.mxu0 %v402
        %1923 = vmatpush2.msra.mxu0 %v401
        %1924 = vmatprep.subr.mxu0 %v400
        %1925 = vmatpush2.msra.mxu0 %v399
        %1926 = vmatprep.subr.mxu0 %v398
        %1927 = vmatpush2.msra.mxu0 %v397
        %1928 = vmatprep.subr.mxu0 %v396
        %1929 = vmatpush2.msra.mxu0 %v395
        %1930 = vmatprep.subr.mxu0 %v394
        %1931 = vmatpush2.msra.mxu0 %v393
        %1932 = vmatprep.mubr.f32.mxu0 %v1603
        %1933 = vmatmul.mubr.f32.gmra.mxu0 %v1601
        %v1934 = vpop.f32.mrf.mxu0
        %v1935 = vadd.f32 %v1864, %v1934
        %v1936 = vpop.f32.mrf.mxu0
        %v1937 = vadd.f32 %v1866, %v1936
        %1938 = vdwg.mxu0
        %1939 = vmatprep.subr.mxu0 %v456
        %1940 = vmatpush1.msra.mxu0 %v455
        %1941 = vmatprep.subr.mxu0 %v454
        %1942 = vmatpush1.msra.mxu0 %v453
        %1943 = vmatprep.subr.mxu0 %v452
        %1944 = vmatpush1.msra.mxu0 %v451
        %1945 = vmatprep.subr.mxu0 %v450
        %1946 = vmatpush1.msra.mxu0 %v449
        %1947 = vmatprep.subr.mxu0 %v448
        %1948 = vmatpush1.msra.mxu0 %v447
        %1949 = vmatprep.subr.mxu0 %v446
        %1950 = vmatpush1.msra.mxu0 %v445
        %1951 = vmatprep.subr.mxu0 %v444
        %1952 = vmatpush1.msra.mxu0 %v443
        %1953 = vmatprep.subr.mxu0 %v442
        %1954 = vmatpush1.msra.mxu0 %v441
        %1955 = vmatprep.subr.mxu0 %v440
        %1956 = vmatpush1.msra.mxu0 %v439
        %1957 = vmatprep.subr.mxu0 %v438
        %1958 = vmatpush1.msra.mxu0 %v437
        %1959 = vmatprep.subr.mxu0 %v436
        %1960 = vmatpush1.msra.mxu0 %v435
        %1961 = vmatprep.subr.mxu0 %v434
        %1962 = vmatpush1.msra.mxu0 %v433
        %1963 = vmatprep.subr.mxu0 %v432
        %1964 = vmatpush1.msra.mxu0 %v431
        %1965 = vmatprep.subr.mxu0 %v430
        %1966 = vmatpush1.msra.mxu0 %v429
        %1967 = vmatprep.subr.mxu0 %v428
        %1968 = vmatpush1.msra.mxu0 %v427
        %1969 = vmatprep.subr.mxu0 %v426
        %1970 = vmatpush1.msra.mxu0 %v425
        %1971 = vmatprep.subr.mxu0 %v488
        %1972 = vmatpush2.msra.mxu0 %v487
        %1973 = vmatprep.subr.mxu0 %v486
        %1974 = vmatpush2.msra.mxu0 %v485
        %1975 = vmatprep.subr.mxu0 %v484
        %1976 = vmatpush2.msra.mxu0 %v483
        %1977 = vmatprep.subr.mxu0 %v482
        %1978 = vmatpush2.msra.mxu0 %v481
        %1979 = vmatprep.subr.mxu0 %v480
        %1980 = vmatpush2.msra.mxu0 %v479
        %1981 = vmatprep.subr.mxu0 %v478
        %1982 = vmatpush2.msra.mxu0 %v477
        %1983 = vmatprep.subr.mxu0 %v476
        %1984 = vmatpush2.msra.mxu0 %v475
        %1985 = vmatprep.subr.mxu0 %v474
        %1986 = vmatpush2.msra.mxu0 %v473
        %1987 = vmatprep.subr.mxu0 %v472
        %1988 = vmatpush2.msra.mxu0 %v471
        %1989 = vmatprep.subr.mxu0 %v470
        %1990 = vmatpush2.msra.mxu0 %v469
        %1991 = vmatprep.subr.mxu0 %v468
        %1992 = vmatpush2.msra.mxu0 %v467
        %1993 = vmatprep.subr.mxu0 %v466
        %1994 = vmatpush2.msra.mxu0 %v465
        %1995 = vmatprep.subr.mxu0 %v464
        %1996 = vmatpush2.msra.mxu0 %v463
        %1997 = vmatprep.subr.mxu0 %v462
        %1998 = vmatpush2.msra.mxu0 %v461
        %1999 = vmatprep.subr.mxu0 %v460
        %2000 = vmatpush2.msra.mxu0 %v459
        %2001 = vmatprep.subr.mxu0 %v458
        %2002 = vmatpush2.msra.mxu0 %v457
        %2003 = vmatprep.mubr.f32.mxu0 %v1619
        %2004 = vmatmul.mubr.f32.gmra.mxu0 %v1611
        %v2005 = vpop.f32.mrf.mxu0
        %v2006 = vadd.f32 %v1935, %v2005
        %v2007 = vpop.f32.mrf.mxu0
        %v2008 = vadd.f32 %v1937, %v2007
        %2009 = vdwg.mxu0
        %2010 = vmatprep.subr.mxu0 %v520
        %2011 = vmatpush1.msra.mxu0 %v519
        %2012 = vmatprep.subr.mxu0 %v518
        %2013 = vmatpush1.msra.mxu0 %v517
        %2014 = vmatprep.subr.mxu0 %v516
        %2015 = vmatpush1.msra.mxu0 %v515
        %2016 = vmatprep.subr.mxu0 %v514
        %2017 = vmatpush1.msra.mxu0 %v513
        %2018 = vmatprep.subr.mxu0 %v512
        %2019 = vmatpush1.msra.mxu0 %v511
        %2020 = vmatprep.subr.mxu0 %v510
        %2021 = vmatpush1.msra.mxu0 %v509
        %2022 = vmatprep.subr.mxu0 %v508
        %2023 = vmatpush1.msra.mxu0 %v507
        %2024 = vmatprep.subr.mxu0 %v506
        %2025 = vmatpush1.msra.mxu0 %v505
        %2026 = vmatprep.subr.mxu0 %v504
        %2027 = vmatpush1.msra.mxu0 %v503
        %2028 = vmatprep.subr.mxu0 %v502
        %2029 = vmatpush1.msra.mxu0 %v501
        %2030 = vmatprep.subr.mxu0 %v500
        %2031 = vmatpush1.msra.mxu0 %v499
        %2032 = vmatprep.subr.mxu0 %v498
        %2033 = vmatpush1.msra.mxu0 %v497
        %2034 = vmatprep.subr.mxu0 %v496
        %2035 = vmatpush1.msra.mxu0 %v495
        %2036 = vmatprep.subr.mxu0 %v494
        %2037 = vmatpush1.msra.mxu0 %v493
        %2038 = vmatprep.subr.mxu0 %v492
        %2039 = vmatpush1.msra.mxu0 %v491
        %2040 = vmatprep.subr.mxu0 %v490
        %2041 = vmatpush1.msra.mxu0 %v489
        %2042 = vmatprep.subr.mxu0 %v552
        %2043 = vmatpush2.msra.mxu0 %v551
        %2044 = vmatprep.subr.mxu0 %v550
        %2045 = vmatpush2.msra.mxu0 %v549
        %2046 = vmatprep.subr.mxu0 %v548
        %2047 = vmatpush2.msra.mxu0 %v547
        %2048 = vmatprep.subr.mxu0 %v546
        %2049 = vmatpush2.msra.mxu0 %v545
        %2050 = vmatprep.subr.mxu0 %v544
        %2051 = vmatpush2.msra.mxu0 %v543
        %2052 = vmatprep.subr.mxu0 %v542
        %2053 = vmatpush2.msra.mxu0 %v541
        %2054 = vmatprep.subr.mxu0 %v540
        %2055 = vmatpush2.msra.mxu0 %v539
        %2056 = vmatprep.subr.mxu0 %v538
        %2057 = vmatpush2.msra.mxu0 %v537
        %2058 = vmatprep.subr.mxu0 %v536
        %2059 = vmatpush2.msra.mxu0 %v535
        %2060 = vmatprep.subr.mxu0 %v534
        %2061 = vmatpush2.msra.mxu0 %v533
        %2062 = vmatprep.subr.mxu0 %v532
        %2063 = vmatpush2.msra.mxu0 %v531
        %2064 = vmatprep.subr.mxu0 %v530
        %2065 = vmatpush2.msra.mxu0 %v529
        %2066 = vmatprep.subr.mxu0 %v528
        %2067 = vmatpush2.msra.mxu0 %v527
        %2068 = vmatprep.subr.mxu0 %v526
        %2069 = vmatpush2.msra.mxu0 %v525
        %2070 = vmatprep.subr.mxu0 %v524
        %2071 = vmatpush2.msra.mxu0 %v523
        %2072 = vmatprep.subr.mxu0 %v522
        %2073 = vmatpush2.msra.mxu0 %v521
        %2074 = vmatprep.mubr.f32.mxu0 %v1620
        %2075 = vmatmul.mubr.f32.gmra.mxu0 %v1618
        %v2076 = vpop.f32.mrf.mxu0
        %v2077 = vadd.f32 %v2006, %v2076
        %v2078 = vpop.f32.mrf.mxu0
        %v2079 = vadd.f32 %v2008, %v2078
        %2080 = vdwg.mxu0
        %2081 = vmatprep.subr.mxu0 %v584
        %2082 = vmatpush1.msra.mxu0 %v583
        %2083 = vmatprep.subr.mxu0 %v582
        %2084 = vmatpush1.msra.mxu0 %v581
        %2085 = vmatprep.subr.mxu0 %v580
        %2086 = vmatpush1.msra.mxu0 %v579
        %2087 = vmatprep.subr.mxu0 %v578
        %2088 = vmatpush1.msra.mxu0 %v577
        %2089 = vmatprep.subr.mxu0 %v576
        %2090 = vmatpush1.msra.mxu0 %v575
        %2091 = vmatprep.subr.mxu0 %v574
        %2092 = vmatpush1.msra.mxu0 %v573
        %2093 = vmatprep.subr.mxu0 %v572
        %2094 = vmatpush1.msra.mxu0 %v571
        %2095 = vmatprep.subr.mxu0 %v570
        %2096 = vmatpush1.msra.mxu0 %v569
        %2097 = vmatprep.subr.mxu0 %v568
        %2098 = vmatpush1.msra.mxu0 %v567
        %2099 = vmatprep.subr.mxu0 %v566
        %2100 = vmatpush1.msra.mxu0 %v565
        %2101 = vmatprep.subr.mxu0 %v564
        %2102 = vmatpush1.msra.mxu0 %v563
        %2103 = vmatprep.subr.mxu0 %v562
        %2104 = vmatpush1.msra.mxu0 %v561
        %2105 = vmatprep.subr.mxu0 %v560
        %2106 = vmatpush1.msra.mxu0 %v559
        %2107 = vmatprep.subr.mxu0 %v558
        %2108 = vmatpush1.msra.mxu0 %v557
        %2109 = vmatprep.subr.mxu0 %v556
        %2110 = vmatpush1.msra.mxu0 %v555
        %2111 = vmatprep.subr.mxu0 %v554
        %2112 = vmatpush1.msra.mxu0 %v553
        %2113 = vmatprep.subr.mxu0 %v616
        %2114 = vmatpush2.msra.mxu0 %v615
        %2115 = vmatprep.subr.mxu0 %v614
        %2116 = vmatpush2.msra.mxu0 %v613
        %2117 = vmatprep.subr.mxu0 %v612
        %2118 = vmatpush2.msra.mxu0 %v611
        %2119 = vmatprep.subr.mxu0 %v610
        %2120 = vmatpush2.msra.mxu0 %v609
        %2121 = vmatprep.subr.mxu0 %v608
        %2122 = vmatpush2.msra.mxu0 %v607
        %2123 = vmatprep.subr.mxu0 %v606
        %2124 = vmatpush2.msra.mxu0 %v605
        %2125 = vmatprep.subr.mxu0 %v604
        %2126 = vmatpush2.msra.mxu0 %v603
        %2127 = vmatprep.subr.mxu0 %v602
        %2128 = vmatpush2.msra.mxu0 %v601
        %2129 = vmatprep.subr.mxu0 %v600
        %2130 = vmatpush2.msra.mxu0 %v599
        %2131 = vmatprep.subr.mxu0 %v598
        %2132 = vmatpush2.msra.mxu0 %v597
        %2133 = vmatprep.subr.mxu0 %v596
        %2134 = vmatpush2.msra.mxu0 %v595
        %2135 = vmatprep.subr.mxu0 %v594
        %2136 = vmatpush2.msra.mxu0 %v593
        %2137 = vmatprep.subr.mxu0 %v592
        %2138 = vmatpush2.msra.mxu0 %v591
        %2139 = vmatprep.subr.mxu0 %v590
        %2140 = vmatpush2.msra.mxu0 %v589
        %2141 = vmatprep.subr.mxu0 %v588
        %2142 = vmatpush2.msra.mxu0 %v587
        %2143 = vmatprep.subr.mxu0 %v586
        %2144 = vmatpush2.msra.mxu0 %v585
        %2145 = vmatprep.mubr.f32.mxu0 %v1636
        %2146 = vmatmul.mubr.f32.gmra.mxu0 %v1628
        %v2147 = vpop.f32.mrf.mxu0
        %v2148 = vadd.f32 %v2077, %v2147
        %v2149 = vpop.f32.mrf.mxu0
        %v2150 = vadd.f32 %v2079, %v2149
        %2151 = vdwg.mxu0
        %2152 = vmatprep.subr.mxu0 %v648
        %2153 = vmatpush1.msra.mxu0 %v647
        %2154 = vmatprep.subr.mxu0 %v646
        %2155 = vmatpush1.msra.mxu0 %v645
        %2156 = vmatprep.subr.mxu0 %v644
        %2157 = vmatpush1.msra.mxu0 %v643
        %2158 = vmatprep.subr.mxu0 %v642
        %2159 = vmatpush1.msra.mxu0 %v641
        %2160 = vmatprep.subr.mxu0 %v640
        %2161 = vmatpush1.msra.mxu0 %v639
        %2162 = vmatprep.subr.mxu0 %v638
        %2163 = vmatpush1.msra.mxu0 %v637
        %2164 = vmatprep.subr.mxu0 %v636
        %2165 = vmatpush1.msra.mxu0 %v635
        %2166 = vmatprep.subr.mxu0 %v634
        %2167 = vmatpush1.msra.mxu0 %v633
        %2168 = vmatprep.subr.mxu0 %v632
        %2169 = vmatpush1.msra.mxu0 %v631
        %2170 = vmatprep.subr.mxu0 %v630
        %2171 = vmatpush1.msra.mxu0 %v629
        %2172 = vmatprep.subr.mxu0 %v628
        %2173 = vmatpush1.msra.mxu0 %v627
        %2174 = vmatprep.subr.mxu0 %v626
        %2175 = vmatpush1.msra.mxu0 %v625
        %2176 = vmatprep.subr.mxu0 %v624
        %2177 = vmatpush1.msra.mxu0 %v623
        %2178 = vmatprep.subr.mxu0 %v622
        %2179 = vmatpush1.msra.mxu0 %v621
        %2180 = vmatprep.subr.mxu0 %v620
        %2181 = vmatpush1.msra.mxu0 %v619
        %2182 = vmatprep.subr.mxu0 %v618
        %2183 = vmatpush1.msra.mxu0 %v617
        %2184 = vmatprep.subr.mxu0 %v680
        %2185 = vmatpush2.msra.mxu0 %v679
        %2186 = vmatprep.subr.mxu0 %v678
        %2187 = vmatpush2.msra.mxu0 %v677
        %2188 = vmatprep.subr.mxu0 %v676
        %2189 = vmatpush2.msra.mxu0 %v675
        %2190 = vmatprep.subr.mxu0 %v674
        %2191 = vmatpush2.msra.mxu0 %v673
        %2192 = vmatprep.subr.mxu0 %v672
        %2193 = vmatpush2.msra.mxu0 %v671
        %2194 = vmatprep.subr.mxu0 %v670
        %2195 = vmatpush2.msra.mxu0 %v669
        %2196 = vmatprep.subr.mxu0 %v668
        %2197 = vmatpush2.msra.mxu0 %v667
        %2198 = vmatprep.subr.mxu0 %v666
        %2199 = vmatpush2.msra.mxu0 %v665
        %2200 = vmatprep.subr.mxu0 %v664
        %2201 = vmatpush2.msra.mxu0 %v663
        %2202 = vmatprep.subr.mxu0 %v662
        %2203 = vmatpush2.msra.mxu0 %v661
        %2204 = vmatprep.subr.mxu0 %v660
        %2205 = vmatpush2.msra.mxu0 %v659
        %2206 = vmatprep.subr.mxu0 %v658
        %2207 = vmatpush2.msra.mxu0 %v657
        %2208 = vmatprep.subr.mxu0 %v656
        %2209 = vmatpush2.msra.mxu0 %v655
        %2210 = vmatprep.subr.mxu0 %v654
        %2211 = vmatpush2.msra.mxu0 %v653
        %2212 = vmatprep.subr.mxu0 %v652
        %2213 = vmatpush2.msra.mxu0 %v651
        %2214 = vmatprep.subr.mxu0 %v650
        %2215 = vmatpush2.msra.mxu0 %v649
        %2216 = vmatprep.mubr.f32.mxu0 %v1637
        %2217 = vmatmul.mubr.f32.gmra.mxu0 %v1635
        %v2218 = vpop.f32.mrf.mxu0
        %v2219 = vadd.f32 %v2148, %v2218
        %v2220 = vpop.f32.mrf.mxu0
        %v2221 = vadd.f32 %v2150, %v2220
        %2222 = vdwg.mxu0
        %2223 = vmatprep.subr.mxu0 %v712
        %2224 = vmatpush1.msra.mxu0 %v711
        %2225 = vmatprep.subr.mxu0 %v710
        %2226 = vmatpush1.msra.mxu0 %v709
        %2227 = vmatprep.subr.mxu0 %v708
        %2228 = vmatpush1.msra.mxu0 %v707
        %2229 = vmatprep.subr.mxu0 %v706
        %2230 = vmatpush1.msra.mxu0 %v705
        %2231 = vmatprep.subr.mxu0 %v704
        %2232 = vmatpush1.msra.mxu0 %v703
        %2233 = vmatprep.subr.mxu0 %v702
        %2234 = vmatpush1.msra.mxu0 %v701
        %2235 = vmatprep.subr.mxu0 %v700
        %2236 = vmatpush1.msra.mxu0 %v699
        %2237 = vmatprep.subr.mxu0 %v698
        %2238 = vmatpush1.msra.mxu0 %v697
        %2239 = vmatprep.subr.mxu0 %v696
        %2240 = vmatpush1.msra.mxu0 %v695
        %2241 = vmatprep.subr.mxu0 %v694
        %2242 = vmatpush1.msra.mxu0 %v693
        %2243 = vmatprep.subr.mxu0 %v692
        %2244 = vmatpush1.msra.mxu0 %v691
        %2245 = vmatprep.subr.mxu0 %v690
        %2246 = vmatpush1.msra.mxu0 %v689
        %2247 = vmatprep.subr.mxu0 %v688
        %2248 = vmatpush1.msra.mxu0 %v687
        %2249 = vmatprep.subr.mxu0 %v686
        %2250 = vmatpush1.msra.mxu0 %v685
        %2251 = vmatprep.subr.mxu0 %v684
        %2252 = vmatpush1.msra.mxu0 %v683
        %2253 = vmatprep.subr.mxu0 %v682
        %2254 = vmatpush1.msra.mxu0 %v681
        %2255 = vmatprep.subr.mxu0 %v744
        %2256 = vmatpush2.msra.mxu0 %v743
        %2257 = vmatprep.subr.mxu0 %v742
        %2258 = vmatpush2.msra.mxu0 %v741
        %2259 = vmatprep.subr.mxu0 %v740
        %2260 = vmatpush2.msra.mxu0 %v739
        %2261 = vmatprep.subr.mxu0 %v738
        %2262 = vmatpush2.msra.mxu0 %v737
        %2263 = vmatprep.subr.mxu0 %v736
        %2264 = vmatpush2.msra.mxu0 %v735
        %2265 = vmatprep.subr.mxu0 %v734
        %2266 = vmatpush2.msra.mxu0 %v733
        %2267 = vmatprep.subr.mxu0 %v732
        %2268 = vmatpush2.msra.mxu0 %v731
        %2269 = vmatprep.subr.mxu0 %v730
        %2270 = vmatpush2.msra.mxu0 %v729
        %2271 = vmatprep.subr.mxu0 %v728
        %2272 = vmatpush2.msra.mxu0 %v727
        %2273 = vmatprep.subr.mxu0 %v726
        %2274 = vmatpush2.msra.mxu0 %v725
        %2275 = vmatprep.subr.mxu0 %v724
        %2276 = vmatpush2.msra.mxu0 %v723
        %2277 = vmatprep.subr.mxu0 %v722
        %2278 = vmatpush2.msra.mxu0 %v721
        %2279 = vmatprep.subr.mxu0 %v720
        %2280 = vmatpush2.msra.mxu0 %v719
        %2281 = vmatprep.subr.mxu0 %v718
        %2282 = vmatpush2.msra.mxu0 %v717
        %2283 = vmatprep.subr.mxu0 %v716
        %2284 = vmatpush2.msra.mxu0 %v715
        %2285 = vmatprep.subr.mxu0 %v714
        %2286 = vmatpush2.msra.mxu0 %v713
        %2287 = vmatprep.mubr.f32.mxu0 %v1653
        %2288 = vmatmul.mubr.f32.gmra.mxu0 %v1645
        %v2289 = vpop.f32.mrf.mxu0
        %v2290 = vadd.f32 %v2219, %v2289
        %v2291 = vpop.f32.mrf.mxu0
        %v2292 = vadd.f32 %v2221, %v2291
        %2293 = vdwg.mxu0
        %2294 = vmatprep.subr.mxu0 %v776
        %2295 = vmatpush1.msra.mxu0 %v775
        %2296 = vmatprep.subr.mxu0 %v774
        %2297 = vmatpush1.msra.mxu0 %v773
        %2298 = vmatprep.subr.mxu0 %v772
        %2299 = vmatpush1.msra.mxu0 %v771
        %2300 = vmatprep.subr.mxu0 %v770
        %2301 = vmatpush1.msra.mxu0 %v769
        %2302 = vmatprep.subr.mxu0 %v768
        %2303 = vmatpush1.msra.mxu0 %v767
        %2304 = vmatprep.subr.mxu0 %v766
        %2305 = vmatpush1.msra.mxu0 %v765
        %2306 = vmatprep.subr.mxu0 %v764
        %2307 = vmatpush1.msra.mxu0 %v763
        %2308 = vmatprep.subr.mxu0 %v762
        %2309 = vmatpush1.msra.mxu0 %v761
        %2310 = vmatprep.subr.mxu0 %v760
        %2311 = vmatpush1.msra.mxu0 %v759
        %2312 = vmatprep.subr.mxu0 %v758
        %2313 = vmatpush1.msra.mxu0 %v757
        %2314 = vmatprep.subr.mxu0 %v756
        %2315 = vmatpush1.msra.mxu0 %v755
        %2316 = vmatprep.subr.mxu0 %v754
        %2317 = vmatpush1.msra.mxu0 %v753
        %2318 = vmatprep.subr.mxu0 %v752
        %2319 = vmatpush1.msra.mxu0 %v751
        %2320 = vmatprep.subr.mxu0 %v750
        %2321 = vmatpush1.msra.mxu0 %v749
        %2322 = vmatprep.subr.mxu0 %v748
        %2323 = vmatpush1.msra.mxu0 %v747
        %2324 = vmatprep.subr.mxu0 %v746
        %2325 = vmatpush1.msra.mxu0 %v745
        %2326 = vmatprep.subr.mxu0 %v808
        %2327 = vmatpush2.msra.mxu0 %v807
        %2328 = vmatprep.subr.mxu0 %v806
        %2329 = vmatpush2.msra.mxu0 %v805
        %2330 = vmatprep.subr.mxu0 %v804
        %2331 = vmatpush2.msra.mxu0 %v803
        %2332 = vmatprep.subr.mxu0 %v802
        %2333 = vmatpush2.msra.mxu0 %v801
        %2334 = vmatprep.subr.mxu0 %v800
        %2335 = vmatpush2.msra.mxu0 %v799
        %2336 = vmatprep.subr.mxu0 %v798
        %2337 = vmatpush2.msra.mxu0 %v797
        %2338 = vmatprep.subr.mxu0 %v796
        %2339 = vmatpush2.msra.mxu0 %v795
        %2340 = vmatprep.subr.mxu0 %v794
        %2341 = vmatpush2.msra.mxu0 %v793
        %2342 = vmatprep.subr.mxu0 %v792
        %2343 = vmatpush2.msra.mxu0 %v791
        %2344 = vmatprep.subr.mxu0 %v790
        %2345 = vmatpush2.msra.mxu0 %v789
        %2346 = vmatprep.subr.mxu0 %v788
        %2347 = vmatpush2.msra.mxu0 %v787
        %2348 = vmatprep.subr.mxu0 %v786
        %2349 = vmatpush2.msra.mxu0 %v785
        %2350 = vmatprep.subr.mxu0 %v784
        %2351 = vmatpush2.msra.mxu0 %v783
        %2352 = vmatprep.subr.mxu0 %v782
        %2353 = vmatpush2.msra.mxu0 %v781
        %2354 = vmatprep.subr.mxu0 %v780
        %2355 = vmatpush2.msra.mxu0 %v779
        %2356 = vmatprep.subr.mxu0 %v778
        %2357 = vmatpush2.msra.mxu0 %v777
        %2358 = vmatprep.mubr.f32.mxu0 %v1654
        %2359 = vmatmul.mubr.f32.gmra.mxu0 %v1652
        %v2360 = vpop.f32.mrf.mxu0
        %v2361 = vadd.f32 %v2290, %v2360
        %v2362 = vpop.f32.mrf.mxu0
        %v2363 = vadd.f32 %v2292, %v2362
        %2364 = vdwg.mxu0
        %2365 = vmatprep.subr.mxu0 %v840
        %2366 = vmatpush1.msra.mxu0 %v839
        %2367 = vmatprep.subr.mxu0 %v838
        %2368 = vmatpush1.msra.mxu0 %v837
        %2369 = vmatprep.subr.mxu0 %v836
        %2370 = vmatpush1.msra.mxu0 %v835
        %2371 = vmatprep.subr.mxu0 %v834
        %2372 = vmatpush1.msra.mxu0 %v833
        %2373 = vmatprep.subr.mxu0 %v832
        %2374 = vmatpush1.msra.mxu0 %v831
        %2375 = vmatprep.subr.mxu0 %v830
        %2376 = vmatpush1.msra.mxu0 %v829
        %2377 = vmatprep.subr.mxu0 %v828
        %2378 = vmatpush1.msra.mxu0 %v827
        %2379 = vmatprep.subr.mxu0 %v826
        %2380 = vmatpush1.msra.mxu0 %v825
        %2381 = vmatprep.subr.mxu0 %v824
        %2382 = vmatpush1.msra.mxu0 %v823
        %2383 = vmatprep.subr.mxu0 %v822
        %2384 = vmatpush1.msra.mxu0 %v821
        %2385 = vmatprep.subr.mxu0 %v820
        %2386 = vmatpush1.msra.mxu0 %v819
        %2387 = vmatprep.subr.mxu0 %v818
        %2388 = vmatpush1.msra.mxu0 %v817
        %2389 = vmatprep.subr.mxu0 %v816
        %2390 = vmatpush1.msra.mxu0 %v815
        %2391 = vmatprep.subr.mxu0 %v814
        %2392 = vmatpush1.msra.mxu0 %v813
        %2393 = vmatprep.subr.mxu0 %v812
        %2394 = vmatpush1.msra.mxu0 %v811
        %2395 = vmatprep.subr.mxu0 %v810
        %2396 = vmatpush1.msra.mxu0 %v809
        %2397 = vmatprep.subr.mxu0 %v872
        %2398 = vmatpush2.msra.mxu0 %v871
        %2399 = vmatprep.subr.mxu0 %v870
        %2400 = vmatpush2.msra.mxu0 %v869
        %2401 = vmatprep.subr.mxu0 %v868
        %2402 = vmatpush2.msra.mxu0 %v867
        %2403 = vmatprep.subr.mxu0 %v866
        %2404 = vmatpush2.msra.mxu0 %v865
        %2405 = vmatprep.subr.mxu0 %v864
        %2406 = vmatpush2.msra.mxu0 %v863
        %2407 = vmatprep.subr.mxu0 %v862
        %2408 = vmatpush2.msra.mxu0 %v861
        %2409 = vmatprep.subr.mxu0 %v860
        %2410 = vmatpush2.msra.mxu0 %v859
        %2411 = vmatprep.subr.mxu0 %v858
        %2412 = vmatpush2.msra.mxu0 %v857
        %2413 = vmatprep.subr.mxu0 %v856
        %2414 = vmatpush2.msra.mxu0 %v855
        %2415 = vmatprep.subr.mxu0 %v854
        %2416 = vmatpush2.msra.mxu0 %v853
        %2417 = vmatprep.subr.mxu0 %v852
        %2418 = vmatpush2.msra.mxu0 %v851
        %2419 = vmatprep.subr.mxu0 %v850
        %2420 = vmatpush2.msra.mxu0 %v849
        %2421 = vmatprep.subr.mxu0 %v848
        %2422 = vmatpush2.msra.mxu0 %v847
        %2423 = vmatprep.subr.mxu0 %v846
        %2424 = vmatpush2.msra.mxu0 %v845
        %2425 = vmatprep.subr.mxu0 %v844
        %2426 = vmatpush2.msra.mxu0 %v843
        %2427 = vmatprep.subr.mxu0 %v842
        %2428 = vmatpush2.msra.mxu0 %v841
        %2429 = vmatprep.mubr.f32.mxu0 %v1670
        %2430 = vmatmul.mubr.f32.gmra.mxu0 %v1662
        %v2431 = vpop.f32.mrf.mxu0
        %v2432 = vadd.f32 %v2361, %v2431
        %v2433 = vpop.f32.mrf.mxu0
        %v2434 = vadd.f32 %v2363, %v2433
        %2435 = vdwg.mxu0
        %2436 = vmatprep.subr.mxu0 %v904
        %2437 = vmatpush1.msra.mxu0 %v903
        %2438 = vmatprep.subr.mxu0 %v902
        %2439 = vmatpush1.msra.mxu0 %v901
        %2440 = vmatprep.subr.mxu0 %v900
        %2441 = vmatpush1.msra.mxu0 %v899
        %2442 = vmatprep.subr.mxu0 %v898
        %2443 = vmatpush1.msra.mxu0 %v897
        %2444 = vmatprep.subr.mxu0 %v896
        %2445 = vmatpush1.msra.mxu0 %v895
        %2446 = vmatprep.subr.mxu0 %v894
        %2447 = vmatpush1.msra.mxu0 %v893
        %2448 = vmatprep.subr.mxu0 %v892
        %2449 = vmatpush1.msra.mxu0 %v891
        %2450 = vmatprep.subr.mxu0 %v890
        %2451 = vmatpush1.msra.mxu0 %v889
        %2452 = vmatprep.subr.mxu0 %v888
        %2453 = vmatpush1.msra.mxu0 %v887
        %2454 = vmatprep.subr.mxu0 %v886
        %2455 = vmatpush1.msra.mxu0 %v885
        %2456 = vmatprep.subr.mxu0 %v884
        %2457 = vmatpush1.msra.mxu0 %v883
        %2458 = vmatprep.subr.mxu0 %v882
        %2459 = vmatpush1.msra.mxu0 %v881
        %2460 = vmatprep.subr.mxu0 %v880
        %2461 = vmatpush1.msra.mxu0 %v879
        %2462 = vmatprep.subr.mxu0 %v878
        %2463 = vmatpush1.msra.mxu0 %v877
        %2464 = vmatprep.subr.mxu0 %v876
        %2465 = vmatpush1.msra.mxu0 %v875
        %2466 = vmatprep.subr.mxu0 %v874
        %2467 = vmatpush1.msra.mxu0 %v873
        %2468 = vmatprep.subr.mxu0 %v936
        %2469 = vmatpush2.msra.mxu0 %v935
        %2470 = vmatprep.subr.mxu0 %v934
        %2471 = vmatpush2.msra.mxu0 %v933
        %2472 = vmatprep.subr.mxu0 %v932
        %2473 = vmatpush2.msra.mxu0 %v931
        %2474 = vmatprep.subr.mxu0 %v930
        %2475 = vmatpush2.msra.mxu0 %v929
        %2476 = vmatprep.subr.mxu0 %v928
        %2477 = vmatpush2.msra.mxu0 %v927
        %2478 = vmatprep.subr.mxu0 %v926
        %2479 = vmatpush2.msra.mxu0 %v925
        %2480 = vmatprep.subr.mxu0 %v924
        %2481 = vmatpush2.msra.mxu0 %v923
        %2482 = vmatprep.subr.mxu0 %v922
        %2483 = vmatpush2.msra.mxu0 %v921
        %2484 = vmatprep.subr.mxu0 %v920
        %2485 = vmatpush2.msra.mxu0 %v919
        %2486 = vmatprep.subr.mxu0 %v918
        %2487 = vmatpush2.msra.mxu0 %v917
        %2488 = vmatprep.subr.mxu0 %v916
        %2489 = vmatpush2.msra.mxu0 %v915
        %2490 = vmatprep.subr.mxu0 %v914
        %2491 = vmatpush2.msra.mxu0 %v913
        %2492 = vmatprep.subr.mxu0 %v912
        %2493 = vmatpush2.msra.mxu0 %v911
        %2494 = vmatprep.subr.mxu0 %v910
        %2495 = vmatpush2.msra.mxu0 %v909
        %2496 = vmatprep.subr.mxu0 %v908
        %2497 = vmatpush2.msra.mxu0 %v907
        %2498 = vmatprep.subr.mxu0 %v906
        %2499 = vmatpush2.msra.mxu0 %v905
        %2500 = vmatprep.mubr.f32.mxu0 %v1671
        %2501 = vmatmul.mubr.f32.gmra.mxu0 %v1669
        %v2502 = vpop.f32.mrf.mxu0
        %v2503 = vadd.f32 %v2432, %v2502
        %v2504 = vpop.f32.mrf.mxu0
        %v2505 = vadd.f32 %v2434, %v2504
        %2506 = vdwg.mxu0
        %2507 = vmatprep.subr.mxu0 %v968
        %2508 = vmatpush1.msra.mxu0 %v967
        %2509 = vmatprep.subr.mxu0 %v966
        %2510 = vmatpush1.msra.mxu0 %v965
        %2511 = vmatprep.subr.mxu0 %v964
        %2512 = vmatpush1.msra.mxu0 %v963
        %2513 = vmatprep.subr.mxu0 %v962
        %2514 = vmatpush1.msra.mxu0 %v961
        %2515 = vmatprep.subr.mxu0 %v960
        %2516 = vmatpush1.msra.mxu0 %v959
        %2517 = vmatprep.subr.mxu0 %v958
        %2518 = vmatpush1.msra.mxu0 %v957
        %2519 = vmatprep.subr.mxu0 %v956
        %2520 = vmatpush1.msra.mxu0 %v955
        %2521 = vmatprep.subr.mxu0 %v954
        %2522 = vmatpush1.msra.mxu0 %v953
        %2523 = vmatprep.subr.mxu0 %v952
        %2524 = vmatpush1.msra.mxu0 %v951
        %2525 = vmatprep.subr.mxu0 %v950
        %2526 = vmatpush1.msra.mxu0 %v949
        %2527 = vmatprep.subr.mxu0 %v948
        %2528 = vmatpush1.msra.mxu0 %v947
        %2529 = vmatprep.subr.mxu0 %v946
        %2530 = vmatpush1.msra.mxu0 %v945
        %2531 = vmatprep.subr.mxu0 %v944
        %2532 = vmatpush1.msra.mxu0 %v943
        %2533 = vmatprep.subr.mxu0 %v942
        %2534 = vmatpush1.msra.mxu0 %v941
        %2535 = vmatprep.subr.mxu0 %v940
        %2536 = vmatpush1.msra.mxu0 %v939
        %2537 = vmatprep.subr.mxu0 %v938
        %2538 = vmatpush1.msra.mxu0 %v937
        %2539 = vmatprep.subr.mxu0 %v1000
        %2540 = vmatpush2.msra.mxu0 %v999
        %2541 = vmatprep.subr.mxu0 %v998
        %2542 = vmatpush2.msra.mxu0 %v997
        %2543 = vmatprep.subr.mxu0 %v996
        %2544 = vmatpush2.msra.mxu0 %v995
        %2545 = vmatprep.subr.mxu0 %v994
        %2546 = vmatpush2.msra.mxu0 %v993
        %2547 = vmatprep.subr.mxu0 %v992
        %2548 = vmatpush2.msra.mxu0 %v991
        %2549 = vmatprep.subr.mxu0 %v990
        %2550 = vmatpush2.msra.mxu0 %v989
        %2551 = vmatprep.subr.mxu0 %v988
        %2552 = vmatpush2.msra.mxu0 %v987
        %2553 = vmatprep.subr.mxu0 %v986
        %2554 = vmatpush2.msra.mxu0 %v985
        %2555 = vmatprep.subr.mxu0 %v984
        %2556 = vmatpush2.msra.mxu0 %v983
        %2557 = vmatprep.subr.mxu0 %v982
        %2558 = vmatpush2.msra.mxu0 %v981
        %2559 = vmatprep.subr.mxu0 %v980
        %2560 = vmatpush2.msra.mxu0 %v979
        %2561 = vmatprep.subr.mxu0 %v978
        %2562 = vmatpush2.msra.mxu0 %v977
        %2563 = vmatprep.subr.mxu0 %v976
        %2564 = vmatpush2.msra.mxu0 %v975
        %2565 = vmatprep.subr.mxu0 %v974
        %2566 = vmatpush2.msra.mxu0 %v973
        %2567 = vmatprep.subr.mxu0 %v972
        %2568 = vmatpush2.msra.mxu0 %v971
        %2569 = vmatprep.subr.mxu0 %v970
        %2570 = vmatpush2.msra.mxu0 %v969
        %2571 = vmatprep.mubr.f32.mxu0 %v1687
        %2572 = vmatmul.mubr.f32.gmra.mxu0 %v1679
        %v2573 = vpop.f32.mrf.mxu0
        %v2574 = vadd.f32 %v2503, %v2573
        %v2575 = vpop.f32.mrf.mxu0
        %v2576 = vadd.f32 %v2505, %v2575
        %2577 = vdwg.mxu0
        %2578 = vmatprep.subr.mxu0 %v1032
        %2579 = vmatpush1.msra.mxu0 %v1031
        %2580 = vmatprep.subr.mxu0 %v1030
        %2581 = vmatpush1.msra.mxu0 %v1029
        %2582 = vmatprep.subr.mxu0 %v1028
        %2583 = vmatpush1.msra.mxu0 %v1027
        %2584 = vmatprep.subr.mxu0 %v1026
        %2585 = vmatpush1.msra.mxu0 %v1025
        %2586 = vmatprep.subr.mxu0 %v1024
        %2587 = vmatpush1.msra.mxu0 %v1023
        %2588 = vmatprep.subr.mxu0 %v1022
        %2589 = vmatpush1.msra.mxu0 %v1021
        %2590 = vmatprep.subr.mxu0 %v1020
        %2591 = vmatpush1.msra.mxu0 %v1019
        %2592 = vmatprep.subr.mxu0 %v1018
        %2593 = vmatpush1.msra.mxu0 %v1017
        %2594 = vmatprep.subr.mxu0 %v1016
        %2595 = vmatpush1.msra.mxu0 %v1015
        %2596 = vmatprep.subr.mxu0 %v1014
        %2597 = vmatpush1.msra.mxu0 %v1013
        %2598 = vmatprep.subr.mxu0 %v1012
        %2599 = vmatpush1.msra.mxu0 %v1011
        %2600 = vmatprep.subr.mxu0 %v1010
        %2601 = vmatpush1.msra.mxu0 %v1009
        %2602 = vmatprep.subr.mxu0 %v1008
        %2603 = vmatpush1.msra.mxu0 %v1007
        %2604 = vmatprep.subr.mxu0 %v1006
        %2605 = vmatpush1.msra.mxu0 %v1005
        %2606 = vmatprep.subr.mxu0 %v1004
        %2607 = vmatpush1.msra.mxu0 %v1003
        %2608 = vmatprep.subr.mxu0 %v1002
        %2609 = vmatpush1.msra.mxu0 %v1001
        %2610 = vmatprep.subr.mxu0 %v1064
        %2611 = vmatpush2.msra.mxu0 %v1063
        %2612 = vmatprep.subr.mxu0 %v1062
        %2613 = vmatpush2.msra.mxu0 %v1061
        %2614 = vmatprep.subr.mxu0 %v1060
        %2615 = vmatpush2.msra.mxu0 %v1059
        %2616 = vmatprep.subr.mxu0 %v1058
        %2617 = vmatpush2.msra.mxu0 %v1057
        %2618 = vmatprep.subr.mxu0 %v1056
        %2619 = vmatpush2.msra.mxu0 %v1055
        %2620 = vmatprep.subr.mxu0 %v1054
        %2621 = vmatpush2.msra.mxu0 %v1053
        %2622 = vmatprep.subr.mxu0 %v1052
        %2623 = vmatpush2.msra.mxu0 %v1051
        %2624 = vmatprep.subr.mxu0 %v1050
        %2625 = vmatpush2.msra.mxu0 %v1049
        %2626 = vmatprep.subr.mxu0 %v1048
        %2627 = vmatpush2.msra.mxu0 %v1047
        %2628 = vmatprep.subr.mxu0 %v1046
        %2629 = vmatpush2.msra.mxu0 %v1045
        %2630 = vmatprep.subr.mxu0 %v1044
        %2631 = vmatpush2.msra.mxu0 %v1043
        %2632 = vmatprep.subr.mxu0 %v1042
        %2633 = vmatpush2.msra.mxu0 %v1041
        %2634 = vmatprep.subr.mxu0 %v1040
        %2635 = vmatpush2.msra.mxu0 %v1039
        %2636 = vmatprep.subr.mxu0 %v1038
        %2637 = vmatpush2.msra.mxu0 %v1037
        %2638 = vmatprep.subr.mxu0 %v1036
        %2639 = vmatpush2.msra.mxu0 %v1035
        %2640 = vmatprep.subr.mxu0 %v1034
        %2641 = vmatpush2.msra.mxu0 %v1033
        %2642 = vmatprep.mubr.f32.mxu0 %v1688
        %2643 = vmatmul.mubr.f32.gmra.mxu0 %v1686
        %v2644 = vpop.f32.mrf.mxu0
        %v2645 = vadd.f32 %v2574, %v2644
        %v2646 = vpop.f32.mrf.mxu0
        %v2647 = vadd.f32 %v2576, %v2646
        %2648 = vdwg.mxu0
        %2649 = vmatprep.subr.mxu0 %v1096
        %2650 = vmatpush1.msra.mxu0 %v1095
        %2651 = vmatprep.subr.mxu0 %v1094
        %2652 = vmatpush1.msra.mxu0 %v1093
        %2653 = vmatprep.subr.mxu0 %v1092
        %2654 = vmatpush1.msra.mxu0 %v1091
        %2655 = vmatprep.subr.mxu0 %v1090
        %2656 = vmatpush1.msra.mxu0 %v1089
        %2657 = vmatprep.subr.mxu0 %v1088
        %2658 = vmatpush1.msra.mxu0 %v1087
        %2659 = vmatprep.subr.mxu0 %v1086
        %2660 = vmatpush1.msra.mxu0 %v1085
        %2661 = vmatprep.subr.mxu0 %v1084
        %2662 = vmatpush1.msra.mxu0 %v1083
        %2663 = vmatprep.subr.mxu0 %v1082
        %2664 = vmatpush1.msra.mxu0 %v1081
        %2665 = vmatprep.subr.mxu0 %v1080
        %2666 = vmatpush1.msra.mxu0 %v1079
        %2667 = vmatprep.subr.mxu0 %v1078
        %2668 = vmatpush1.msra.mxu0 %v1077
        %2669 = vmatprep.subr.mxu0 %v1076
        %2670 = vmatpush1.msra.mxu0 %v1075
        %2671 = vmatprep.subr.mxu0 %v1074
        %2672 = vmatpush1.msra.mxu0 %v1073
        %2673 = vmatprep.subr.mxu0 %v1072
        %2674 = vmatpush1.msra.mxu0 %v1071
        %2675 = vmatprep.subr.mxu0 %v1070
        %2676 = vmatpush1.msra.mxu0 %v1069
        %2677 = vmatprep.subr.mxu0 %v1068
        %2678 = vmatpush1.msra.mxu0 %v1067
        %2679 = vmatprep.subr.mxu0 %v1066
        %2680 = vmatpush1.msra.mxu0 %v1065
        %2681 = vmatprep.subr.mxu0 %v1128
        %2682 = vmatpush2.msra.mxu0 %v1127
        %2683 = vmatprep.subr.mxu0 %v1126
        %2684 = vmatpush2.msra.mxu0 %v1125
        %2685 = vmatprep.subr.mxu0 %v1124
        %2686 = vmatpush2.msra.mxu0 %v1123
        %2687 = vmatprep.subr.mxu0 %v1122
        %2688 = vmatpush2.msra.mxu0 %v1121
        %2689 = vmatprep.subr.mxu0 %v1120
        %2690 = vmatpush2.msra.mxu0 %v1119
        %2691 = vmatprep.subr.mxu0 %v1118
        %2692 = vmatpush2.msra.mxu0 %v1117
        %2693 = vmatprep.subr.mxu0 %v1116
        %2694 = vmatpush2.msra.mxu0 %v1115
        %2695 = vmatprep.subr.mxu0 %v1114
        %2696 = vmatpush2.msra.mxu0 %v1113
        %2697 = vmatprep.subr.mxu0 %v1112
        %2698 = vmatpush2.msra.mxu0 %v1111
        %2699 = vmatprep.subr.mxu0 %v1110
        %2700 = vmatpush2.msra.mxu0 %v1109
        %2701 = vmatprep.subr.mxu0 %v1108
        %2702 = vmatpush2.msra.mxu0 %v1107
        %2703 = vmatprep.subr.mxu0 %v1106
        %2704 = vmatpush2.msra.mxu0 %v1105
        %2705 = vmatprep.subr.mxu0 %v1104
        %2706 = vmatpush2.msra.mxu0 %v1103
        %2707 = vmatprep.subr.mxu0 %v1102
        %2708 = vmatpush2.msra.mxu0 %v1101
        %2709 = vmatprep.subr.mxu0 %v1100
        %2710 = vmatpush2.msra.mxu0 %v1099
        %2711 = vmatprep.subr.mxu0 %v1098
        %2712 = vmatpush2.msra.mxu0 %v1097
        %2713 = vmatprep.mubr.f32.mxu0 %v1704
        %2714 = vmatmul.mubr.f32.gmra.mxu0 %v1696
        %v2715 = vpop.f32.mrf.mxu0
        %v2716 = vadd.f32 %v2645, %v2715
        %v2717 = vpop.f32.mrf.mxu0
        %v2718 = vadd.f32 %v2647, %v2717
        %2719 = vdwg.mxu0
        %2720 = vmatprep.subr.mxu0 %v1160
        %2721 = vmatpush1.msra.mxu0 %v1159
        %2722 = vmatprep.subr.mxu0 %v1158
        %2723 = vmatpush1.msra.mxu0 %v1157
        %2724 = vmatprep.subr.mxu0 %v1156
        %2725 = vmatpush1.msra.mxu0 %v1155
        %2726 = vmatprep.subr.mxu0 %v1154
        %2727 = vmatpush1.msra.mxu0 %v1153
        %2728 = vmatprep.subr.mxu0 %v1152
        %2729 = vmatpush1.msra.mxu0 %v1151
        %2730 = vmatprep.subr.mxu0 %v1150
        %2731 = vmatpush1.msra.mxu0 %v1149
        %2732 = vmatprep.subr.mxu0 %v1148
        %2733 = vmatpush1.msra.mxu0 %v1147
        %2734 = vmatprep.subr.mxu0 %v1146
        %2735 = vmatpush1.msra.mxu0 %v1145
        %2736 = vmatprep.subr.mxu0 %v1144
        %2737 = vmatpush1.msra.mxu0 %v1143
        %2738 = vmatprep.subr.mxu0 %v1142
        %2739 = vmatpush1.msra.mxu0 %v1141
        %2740 = vmatprep.subr.mxu0 %v1140
        %2741 = vmatpush1.msra.mxu0 %v1139
        %2742 = vmatprep.subr.mxu0 %v1138
        %2743 = vmatpush1.msra.mxu0 %v1137
        %2744 = vmatprep.subr.mxu0 %v1136
        %2745 = vmatpush1.msra.mxu0 %v1135
        %2746 = vmatprep.subr.mxu0 %v1134
        %2747 = vmatpush1.msra.mxu0 %v1133
        %2748 = vmatprep.subr.mxu0 %v1132
        %2749 = vmatpush1.msra.mxu0 %v1131
        %2750 = vmatprep.subr.mxu0 %v1130
        %2751 = vmatpush1.msra.mxu0 %v1129
        %2752 = vmatprep.subr.mxu0 %v1192
        %2753 = vmatpush2.msra.mxu0 %v1191
        %2754 = vmatprep.subr.mxu0 %v1190
        %2755 = vmatpush2.msra.mxu0 %v1189
        %2756 = vmatprep.subr.mxu0 %v1188
        %2757 = vmatpush2.msra.mxu0 %v1187
        %2758 = vmatprep.subr.mxu0 %v1186
        %2759 = vmatpush2.msra.mxu0 %v1185
        %2760 = vmatprep.subr.mxu0 %v1184
        %2761 = vmatpush2.msra.mxu0 %v1183
        %2762 = vmatprep.subr.mxu0 %v1182
        %2763 = vmatpush2.msra.mxu0 %v1181
        %2764 = vmatprep.subr.mxu0 %v1180
        %2765 = vmatpush2.msra.mxu0 %v1179
        %2766 = vmatprep.subr.mxu0 %v1178
        %2767 = vmatpush2.msra.mxu0 %v1177
        %2768 = vmatprep.subr.mxu0 %v1176
        %2769 = vmatpush2.msra.mxu0 %v1175
        %2770 = vmatprep.subr.mxu0 %v1174
        %2771 = vmatpush2.msra.mxu0 %v1173
        %2772 = vmatprep.subr.mxu0 %v1172
        %2773 = vmatpush2.msra.mxu0 %v1171
        %2774 = vmatprep.subr.mxu0 %v1170
        %2775 = vmatpush2.msra.mxu0 %v1169
        %2776 = vmatprep.subr.mxu0 %v1168
        %2777 = vmatpush2.msra.mxu0 %v1167
        %2778 = vmatprep.subr.mxu0 %v1166
        %2779 = vmatpush2.msra.mxu0 %v1165
        %2780 = vmatprep.subr.mxu0 %v1164
        %2781 = vmatpush2.msra.mxu0 %v1163
        %2782 = vmatprep.subr.mxu0 %v1162
        %2783 = vmatpush2.msra.mxu0 %v1161
        %2784 = vmatprep.mubr.f32.mxu0 %v1705
        %2785 = vmatmul.mubr.f32.gmra.mxu0 %v1703
        %v2786 = vpop.f32.mrf.mxu0
        %v2787 = vadd.f32 %v2716, %v2786
        %v2788 = vpop.f32.mrf.mxu0
        %v2789 = vadd.f32 %v2718, %v2788
        %2790 = vdwg.mxu0
        %2791 = vmatprep.subr.mxu0 %v1224
        %2792 = vmatpush1.msra.mxu0 %v1223
        %2793 = vmatprep.subr.mxu0 %v1222
        %2794 = vmatpush1.msra.mxu0 %v1221
        %2795 = vmatprep.subr.mxu0 %v1220
        %2796 = vmatpush1.msra.mxu0 %v1219
        %2797 = vmatprep.subr.mxu0 %v1218
        %2798 = vmatpush1.msra.mxu0 %v1217
        %2799 = vmatprep.subr.mxu0 %v1216
        %2800 = vmatpush1.msra.mxu0 %v1215
        %2801 = vmatprep.subr.mxu0 %v1214
        %2802 = vmatpush1.msra.mxu0 %v1213
        %2803 = vmatprep.subr.mxu0 %v1212
        %2804 = vmatpush1.msra.mxu0 %v1211
        %2805 = vmatprep.subr.mxu0 %v1210
        %2806 = vmatpush1.msra.mxu0 %v1209
        %2807 = vmatprep.subr.mxu0 %v1208
        %2808 = vmatpush1.msra.mxu0 %v1207
        %2809 = vmatprep.subr.mxu0 %v1206
        %2810 = vmatpush1.msra.mxu0 %v1205
        %2811 = vmatprep.subr.mxu0 %v1204
        %2812 = vmatpush1.msra.mxu0 %v1203
        %2813 = vmatprep.subr.mxu0 %v1202
        %2814 = vmatpush1.msra.mxu0 %v1201
        %2815 = vmatprep.subr.mxu0 %v1200
        %2816 = vmatpush1.msra.mxu0 %v1199
        %2817 = vmatprep.subr.mxu0 %v1198
        %2818 = vmatpush1.msra.mxu0 %v1197
        %2819 = vmatprep.subr.mxu0 %v1196
        %2820 = vmatpush1.msra.mxu0 %v1195
        %2821 = vmatprep.subr.mxu0 %v1194
        %2822 = vmatpush1.msra.mxu0 %v1193
        %2823 = vmatprep.subr.mxu0 %v1256
        %2824 = vmatpush2.msra.mxu0 %v1255
        %2825 = vmatprep.subr.mxu0 %v1254
        %2826 = vmatpush2.msra.mxu0 %v1253
        %2827 = vmatprep.subr.mxu0 %v1252
        %2828 = vmatpush2.msra.mxu0 %v1251
        %2829 = vmatprep.subr.mxu0 %v1250
        %2830 = vmatpush2.msra.mxu0 %v1249
        %2831 = vmatprep.subr.mxu0 %v1248
        %2832 = vmatpush2.msra.mxu0 %v1247
        %2833 = vmatprep.subr.mxu0 %v1246
        %2834 = vmatpush2.msra.mxu0 %v1245
        %2835 = vmatprep.subr.mxu0 %v1244
        %2836 = vmatpush2.msra.mxu0 %v1243
        %2837 = vmatprep.subr.mxu0 %v1242
        %2838 = vmatpush2.msra.mxu0 %v1241
        %2839 = vmatprep.subr.mxu0 %v1240
        %2840 = vmatpush2.msra.mxu0 %v1239
        %2841 = vmatprep.subr.mxu0 %v1238
        %2842 = vmatpush2.msra.mxu0 %v1237
        %2843 = vmatprep.subr.mxu0 %v1236
        %2844 = vmatpush2.msra.mxu0 %v1235
        %2845 = vmatprep.subr.mxu0 %v1234
        %2846 = vmatpush2.msra.mxu0 %v1233
        %2847 = vmatprep.subr.mxu0 %v1232
        %2848 = vmatpush2.msra.mxu0 %v1231
        %2849 = vmatprep.subr.mxu0 %v1230
        %2850 = vmatpush2.msra.mxu0 %v1229
        %2851 = vmatprep.subr.mxu0 %v1228
        %2852 = vmatpush2.msra.mxu0 %v1227
        %2853 = vmatprep.subr.mxu0 %v1226
        %2854 = vmatpush2.msra.mxu0 %v1225
        %2855 = vmatprep.mubr.f32.mxu0 %v1721
        %2856 = vmatmul.mubr.f32.gmra.mxu0 %v1713
        %v2857 = vpop.f32.mrf.mxu0
        %v2858 = vadd.f32 %v2787, %v2857
        %v2859 = vpop.f32.mrf.mxu0
        %v2860 = vadd.f32 %v2789, %v2859
        %2861 = vdwg.mxu0
        %2862 = vmatprep.subr.mxu0 %v1288
        %2863 = vmatpush1.msra.mxu0 %v1287
        %2864 = vmatprep.subr.mxu0 %v1286
        %2865 = vmatpush1.msra.mxu0 %v1285
        %2866 = vmatprep.subr.mxu0 %v1284
        %2867 = vmatpush1.msra.mxu0 %v1283
        %2868 = vmatprep.subr.mxu0 %v1282
        %2869 = vmatpush1.msra.mxu0 %v1281
        %2870 = vmatprep.subr.mxu0 %v1280
        %2871 = vmatpush1.msra.mxu0 %v1279
        %2872 = vmatprep.subr.mxu0 %v1278
        %2873 = vmatpush1.msra.mxu0 %v1277
        %2874 = vmatprep.subr.mxu0 %v1276
        %2875 = vmatpush1.msra.mxu0 %v1275
        %2876 = vmatprep.subr.mxu0 %v1274
        %2877 = vmatpush1.msra.mxu0 %v1273
        %2878 = vmatprep.subr.mxu0 %v1272
        %2879 = vmatpush1.msra.mxu0 %v1271
        %2880 = vmatprep.subr.mxu0 %v1270
        %2881 = vmatpush1.msra.mxu0 %v1269
        %2882 = vmatprep.subr.mxu0 %v1268
        %2883 = vmatpush1.msra.mxu0 %v1267
        %2884 = vmatprep.subr.mxu0 %v1266
        %2885 = vmatpush1.msra.mxu0 %v1265
        %2886 = vmatprep.subr.mxu0 %v1264
        %2887 = vmatpush1.msra.mxu0 %v1263
        %2888 = vmatprep.subr.mxu0 %v1262
        %2889 = vmatpush1.msra.mxu0 %v1261
        %2890 = vmatprep.subr.mxu0 %v1260
        %2891 = vmatpush1.msra.mxu0 %v1259
        %2892 = vmatprep.subr.mxu0 %v1258
        %2893 = vmatpush1.msra.mxu0 %v1257
        %2894 = vmatprep.subr.mxu0 %v1320
        %2895 = vmatpush2.msra.mxu0 %v1319
        %2896 = vmatprep.subr.mxu0 %v1318
        %2897 = vmatpush2.msra.mxu0 %v1317
        %2898 = vmatprep.subr.mxu0 %v1316
        %2899 = vmatpush2.msra.mxu0 %v1315
        %2900 = vmatprep.subr.mxu0 %v1314
        %2901 = vmatpush2.msra.mxu0 %v1313
        %2902 = vmatprep.subr.mxu0 %v1312
        %2903 = vmatpush2.msra.mxu0 %v1311
        %2904 = vmatprep.subr.mxu0 %v1310
        %2905 = vmatpush2.msra.mxu0 %v1309
        %2906 = vmatprep.subr.mxu0 %v1308
        %2907 = vmatpush2.msra.mxu0 %v1307
        %2908 = vmatprep.subr.mxu0 %v1306
        %2909 = vmatpush2.msra.mxu0 %v1305
        %2910 = vmatprep.subr.mxu0 %v1304
        %2911 = vmatpush2.msra.mxu0 %v1303
        %2912 = vmatprep.subr.mxu0 %v1302
        %2913 = vmatpush2.msra.mxu0 %v1301
        %2914 = vmatprep.subr.mxu0 %v1300
        %2915 = vmatpush2.msra.mxu0 %v1299
        %2916 = vmatprep.subr.mxu0 %v1298
        %2917 = vmatpush2.msra.mxu0 %v1297
        %2918 = vmatprep.subr.mxu0 %v1296
        %2919 = vmatpush2.msra.mxu0 %v1295
        %2920 = vmatprep.subr.mxu0 %v1294
        %2921 = vmatpush2.msra.mxu0 %v1293
        %2922 = vmatprep.subr.mxu0 %v1292
        %2923 = vmatpush2.msra.mxu0 %v1291
        %2924 = vmatprep.subr.mxu0 %v1290
        %2925 = vmatpush2.msra.mxu0 %v1289
        %2926 = vmatprep.mubr.f32.mxu0 %v1722
        %2927 = vmatmul.mubr.f32.gmra.mxu0 %v1720
        %v2928 = vpop.f32.mrf.mxu0
        %v2929 = vadd.f32 %v2858, %v2928
        %v2930 = vpop.f32.mrf.mxu0
        %v2931 = vadd.f32 %v2860, %v2930
        %2932 = vdwg.mxu0
        %2933 = vmatprep.subr.mxu0 %v1352
        %2934 = vmatpush1.msra.mxu0 %v1351
        %2935 = vmatprep.subr.mxu0 %v1350
        %2936 = vmatpush1.msra.mxu0 %v1349
        %2937 = vmatprep.subr.mxu0 %v1348
        %2938 = vmatpush1.msra.mxu0 %v1347
        %2939 = vmatprep.subr.mxu0 %v1346
        %2940 = vmatpush1.msra.mxu0 %v1345
        %2941 = vmatprep.subr.mxu0 %v1344
        %2942 = vmatpush1.msra.mxu0 %v1343
        %2943 = vmatprep.subr.mxu0 %v1342
        %2944 = vmatpush1.msra.mxu0 %v1341
        %2945 = vmatprep.subr.mxu0 %v1340
        %2946 = vmatpush1.msra.mxu0 %v1339
        %2947 = vmatprep.subr.mxu0 %v1338
        %2948 = vmatpush1.msra.mxu0 %v1337
        %2949 = vmatprep.subr.mxu0 %v1336
        %2950 = vmatpush1.msra.mxu0 %v1335
        %2951 = vmatprep.subr.mxu0 %v1334
        %2952 = vmatpush1.msra.mxu0 %v1333
        %2953 = vmatprep.subr.mxu0 %v1332
        %2954 = vmatpush1.msra.mxu0 %v1331
        %2955 = vmatprep.subr.mxu0 %v1330
        %2956 = vmatpush1.msra.mxu0 %v1329
        %2957 = vmatprep.subr.mxu0 %v1328
        %2958 = vmatpush1.msra.mxu0 %v1327
        %2959 = vmatprep.subr.mxu0 %v1326
        %2960 = vmatpush1.msra.mxu0 %v1325
        %2961 = vmatprep.subr.mxu0 %v1324
        %2962 = vmatpush1.msra.mxu0 %v1323
        %2963 = vmatprep.subr.mxu0 %v1322
        %2964 = vmatpush1.msra.mxu0 %v1321
        %2965 = vmatprep.subr.mxu0 %v1384
        %2966 = vmatpush2.msra.mxu0 %v1383
        %2967 = vmatprep.subr.mxu0 %v1382
        %2968 = vmatpush2.msra.mxu0 %v1381
        %2969 = vmatprep.subr.mxu0 %v1380
        %2970 = vmatpush2.msra.mxu0 %v1379
        %2971 = vmatprep.subr.mxu0 %v1378
        %2972 = vmatpush2.msra.mxu0 %v1377
        %2973 = vmatprep.subr.mxu0 %v1376
        %2974 = vmatpush2.msra.mxu0 %v1375
        %2975 = vmatprep.subr.mxu0 %v1374
        %2976 = vmatpush2.msra.mxu0 %v1373
        %2977 = vmatprep.subr.mxu0 %v1372
        %2978 = vmatpush2.msra.mxu0 %v1371
        %2979 = vmatprep.subr.mxu0 %v1370
        %2980 = vmatpush2.msra.mxu0 %v1369
        %2981 = vmatprep.subr.mxu0 %v1368
        %2982 = vmatpush2.msra.mxu0 %v1367
        %2983 = vmatprep.subr.mxu0 %v1366
        %2984 = vmatpush2.msra.mxu0 %v1365
        %2985 = vmatprep.subr.mxu0 %v1364
        %2986 = vmatpush2.msra.mxu0 %v1363
        %2987 = vmatprep.subr.mxu0 %v1362
        %2988 = vmatpush2.msra.mxu0 %v1361
        %2989 = vmatprep.subr.mxu0 %v1360
        %2990 = vmatpush2.msra.mxu0 %v1359
        %2991 = vmatprep.subr.mxu0 %v1358
        %2992 = vmatpush2.msra.mxu0 %v1357
        %2993 = vmatprep.subr.mxu0 %v1356
        %2994 = vmatpush2.msra.mxu0 %v1355
        %2995 = vmatprep.subr.mxu0 %v1354
        %2996 = vmatpush2.msra.mxu0 %v1353
        %2997 = vmatprep.mubr.f32.mxu0 %v1738
        %2998 = vmatmul.mubr.f32.gmra.mxu0 %v1730
        %v2999 = vpop.f32.mrf.mxu0
        %v3000 = vadd.f32 %v2929, %v2999
        %v3001 = vpop.f32.mrf.mxu0
        %v3002 = vadd.f32 %v2931, %v3001
        %3003 = vdwg.mxu0
        %3004 = vmatprep.subr.mxu0 %v1416
        %3005 = vmatpush1.msra.mxu0 %v1415
        %3006 = vmatprep.subr.mxu0 %v1414
        %3007 = vmatpush1.msra.mxu0 %v1413
        %3008 = vmatprep.subr.mxu0 %v1412
        %3009 = vmatpush1.msra.mxu0 %v1411
        %3010 = vmatprep.subr.mxu0 %v1410
        %3011 = vmatpush1.msra.mxu0 %v1409
        %3012 = vmatprep.subr.mxu0 %v1408
        %3013 = vmatpush1.msra.mxu0 %v1407
        %3014 = vmatprep.subr.mxu0 %v1406
        %3015 = vmatpush1.msra.mxu0 %v1405
        %3016 = vmatprep.subr.mxu0 %v1404
        %3017 = vmatpush1.msra.mxu0 %v1403
        %3018 = vmatprep.subr.mxu0 %v1402
        %3019 = vmatpush1.msra.mxu0 %v1401
        %3020 = vmatprep.subr.mxu0 %v1400
        %3021 = vmatpush1.msra.mxu0 %v1399
        %3022 = vmatprep.subr.mxu0 %v1398
        %3023 = vmatpush1.msra.mxu0 %v1397
        %3024 = vmatprep.subr.mxu0 %v1396
        %3025 = vmatpush1.msra.mxu0 %v1395
        %3026 = vmatprep.subr.mxu0 %v1394
        %3027 = vmatpush1.msra.mxu0 %v1393
        %3028 = vmatprep.subr.mxu0 %v1392
        %3029 = vmatpush1.msra.mxu0 %v1391
        %3030 = vmatprep.subr.mxu0 %v1390
        %3031 = vmatpush1.msra.mxu0 %v1389
        %3032 = vmatprep.subr.mxu0 %v1388
        %3033 = vmatpush1.msra.mxu0 %v1387
        %3034 = vmatprep.subr.mxu0 %v1386
        %3035 = vmatpush1.msra.mxu0 %v1385
        %3036 = vmatprep.subr.mxu0 %v1448
        %3037 = vmatpush2.msra.mxu0 %v1447
        %3038 = vmatprep.subr.mxu0 %v1446
        %3039 = vmatpush2.msra.mxu0 %v1445
        %3040 = vmatprep.subr.mxu0 %v1444
        %3041 = vmatpush2.msra.mxu0 %v1443
        %3042 = vmatprep.subr.mxu0 %v1442
        %3043 = vmatpush2.msra.mxu0 %v1441
        %3044 = vmatprep.subr.mxu0 %v1440
        %3045 = vmatpush2.msra.mxu0 %v1439
        %3046 = vmatprep.subr.mxu0 %v1438
        %3047 = vmatpush2.msra.mxu0 %v1437
        %3048 = vmatprep.subr.mxu0 %v1436
        %3049 = vmatpush2.msra.mxu0 %v1435
        %3050 = vmatprep.subr.mxu0 %v1434
        %3051 = vmatpush2.msra.mxu0 %v1433
        %3052 = vmatprep.subr.mxu0 %v1432
        %3053 = vmatpush2.msra.mxu0 %v1431
        %3054 = vmatprep.subr.mxu0 %v1430
        %3055 = vmatpush2.msra.mxu0 %v1429
        %3056 = vmatprep.subr.mxu0 %v1428
        %3057 = vmatpush2.msra.mxu0 %v1427
        %3058 = vmatprep.subr.mxu0 %v1426
        %3059 = vmatpush2.msra.mxu0 %v1425
        %3060 = vmatprep.subr.mxu0 %v1424
        %3061 = vmatpush2.msra.mxu0 %v1423
        %3062 = vmatprep.subr.mxu0 %v1422
        %3063 = vmatpush2.msra.mxu0 %v1421
        %3064 = vmatprep.subr.mxu0 %v1420
        %3065 = vmatpush2.msra.mxu0 %v1419
        %3066 = vmatprep.subr.mxu0 %v1418
        %3067 = vmatpush2.msra.mxu0 %v1417
        %3068 = vmatprep.mubr.f32.mxu0 %v1739
        %3069 = vmatmul.mubr.f32.gmra.mxu0 %v1737
        %v3070 = vpop.f32.mrf.mxu0
        %v3071 = vadd.f32 %v3000, %v3070
        %v3072 = vpop.f32.mrf.mxu0
        %v3073 = vadd.f32 %v3002, %v3072
        %3074 = vdwg.mxu0
        %3075 = vmatprep.subr.mxu0 %v1480
        %3076 = vmatpush1.msra.mxu0 %v1479
        %3077 = vmatprep.subr.mxu0 %v1478
        %3078 = vmatpush1.msra.mxu0 %v1477
        %3079 = vmatprep.subr.mxu0 %v1476
        %3080 = vmatpush1.msra.mxu0 %v1475
        %3081 = vmatprep.subr.mxu0 %v1474
        %3082 = vmatpush1.msra.mxu0 %v1473
        %3083 = vmatprep.subr.mxu0 %v1472
        %3084 = vmatpush1.msra.mxu0 %v1471
        %3085 = vmatprep.subr.mxu0 %v1470
        %3086 = vmatpush1.msra.mxu0 %v1469
        %3087 = vmatprep.subr.mxu0 %v1468
        %3088 = vmatpush1.msra.mxu0 %v1467
        %3089 = vmatprep.subr.mxu0 %v1466
        %3090 = vmatpush1.msra.mxu0 %v1465
        %3091 = vmatprep.subr.mxu0 %v1464
        %3092 = vmatpush1.msra.mxu0 %v1463
        %3093 = vmatprep.subr.mxu0 %v1462
        %3094 = vmatpush1.msra.mxu0 %v1461
        %3095 = vmatprep.subr.mxu0 %v1460
        %3096 = vmatpush1.msra.mxu0 %v1459
        %3097 = vmatprep.subr.mxu0 %v1458
        %3098 = vmatpush1.msra.mxu0 %v1457
        %3099 = vmatprep.subr.mxu0 %v1456
        %3100 = vmatpush1.msra.mxu0 %v1455
        %3101 = vmatprep.subr.mxu0 %v1454
        %3102 = vmatpush1.msra.mxu0 %v1453
        %3103 = vmatprep.subr.mxu0 %v1452
        %3104 = vmatpush1.msra.mxu0 %v1451
        %3105 = vmatprep.subr.mxu0 %v1450
        %3106 = vmatpush1.msra.mxu0 %v1449
        %3107 = vmatprep.subr.mxu0 %v1512
        %3108 = vmatpush2.msra.mxu0 %v1511
        %3109 = vmatprep.subr.mxu0 %v1510
        %3110 = vmatpush2.msra.mxu0 %v1509
        %3111 = vmatprep.subr.mxu0 %v1508
        %3112 = vmatpush2.msra.mxu0 %v1507
        %3113 = vmatprep.subr.mxu0 %v1506
        %3114 = vmatpush2.msra.mxu0 %v1505
        %3115 = vmatprep.subr.mxu0 %v1504
        %3116 = vmatpush2.msra.mxu0 %v1503
        %3117 = vmatprep.subr.mxu0 %v1502
        %3118 = vmatpush2.msra.mxu0 %v1501
        %3119 = vmatprep.subr.mxu0 %v1500
        %3120 = vmatpush2.msra.mxu0 %v1499
        %3121 = vmatprep.subr.mxu0 %v1498
        %3122 = vmatpush2.msra.mxu0 %v1497
        %3123 = vmatprep.subr.mxu0 %v1496
        %3124 = vmatpush2.msra.mxu0 %v1495
        %3125 = vmatprep.subr.mxu0 %v1494
        %3126 = vmatpush2.msra.mxu0 %v1493
        %3127 = vmatprep.subr.mxu0 %v1492
        %3128 = vmatpush2.msra.mxu0 %v1491
        %3129 = vmatprep.subr.mxu0 %v1490
        %3130 = vmatpush2.msra.mxu0 %v1489
        %3131 = vmatprep.subr.mxu0 %v1488
        %3132 = vmatpush2.msra.mxu0 %v1487
        %3133 = vmatprep.subr.mxu0 %v1486
        %3134 = vmatpush2.msra.mxu0 %v1485
        %3135 = vmatprep.subr.mxu0 %v1484
        %3136 = vmatpush2.msra.mxu0 %v1483
        %3137 = vmatprep.subr.mxu0 %v1482
        %3138 = vmatpush2.msra.mxu0 %v1481
        %3139 = vmatprep.mubr.f32.mxu0 %v1755
        %3140 = vmatmul.mubr.f32.gmra.mxu0 %v1747
        %v3141 = vpop.f32.mrf.mxu0
        %v3142 = vadd.f32 %v3071, %v3141
        %v3143 = vpop.f32.mrf.mxu0
        %v3144 = vadd.f32 %v3073, %v3143
        %3145 = vdwg.mxu0
        %3146 = vmatprep.subr.mxu0 %v1544
        %3147 = vmatpush1.msra.mxu0 %v1543
        %3148 = vmatprep.subr.mxu0 %v1542
        %3149 = vmatpush1.msra.mxu0 %v1541
        %3150 = vmatprep.subr.mxu0 %v1540
        %3151 = vmatpush1.msra.mxu0 %v1539
        %3152 = vmatprep.subr.mxu0 %v1538
        %3153 = vmatpush1.msra.mxu0 %v1537
        %3154 = vmatprep.subr.mxu0 %v1536
        %3155 = vmatpush1.msra.mxu0 %v1535
        %3156 = vmatprep.subr.mxu0 %v1534
        %3157 = vmatpush1.msra.mxu0 %v1533
        %3158 = vmatprep.subr.mxu0 %v1532
        %3159 = vmatpush1.msra.mxu0 %v1531
        %3160 = vmatprep.subr.mxu0 %v1530
        %3161 = vmatpush1.msra.mxu0 %v1529
        %3162 = vmatprep.subr.mxu0 %v1528
        %3163 = vmatpush1.msra.mxu0 %v1527
        %3164 = vmatprep.subr.mxu0 %v1526
        %3165 = vmatpush1.msra.mxu0 %v1525
        %3166 = vmatprep.subr.mxu0 %v1524
        %3167 = vmatpush1.msra.mxu0 %v1523
        %3168 = vmatprep.subr.mxu0 %v1522
        %3169 = vmatpush1.msra.mxu0 %v1521
        %3170 = vmatprep.subr.mxu0 %v1520
        %3171 = vmatpush1.msra.mxu0 %v1519
        %3172 = vmatprep.subr.mxu0 %v1518
        %3173 = vmatpush1.msra.mxu0 %v1517
        %3174 = vmatprep.subr.mxu0 %v1516
        %3175 = vmatpush1.msra.mxu0 %v1515
        %3176 = vmatprep.subr.mxu0 %v1514
        %3177 = vmatpush1.msra.mxu0 %v1513
        %3178 = vmatprep.subr.mxu0 %v1576
        %3179 = vmatpush2.msra.mxu0 %v1575
        %3180 = vmatprep.subr.mxu0 %v1574
        %3181 = vmatpush2.msra.mxu0 %v1573
        %3182 = vmatprep.subr.mxu0 %v1572
        %3183 = vmatpush2.msra.mxu0 %v1571
        %3184 = vmatprep.subr.mxu0 %v1570
        %3185 = vmatpush2.msra.mxu0 %v1569
        %3186 = vmatprep.subr.mxu0 %v1568
        %3187 = vmatpush2.msra.mxu0 %v1567
        %3188 = vmatprep.subr.mxu0 %v1566
        %3189 = vmatpush2.msra.mxu0 %v1565
        %3190 = vmatprep.subr.mxu0 %v1564
        %3191 = vmatpush2.msra.mxu0 %v1563
        %3192 = vmatprep.subr.mxu0 %v1562
        %3193 = vmatpush2.msra.mxu0 %v1561
        %3194 = vmatprep.subr.mxu0 %v1560
        %3195 = vmatpush2.msra.mxu0 %v1559
        %3196 = vmatprep.subr.mxu0 %v1558
        %3197 = vmatpush2.msra.mxu0 %v1557
        %3198 = vmatprep.subr.mxu0 %v1556
        %3199 = vmatpush2.msra.mxu0 %v1555
        %3200 = vmatprep.subr.mxu0 %v1554
        %3201 = vmatpush2.msra.mxu0 %v1553
        %3202 = vmatprep.subr.mxu0 %v1552
        %3203 = vmatpush2.msra.mxu0 %v1551
        %3204 = vmatprep.subr.mxu0 %v1550
        %3205 = vmatpush2.msra.mxu0 %v1549
        %3206 = vmatprep.subr.mxu0 %v1548
        %3207 = vmatpush2.msra.mxu0 %v1547
        %3208 = vmatprep.subr.mxu0 %v1546
        %3209 = vmatpush2.msra.mxu0 %v1545
        %3210 = vmatprep.mubr.f32.mxu0 %v1756
        %3211 = vmatmul.mubr.f32.gmra.mxu0 %v1754
        %v3212 = vpop.f32.mrf.mxu0
        %v3213 = vadd.f32 %v3142, %v3212
        %v3214 = vpop.f32.mrf.mxu0
        %v3215 = vadd.f32 %v3144, %v3214
        %3216 = vdwg.mxu0
        %v3219 = vcombine.low %v3213, %v3215
        %v3221 = vunpack.c.l.s4 1983009808
        %v3222 = vunpack.c.0.s8 %v3221
        %v3223 = vlaneseq
        %v3224 = vshrl.u32 %v3223, 7
        %v3225 = vsub.s32 %v3222, %v3224
        %v3226 = vrot.slane %v3219, %v3225
        %v3228 = vadd.f32 %v286, %v3226
        %3229 = vst [vmem:[#allocation2] sm:$0xf] %v3228
        %p3230 = scmp.eq.s32.totalorder %s22, 1
        // Predicated region
        $region57: #{critic_forward.3} parent=39 // pred_check
          %p3231 = pneg %p3230
        $region58: #{critic_forward.3} parent=39 // pred_check_branch
          %3233 = sbr.rel (%p3231) target = $region60
        $region59: #{critic_forward.3} parent=39 // pred_region
          %v3234 = vld [vmem:[#allocation2] sm:$0xf]
          %v3235 = vld [vmem:[#allocation6] sm:$0x3]
          %v3237 = vlaneseq
          %v3238 = vshrl.u32 %v3237, 7
          %v3239 = vsub.s32 0, %v3238
          %v3240 = vrot.slane %v3235, %v3239
          %v3241 = vlaneseq
          %v3242 = vshrl.u32 %v3241, 7
          %v3243 = vsub.s32 1, %v3242
          %v3244 = vrot.slane %v3235, %v3243
          %v3245 = vcombine.low %v3240, %v3244
          %v3247 = vunpack.c.l.s4 1983009808
          %v3248 = vunpack.c.0.s8 %v3247
          %v3249 = vlaneseq
          %v3250 = vshrl.u32 %v3249, 7
          %v3251 = vsub.s32 %v3248, %v3250
          %v3252 = vrot.slane %v3245, %v3251
          %v3254 = vadd.f32 %v3234, %v3252
          %v3255 = vtanh.pop %v3254
          %v3256 = vld [vmem:[#allocation8] sm:$0x3]
          %v3258 = vlaneseq
          %v3259 = vshrl.u32 %v3258, 7
          %v3260 = vsub.s32 0, %v3259
          %v3261 = vrot.slane %v3256, %v3260
          %v3262 = vlaneseq
          %v3263 = vshrl.u32 %v3262, 7
          %v3264 = vsub.s32 1, %v3263
          %v3265 = vrot.slane %v3256, %v3264
          %v3266 = vcombine.low %v3261, %v3265
          %v3268 = vunpack.c.l.s4 1983009808
          %v3269 = vunpack.c.0.s8 %v3268
          %v3270 = vlaneseq
          %v3271 = vshrl.u32 %v3270, 7
          %v3272 = vsub.s32 %v3269, %v3271
          %v3273 = vrot.slane %v3266, %v3272
          %v3275 = vmul.f32 %v3255, %v3273
          %v3278 = vunpack.c.l.s4 1983009808
          %v3279 = vunpack.c.0.s8 %v3278
          %v3280 = vlaneseq
          %v3281 = vshrl.u32 %v3280, 7
          %v3282 = vsub.s32 %v3279, %v3281
          %v3283 = vrot.slane %v3275, %v3282
          %v3284 = vcombine.high %v3283, %v3283
          %vm3287 = vcmask 1041408
          %v3288 = vsel %vm3287, %v3283, 0.0
          %v3289 = vsel %vm3287, %v3284, 0.0
          %v3290 = vadd.f32 %v3288, %v3289
          %3291 = vadd.xlane.f32.xlu0 %v3290
          %v3292 = vpop.xlane.xlu0 %3291
          %v3293 = vld [vmem:[#allocation3] sm:$0x1]
          %v3295 = vlaneseq
          %v3296 = vshrl.u32 %v3295, 7
          %v3297 = vsub.s32 0, %v3296
          %v3298 = vrot.slane %v3293, %v3297
          %v3300 = vadd.f32 %v3292, %v3298
          %vm3301 = vcmask 1024
          %3302 = vst.msk [vmem:[%s5] sm:$0x3] %vm3301, %v3300
        $region60: #{critic_forward.3} parent=39 // pred_fallthru
          _
        // Predicated region
        $region61: #{critic_forward.3} parent=39 // pred_check
          %p3303 = pneg %p150
        $region62: #{critic_forward.3} parent=39 // pred_check_branch
          %3305 = sbr.rel (%p3303) target = $region64
        $region63: #{critic_forward.3} parent=39 // pred_region
          _
        $region64: #{critic_forward.3} parent=39 // pred_fallthru
          _
        // Predicated region
        $region65: #{critic_forward.3} parent=39 // pred_check
          %p3306 = pneg %p150
        $region66: #{critic_forward.3} parent=39 // pred_check_branch
          %3308 = sbr.rel (%p3306) target = $region68
        $region67: #{critic_forward.3} parent=39 // pred_region
          _
        $region68: #{critic_forward.3} parent=39 // pred_fallthru
          _
      $region40: #{critic_forward.3} parent=5 // pred_fallthru
        _
      %p3309 = scmp.le.s32.totalorder 2, %s17
      // Predicated region
      $region69: #{critic_forward.3} parent=5 // pred_check
        %p3310 = pneg %p3309
      $region70: #{critic_forward.3} parent=5 // pred_check_branch
        %3312 = sbr.rel (%p3310) target = $region72
      $region71: #{critic_forward.3} parent=5 // pred_region
        %s3313 = ssub.s32 %s17, 2
      $region72: #{critic_forward.3} parent=5 // pred_fallthru
        _
    $region6: #{critic_forward.3} parent=1 // loop_footer
      %s21 = sadd.s32 1, %s17
    $region7: #{critic_forward.3} parent=1 // loop_footer_branch
      %16 = sbr.rel target = $region3
    $region8: #{critic_forward.3} parent=1 // loop_exit
      _
    %3314 = vsyncpa [#allocation5], 1
    %s3315 = scalar_lea.sflag [#allocation5], 1
    %3316 = vsyncpa %s3315, 1
    %3317 = vsyncpa [#allocation7], 1

</llo_original>
